<compile_context>
chip_gen: v5e
topology: v5e:2x2
jax: 0.10.0
libtpu: 0.0.40
codegen_flags: <defaults>
</compile_context>

<pallas_src>
import functools
import math

import numpy as np
import jax
import jax.numpy as jnp
from jax.experimental import pallas as pl
from jax.experimental.pallas import tpu as pltpu

F32 = jnp.float32
HIGHEST = jax.lax.Precision.HIGHEST


# ----------------------------------------------------------------------------
# Pallas kernel: full forward (all batches) in one invocation
# ----------------------------------------------------------------------------
def fused_mha_kernel(xq_ref, xk_ref, xv_ref, ek_ref, eq_ref, ev_ref, mask_ref,
                     wq_ref, wk_ref, wv_ref, bv_ref, wo_ref, bo_ref, o_ref,
                     *, batch, heads, scale):
    """Edge-augmented multi-head attention, whole problem in one grid step.

    xq/xk/xv : (B*S, hidden)        flattened raw inputs
    ek/eq/ev : (B, S, S, hidden)    edge tensors, pre-tiled across heads
                                    (eq is edge_query already transposed to
                                     [b, q, k, d] order)
    mask     : (B, S, S)            1.0 = keep, 0.0 = masked
    wq/wk/wv/wo : (hidden, hidden)  pre-transposed torch Linear weights
    bv/bo    : (1, hidden)
    o        : (B, S, hidden)
    """
    BS, hidden = xq_ref.shape
    B = batch
    S = BS // B
    D = hidden // heads
    neg = jnp.float32(-100000.0)

    # Batched QKV projections: one (B*S, hidden) @ (hidden, hidden) MXU matmul
    # each (all batches, all heads at once).
    q_all = jnp.dot(xq_ref[...], wq_ref[...],
                    preferred_element_type=F32, precision=HIGHEST)
    k_all = jnp.dot(xk_ref[...], wk_ref[...],
                    preferred_element_type=F32, precision=HIGHEST)
    v_all = jnp.dot(xv_ref[...], wv_ref[...],
                    preferred_element_type=F32, precision=HIGHEST) + bv_ref[...]

    wo = wo_ref[...]
    bo = bo_ref[...]

    for b in range(B):  # B == 2: tiny unrolled loop inside the single grid step
        qb = q_all[b * S:(b + 1) * S]          # (S, hidden)
        kb = k_all[b * S:(b + 1) * S]
        vb = v_all[b * S:(b + 1) * S]

        # ---- scores, all heads in one lane-dense (S, S, hidden) pass -------
        #   sum_d (q + eq^T) * (k + ek) == q.k + q.ek + eq.k + eq.ek
        # (edges are tiled across heads in the wrapper, so the head-independent
        #  eq.ek term is produced once, inside this single vectorized pass).
        ekb = ek_ref[b]                         # (S, S, hidden)
        eqb = eq_ref[b]                         # (S, S, hidden)
        prod = (qb[:, None, :] + eqb) * (kb[None, :, :] + ekb)   # (S, S, hidden)

        # Per-head lane-group reduction -> (heads, S, S) with keys on lanes.
        scores = jnp.stack(
            [jnp.sum(prod[:, :, h * D:(h + 1) * D], axis=-1)
             for h in range(heads)],
            axis=0) * scale                                      # (H, S, S)

        # Mask exactly like torch: masked_fill(mask == 0, -100000) after scale.
        keepb = mask_ref[b]                                      # (S, S)
        scores = jnp.where(keepb[None, :, :] > 0.5, scores, neg)

        # Numerically stable softmax, exact division, once for all heads.
        scores = scores - jnp.max(scores, axis=-1, keepdims=True)
        e = jnp.exp(scores)
        attn = e / jnp.sum(e, axis=-1, keepdims=True)            # (H, S, S)

        # ---- context, all heads in one pass ---------------------------------
        #   ctx[q, h*D + d] = sum_k attn[h, q, k] * (v[k, h*D + d] + ev[q, k, d])
        attn_exp = jnp.concatenate(
            [jnp.broadcast_to(attn[h][:, :, None], (S, S, D))
             for h in range(heads)],
            axis=-1)                                             # (S, S, hidden)
        evb = ev_ref[b]                                          # (S, S, hidden)
        ctx = jnp.sum(attn_exp * (vb[None, :, :] + evb), axis=1)  # (S, hidden)

        # Single output-projection matmul + bias.
        o_ref[b] = jnp.dot(ctx, wo, preferred_element_type=F32,
                           precision=HIGHEST) + bo


# ----------------------------------------------------------------------------
# Wrapper
# ----------------------------------------------------------------------------
def build_keep_pattern(seq_len: int) -> np.ndarray:
    """Static 'remove_mask' pattern from MultiHeadAttention.forward."""
    keep = np.ones((seq_len, seq_len), dtype=bool)
    for i in range(3, seq_len, 2):
        if i == 3:
            keep[i:i + 2, i + 2:] = False
        elif i == seq_len - 2:
            keep[i:i + 2, 3:i] = False
        else:
            keep[i:i + 2, i + 2:] = False
            keep[i:i + 2, 3:i] = False
    return keep


def multi_head_attention(params, *, query, key, value, graph,
                         edge_key, edge_value, edge_query, heads):
    B, S, hidden = query.shape
    D = hidden // heads
    scale = 1.0 / math.sqrt(D)

    # Combined graph + static remove_mask pattern (1.0 keep / 0.0 masked).
    keep = jnp.asarray(build_keep_pattern(S))
    mask = ((graph != 0) & keep[None]).astype(jnp.float32)        # (B, S, S)

    # Edge tensors tiled across heads -> lane width = hidden (32).
    # edge_query is indexed 'bkqd' in the torch einsums -> transpose to [b,q,k,d].
    ek_t = jnp.tile(edge_key, (1, 1, 1, heads))                   # (B,S,S,hidden)
    eq_t = jnp.tile(jnp.swapaxes(edge_query, 1, 2), (1, 1, 1, heads))
    ev_t = jnp.tile(edge_value, (1, 1, 1, heads))

    # torch Linear: y = x @ W^T (+ b) -> pre-transpose the weights once.
    wqT = params["w_q"].T
    wkT = params["w_k"].T
    wvT = params["w_v"].T
    woT = params["w_out"].T
    bv = params["b_v"].reshape(1, hidden)
    bo = params["b_out"].reshape(1, hidden)

    # Flatten inputs so the QKV projections are single (B*S, hidden) matmuls.
    xq = query.reshape(B * S, hidden)
    xk = key.reshape(B * S, hidden)
    xv = value.reshape(B * S, hidden)

    kernel = functools.partial(fused_mha_kernel, batch=B, heads=heads,
                               scale=scale)

    out = pl.pallas_call(
        kernel,
        out_shape=jax.ShapeDtypeStruct((B, S, hidden), jnp.float32),
        grid=(1,),   # batch folded into one step (single-TC v5e/v6e friendly)
        in_specs=[
            pl.BlockSpec((B * S, hidden), lambda i: (0, 0)),          # xq
            pl.BlockSpec((B * S, hidden), lambda i: (0, 0)),          # xk
            pl.BlockSpec((B * S, hidden), lambda i: (0, 0)),          # xv
            pl.BlockSpec((B, S, S, hidden), lambda i: (0, 0, 0, 0)),  # edge_key (tiled)
            pl.BlockSpec((B, S, S, hidden), lambda i: (0, 0, 0, 0)),  # edge_query^T (tiled)
            pl.BlockSpec((B, S, S, hidden), lambda i: (0, 0, 0, 0)),  # edge_value (tiled)
            pl.BlockSpec((B, S, S), lambda i: (0, 0, 0)),             # mask
            pl.BlockSpec((hidden, hidden), lambda i: (0, 0)),         # w_q^T
            pl.BlockSpec((hidden, hidden), lambda i: (0, 0)),         # w_k^T
            pl.BlockSpec((hidden, hidden), lambda i: (0, 0)),         # w_v^T
            pl.BlockSpec((1, hidden), lambda i: (0, 0)),              # b_v
            pl.BlockSpec((hidden, hidden), lambda i: (0, 0)),         # w_out^T
            pl.BlockSpec((1, hidden), lambda i: (0, 0)),              # b_out
        ],
        out_specs=pl.BlockSpec((B, S, hidden), lambda i: (0, 0, 0)),
        compiler_params=pltpu.CompilerParams(
            dimension_semantics=("arbitrary",)),
    )(xq, xk, xv, ek_t, eq_t, ev_t, mask, wqT, wkT, wvT, bv, woT, bo)

    # dropout(p=0.0) / eval mode -> identity, omitted.
    return out


# ----------------------------------------------------------------------------
# Pure-JAX reference (mirrors the PyTorch forward exactly)
# ----------------------------------------------------------------------------
def reference(params, *, query, key, value, graph, edge_key, edge_value,
              edge_query, heads):
    B, S, hidden = query.shape
    D = hidden // heads
    scale = 1.0 / math.sqrt(D)
    q = jnp.matmul(query, params["w_q"].T, precision=HIGHEST).reshape(B, S, heads, D)
    k = jnp.matmul(key, params["w_k"].T, precision=HIGHEST).reshape(B, S, heads, D)
    v = (jnp.matmul(value, params["w_v"].T, precision=HIGHEST)
         + params["b_v"]).reshape(B, S, heads, D)
    scores = (jnp.einsum('bqhd,bkhd->bhqk', q, k, precision=HIGHEST)
              + jnp.einsum('bqhd,bqkd->bhqk', q, edge_key, precision=HIGHEST)
              + jnp.einsum('bkqd,bkhd->bhqk', edge_query, k, precision=HIGHEST)
              + jnp.einsum('bkqd,bqkd->bqk', edge_query, edge_key,
                           precision=HIGHEST)[:, None])
    scores = scores * scale
    keep = jnp.asarray(build_keep_pattern(S))
    mask = (graph != 0)[:, None] & keep[None, None]
    scores = jnp.where(mask, scores, -100000.0)
    attn = jax.nn.softmax(scores, axis=-1)
    x = (jnp.einsum('bhqk,bkhd->bqhd', attn, v, precision=HIGHEST)
         + jnp.einsum('bhqk,bqkd->bqhd', attn, edge_value, precision=HIGHEST))
    x = x.reshape(B, S, hidden)
    return jnp.matmul(x, params["w_out"].T, precision=HIGHEST) + params["b_out"]


# ----------------------------------------------------------------------------
# Main
# ----------------------------------------------------------------------------
if __name__ == "__main__":
    B, S, hidden, heads = 2, 9, 32, 4
    D = hidden // heads

    key0 = jax.random.PRNGKey(0)
    (k_q, k_k, k_v, k_bv, k_o, k_bo,
     k_x, k_xk, k_xv, k_g, k_ek, k_ev, k_eq) = jax.random.split(key0, 13)

    s = 1.0 / math.sqrt(hidden)
    params = {
        "w_q": jax.random.normal(k_q, (hidden, hidden), jnp.float32) * s,
        "w_k": jax.random.normal(k_k, (hidden, hidden), jnp.float32) * s,
        "w_v": jax.random.normal(k_v, (hidden, hidden), jnp.float32) * s,
        "b_v": jax.random.normal(k_bv, (hidden,), jnp.float32) * 0.1,
        "w_out": jax.random.normal(k_o, (hidden, hidden), jnp.float32) * s,
        "b_out": jax.random.normal(k_bo, (hidden,), jnp.float32) * 0.1,
    }

    query = jax.random.normal(k_x, (B, S, hidden), jnp.float32)
    key_in = jax.random.normal(k_xk, (B, S, hidden), jnp.float32)
    value = jax.random.normal(k_xv, (B, S, hidden), jnp.float32)

    graph = jax.random.bernoulli(k_g, 0.7, (B, S, S)).astype(jnp.float32)
    eye = jnp.eye(S, dtype=jnp.float32)[None]
    graph = jnp.maximum(graph, eye)  # keep diagonal connected

    edge_key = jax.random.normal(k_ek, (B, S, S, D), jnp.float32) * 0.5
    edge_value = jax.random.normal(k_ev, (B, S, S, D), jnp.float32) * 0.5
    edge_query = jax.random.normal(k_eq, (B, S, S, D), jnp.float32) * 0.5

    out = multi_head_attention(params, query=query, key=key_in, value=value,
                               graph=graph, edge_key=edge_key,
                               edge_value=edge_value, edge_query=edge_query,
                               heads=heads)
    out = jax.block_until_ready(out)

    ref = reference(params, query=query, key=key_in, value=value,
                    graph=graph, edge_key=edge_key, edge_value=edge_value,
                    edge_query=edge_query, heads=heads)
    ref = jax.block_until_ready(ref)

    assert out.shape == (B, S, hidden)
    err = float(jnp.max(jnp.abs(out - ref)))
    assert jnp.allclose(out, ref, atol=2e-3, rtol=2e-3), err
    print("KERNEL_OK")
</pallas_src>

<mosaic_0001>
module attributes {stable_mosaic.version = 11 : i64} {
  func.func @fused_mha_kernel(%arg0: i32, %arg1: memref<18x32xf32, #tpu.memory_space<vmem>>, %arg2: memref<18x32xf32, #tpu.memory_space<vmem>>, %arg3: memref<18x32xf32, #tpu.memory_space<vmem>>, %arg4: memref<2x9x9x32xf32, #tpu.memory_space<vmem>>, %arg5: memref<2x9x9x32xf32, #tpu.memory_space<vmem>>, %arg6: memref<2x9x9x32xf32, #tpu.memory_space<vmem>>, %arg7: memref<2x9x9xf32, #tpu.memory_space<vmem>>, %arg8: memref<32x32xf32, #tpu.memory_space<vmem>>, %arg9: memref<32x32xf32, #tpu.memory_space<vmem>>, %arg10: memref<32x32xf32, #tpu.memory_space<vmem>>, %arg11: memref<1x32xf32, #tpu.memory_space<vmem>>, %arg12: memref<32x32xf32, #tpu.memory_space<vmem>>, %arg13: memref<1x32xf32, #tpu.memory_space<vmem>>, %arg14: memref<2x9x32xf32, #tpu.memory_space<vmem>>) attributes {dimension_semantics = [#tpu.dimension_semantics<arbitrary>], iteration_bounds = array<i64: 1>, scalar_prefetch = 0 : i64, scratch_operands = 0 : i64, tpu.core_type = #tpu.core_type<tc>, window_params = [{pipeline_mode = #tpu.pipeline_mode<synchronous>, transform_indices = @transform_0, window_bounds = array<i64: 18, 32>}, {pipeline_mode = #tpu.pipeline_mode<synchronous>, transform_indices = @transform_1, window_bounds = array<i64: 18, 32>}, {pipeline_mode = #tpu.pipeline_mode<synchronous>, transform_indices = @transform_2, window_bounds = array<i64: 18, 32>}, {pipeline_mode = #tpu.pipeline_mode<synchronous>, transform_indices = @transform_3, window_bounds = array<i64: 2, 9, 9, 32>}, {pipeline_mode = #tpu.pipeline_mode<synchronous>, transform_indices = @transform_4, window_bounds = array<i64: 2, 9, 9, 32>}, {pipeline_mode = #tpu.pipeline_mode<synchronous>, transform_indices = @transform_5, window_bounds = array<i64: 2, 9, 9, 32>}, {pipeline_mode = #tpu.pipeline_mode<synchronous>, transform_indices = @transform_6, window_bounds = array<i64: 2, 9, 9>}, {pipeline_mode = #tpu.pipeline_mode<synchronous>, transform_indices = @transform_7, window_bounds = array<i64: 32, 32>}, {pipeline_mode = #tpu.pipeline_mode<synchronous>, transform_indices = @transform_8, window_bounds = array<i64: 32, 32>}, {pipeline_mode = #tpu.pipeline_mode<synchronous>, transform_indices = @transform_9, window_bounds = array<i64: 32, 32>}, {pipeline_mode = #tpu.pipeline_mode<synchronous>, transform_indices = @transform_10, window_bounds = array<i64: 1, 32>}, {pipeline_mode = #tpu.pipeline_mode<synchronous>, transform_indices = @transform_11, window_bounds = array<i64: 32, 32>}, {pipeline_mode = #tpu.pipeline_mode<synchronous>, transform_indices = @transform_12, window_bounds = array<i64: 1, 32>}, {pipeline_mode = #tpu.pipeline_mode<synchronous>, transform_indices = @transform_13, window_bounds = array<i64: 2, 9, 32>}]} {
    %c0 = arith.constant 0 : index
    %c0_0 = arith.constant 0 : index
    %0 = vector.load %arg1[%c0, %c0_0] : memref<18x32xf32, #tpu.memory_space<vmem>>, vector<18x32xf32>
    %c0_1 = arith.constant 0 : index
    %c0_2 = arith.constant 0 : index
    %1 = vector.load %arg8[%c0_1, %c0_2] : memref<32x32xf32, #tpu.memory_space<vmem>>, vector<32x32xf32>
    %cst = arith.constant dense<0.000000e+00> : vector<18x32xf32>
    %2 = tpu.matmul %0, %1, %cst {dimension_numbers = #tpu.dot_dimension_numbers<[1], [0], [0], [1], [0, 0, 1, 1], [], []>, precision = #tpu.contract_precision<fp32>} : vector<18x32xf32>, vector<32x32xf32>, vector<18x32xf32> -> vector<18x32xf32>
    %c0_3 = arith.constant 0 : index
    %c0_4 = arith.constant 0 : index
    %3 = vector.load %arg2[%c0_3, %c0_4] : memref<18x32xf32, #tpu.memory_space<vmem>>, vector<18x32xf32>
    %c0_5 = arith.constant 0 : index
    %c0_6 = arith.constant 0 : index
    %4 = vector.load %arg9[%c0_5, %c0_6] : memref<32x32xf32, #tpu.memory_space<vmem>>, vector<32x32xf32>
    %cst_7 = arith.constant dense<0.000000e+00> : vector<18x32xf32>
    %5 = tpu.matmul %3, %4, %cst_7 {dimension_numbers = #tpu.dot_dimension_numbers<[1], [0], [0], [1], [0, 0, 1, 1], [], []>, precision = #tpu.contract_precision<fp32>} : vector<18x32xf32>, vector<32x32xf32>, vector<18x32xf32> -> vector<18x32xf32>
    %c0_8 = arith.constant 0 : index
    %c0_9 = arith.constant 0 : index
    %6 = vector.load %arg3[%c0_8, %c0_9] : memref<18x32xf32, #tpu.memory_space<vmem>>, vector<18x32xf32>
    %c0_10 = arith.constant 0 : index
    %c0_11 = arith.constant 0 : index
    %7 = vector.load %arg10[%c0_10, %c0_11] : memref<32x32xf32, #tpu.memory_space<vmem>>, vector<32x32xf32>
    %cst_12 = arith.constant dense<0.000000e+00> : vector<18x32xf32>
    %8 = tpu.matmul %6, %7, %cst_12 {dimension_numbers = #tpu.dot_dimension_numbers<[1], [0], [0], [1], [0, 0, 1, 1], [], []>, precision = #tpu.contract_precision<fp32>} : vector<18x32xf32>, vector<32x32xf32>, vector<18x32xf32> -> vector<18x32xf32>
    %c0_13 = arith.constant 0 : index
    %c0_14 = arith.constant 0 : index
    %9 = vector.load %arg11[%c0_13, %c0_14] : memref<1x32xf32, #tpu.memory_space<vmem>>, vector<1x32xf32>
    %10 = vector.broadcast %9 : vector<1x32xf32> to vector<18x32xf32>
    %11 = arith.addf %8, %10 : vector<18x32xf32>
    %c0_15 = arith.constant 0 : index
    %c0_16 = arith.constant 0 : index
    %12 = vector.load %arg12[%c0_15, %c0_16] : memref<32x32xf32, #tpu.memory_space<vmem>>, vector<32x32xf32>
    %c0_17 = arith.constant 0 : index
    %c0_18 = arith.constant 0 : index
    %13 = vector.load %arg13[%c0_17, %c0_18] : memref<1x32xf32, #tpu.memory_space<vmem>>, vector<1x32xf32>
    %14 = vector.extract_strided_slice %2 {offsets = [0, 0], sizes = [9, 32], strides = [1, 1]} : vector<18x32xf32> to vector<9x32xf32>
    %15 = vector.extract_strided_slice %5 {offsets = [0, 0], sizes = [9, 32], strides = [1, 1]} : vector<18x32xf32> to vector<9x32xf32>
    %16 = vector.extract_strided_slice %11 {offsets = [0, 0], sizes = [9, 32], strides = [1, 1]} : vector<18x32xf32> to vector<9x32xf32>
    %c0_19 = arith.constant 0 : index
    %c0_20 = arith.constant 0 : index
    %c0_21 = arith.constant 0 : index
    %c0_22 = arith.constant 0 : index
    %17 = vector.load %arg4[%c0_19, %c0_20, %c0_21, %c0_22] : memref<2x9x9x32xf32, #tpu.memory_space<vmem>>, vector<1x9x9x32xf32>
    %18 = vector.shape_cast %17 : vector<1x9x9x32xf32> to vector<9x9x32xf32>
    %c0_23 = arith.constant 0 : index
    %c0_24 = arith.constant 0 : index
    %c0_25 = arith.constant 0 : index
    %c0_26 = arith.constant 0 : index
    %19 = vector.load %arg5[%c0_23, %c0_24, %c0_25, %c0_26] : memref<2x9x9x32xf32, #tpu.memory_space<vmem>>, vector<1x9x9x32xf32>
    %20 = vector.shape_cast %19 : vector<1x9x9x32xf32> to vector<9x9x32xf32>
    %21 = vector.shape_cast %14 : vector<9x32xf32> to vector<9x1x32xf32>
    %22 = vector.broadcast %21 : vector<9x1x32xf32> to vector<9x9x32xf32>
    %23 = arith.addf %22, %20 : vector<9x9x32xf32>
    %24 = vector.shape_cast %15 : vector<9x32xf32> to vector<1x9x32xf32>
    %25 = vector.broadcast %24 : vector<1x9x32xf32> to vector<9x9x32xf32>
    %26 = arith.addf %25, %18 : vector<9x9x32xf32>
    %27 = arith.mulf %23, %26 : vector<9x9x32xf32>
    %28 = vector.extract_strided_slice %27 {offsets = [0, 0, 0], sizes = [9, 9, 8], strides = [1, 1, 1]} : vector<9x9x32xf32> to vector<9x9x8xf32>
    %cst_27 = arith.constant dense<0.000000e+00> : vector<9x9xf32>
    %29 = vector.multi_reduction <add>, %28, %cst_27 [2] : vector<9x9x8xf32> to vector<9x9xf32>
    %30 = vector.extract_strided_slice %27 {offsets = [0, 0, 8], sizes = [9, 9, 8], strides = [1, 1, 1]} : vector<9x9x32xf32> to vector<9x9x8xf32>
    %cst_28 = arith.constant dense<0.000000e+00> : vector<9x9xf32>
    %31 = vector.multi_reduction <add>, %30, %cst_28 [2] : vector<9x9x8xf32> to vector<9x9xf32>
    %32 = vector.extract_strided_slice %27 {offsets = [0, 0, 16], sizes = [9, 9, 8], strides = [1, 1, 1]} : vector<9x9x32xf32> to vector<9x9x8xf32>
    %cst_29 = arith.constant dense<0.000000e+00> : vector<9x9xf32>
    %33 = vector.multi_reduction <add>, %32, %cst_29 [2] : vector<9x9x8xf32> to vector<9x9xf32>
    %34 = vector.extract_strided_slice %27 {offsets = [0, 0, 24], sizes = [9, 9, 8], strides = [1, 1, 1]} : vector<9x9x32xf32> to vector<9x9x8xf32>
    %cst_30 = arith.constant dense<0.000000e+00> : vector<9x9xf32>
    %35 = vector.multi_reduction <add>, %34, %cst_30 [2] : vector<9x9x8xf32> to vector<9x9xf32>
    %36 = vector.shape_cast %29 : vector<9x9xf32> to vector<1x9x9xf32>
    %37 = vector.shape_cast %31 : vector<9x9xf32> to vector<1x9x9xf32>
    %38 = vector.shape_cast %33 : vector<9x9xf32> to vector<1x9x9xf32>
    %39 = vector.shape_cast %35 : vector<9x9xf32> to vector<1x9x9xf32>
    %40 = tpu.concatenate %36, %37, %38, %39 in 0 : vector<1x9x9xf32>, vector<1x9x9xf32>, vector<1x9x9xf32>, vector<1x9x9xf32> -> vector<4x9x9xf32>
    %cst_31 = arith.constant 0.353553385 : f32
    %41 = vector.broadcast %cst_31 : f32 to vector<4x9x9xf32>
    %42 = arith.mulf %40, %41 : vector<4x9x9xf32>
    %c0_32 = arith.constant 0 : index
    %c0_33 = arith.constant 0 : index
    %c0_34 = arith.constant 0 : index
    %43 = vector.load %arg7[%c0_32, %c0_33, %c0_34] : memref<2x9x9xf32, #tpu.memory_space<vmem>>, vector<1x9x9xf32>
    %44 = vector.shape_cast %43 : vector<1x9x9xf32> to vector<9x9xf32>
    %45 = vector.shape_cast %44 : vector<9x9xf32> to vector<1x9x9xf32>
    %cst_35 = arith.constant 5.000000e-01 : f32
    %46 = vector.broadcast %cst_35 : f32 to vector<1x9x9xf32>
    %47 = arith.cmpf ogt, %45, %46 : vector<1x9x9xf32>
    %cst_36 = arith.constant -1.000000e+05 : f32
    %48 = vector.shape_cast %47 : vector<1x9x9xi1> to vector<1x9x9xi1>
    %49 = vector.broadcast %48 : vector<1x9x9xi1> to vector<4x9x9xi1>
    %50 = vector.broadcast %cst_36 : f32 to vector<4x9x9xf32>
    %51 = arith.select %49, %42, %50 : vector<4x9x9xi1>, vector<4x9x9xf32>
    %cst_37 = arith.constant dense<0xFF800000> : vector<4x9xf32>
    %52 = vector.multi_reduction <maximumf>, %51, %cst_37 [2] : vector<4x9x9xf32> to vector<4x9xf32>
    %53 = vector.shape_cast %52 : vector<4x9xf32> to vector<4x9x1xf32>
    %54 = vector.broadcast %53 : vector<4x9x1xf32> to vector<4x9x9xf32>
    %55 = arith.subf %51, %54 : vector<4x9x9xf32>
    %56 = math.exp %55 : vector<4x9x9xf32>
    %cst_38 = arith.constant dense<0.000000e+00> : vector<4x9xf32>
    %57 = vector.multi_reduction <add>, %56, %cst_38 [2] : vector<4x9x9xf32> to vector<4x9xf32>
    %58 = vector.shape_cast %57 : vector<4x9xf32> to vector<4x9x1xf32>
    %59 = vector.broadcast %58 : vector<4x9x1xf32> to vector<4x9x9xf32>
    %60 = arith.divf %56, %59 : vector<4x9x9xf32>
    %61 = vector.extract_strided_slice %60 {offsets = [0, 0, 0], sizes = [1, 9, 9], strides = [1, 1, 1]} : vector<4x9x9xf32> to vector<1x9x9xf32>
    %62 = vector.shape_cast %61 : vector<1x9x9xf32> to vector<9x9xf32>
    %63 = vector.shape_cast %62 : vector<9x9xf32> to vector<9x9x1xf32>
    %64 = vector.shape_cast %63 : vector<9x9x1xf32> to vector<9x9x1xf32>
    %65 = vector.broadcast %64 : vector<9x9x1xf32> to vector<9x9x8xf32>
    %66 = vector.extract_strided_slice %60 {offsets = [1, 0, 0], sizes = [1, 9, 9], strides = [1, 1, 1]} : vector<4x9x9xf32> to vector<1x9x9xf32>
    %67 = vector.shape_cast %66 : vector<1x9x9xf32> to vector<9x9xf32>
    %68 = vector.shape_cast %67 : vector<9x9xf32> to vector<9x9x1xf32>
    %69 = vector.shape_cast %68 : vector<9x9x1xf32> to vector<9x9x1xf32>
    %70 = vector.broadcast %69 : vector<9x9x1xf32> to vector<9x9x8xf32>
    %71 = vector.extract_strided_slice %60 {offsets = [2, 0, 0], sizes = [1, 9, 9], strides = [1, 1, 1]} : vector<4x9x9xf32> to vector<1x9x9xf32>
    %72 = vector.shape_cast %71 : vector<1x9x9xf32> to vector<9x9xf32>
    %73 = vector.shape_cast %72 : vector<9x9xf32> to vector<9x9x1xf32>
    %74 = vector.shape_cast %73 : vector<9x9x1xf32> to vector<9x9x1xf32>
    %75 = vector.broadcast %74 : vector<9x9x1xf32> to vector<9x9x8xf32>
    %76 = vector.extract_strided_slice %60 {offsets = [3, 0, 0], sizes = [1, 9, 9], strides = [1, 1, 1]} : vector<4x9x9xf32> to vector<1x9x9xf32>
    %77 = vector.shape_cast %76 : vector<1x9x9xf32> to vector<9x9xf32>
    %78 = vector.shape_cast %77 : vector<9x9xf32> to vector<9x9x1xf32>
    %79 = vector.shape_cast %78 : vector<9x9x1xf32> to vector<9x9x1xf32>
    %80 = vector.broadcast %79 : vector<9x9x1xf32> to vector<9x9x8xf32>
    %81 = tpu.concatenate %65, %70, %75, %80 in 2 : vector<9x9x8xf32>, vector<9x9x8xf32>, vector<9x9x8xf32>, vector<9x9x8xf32> -> vector<9x9x32xf32>
    %c0_39 = arith.constant 0 : index
    %c0_40 = arith.constant 0 : index
    %c0_41 = arith.constant 0 : index
    %c0_42 = arith.constant 0 : index
    %82 = vector.load %arg6[%c0_39, %c0_40, %c0_41, %c0_42] : memref<2x9x9x32xf32, #tpu.memory_space<vmem>>, vector<1x9x9x32xf32>
    %83 = vector.shape_cast %82 : vector<1x9x9x32xf32> to vector<9x9x32xf32>
    %84 = vector.shape_cast %16 : vector<9x32xf32> to vector<1x9x32xf32>
    %85 = vector.broadcast %84 : vector<1x9x32xf32> to vector<9x9x32xf32>
    %86 = arith.addf %85, %83 : vector<9x9x32xf32>
    %87 = arith.mulf %81, %86 : vector<9x9x32xf32>
    %cst_43 = arith.constant dense<0.000000e+00> : vector<9x32xf32>
    %88 = vector.multi_reduction <add>, %87, %cst_43 [1] : vector<9x9x32xf32> to vector<9x32xf32>
    %cst_44 = arith.constant dense<0.000000e+00> : vector<9x32xf32>
    %89 = tpu.matmul %88, %12, %cst_44 {dimension_numbers = #tpu.dot_dimension_numbers<[1], [0], [0], [1], [0, 0, 1, 1], [], []>, precision = #tpu.contract_precision<fp32>} : vector<9x32xf32>, vector<32x32xf32>, vector<9x32xf32> -> vector<9x32xf32>
    %90 = vector.broadcast %13 : vector<1x32xf32> to vector<9x32xf32>
    %91 = arith.addf %89, %90 : vector<9x32xf32>
    %c0_45 = arith.constant 0 : index
    %c0_46 = arith.constant 0 : index
    %c0_47 = arith.constant 0 : index
    %92 = vector.load %arg14[%c0_45, %c0_46, %c0_47] : memref<2x9x32xf32, #tpu.memory_space<vmem>>, vector<1x9x32xf32>
    %93 = vector.shape_cast %92 : vector<1x9x32xf32> to vector<9x32xf32>
    %94 = vector.shape_cast %91 : vector<9x32xf32> to vector<1x9x32xf32>
    tpu.vector_store %arg14[%c0_45, %c0_46, %c0_47], %94 {strides = array<i32>} : memref<2x9x32xf32, #tpu.memory_space<vmem>>, vector<1x9x32xf32>,
    %95 = vector.extract_strided_slice %2 {offsets = [9, 0], sizes = [9, 32], strides = [1, 1]} : vector<18x32xf32> to vector<9x32xf32>
    %96 = vector.extract_strided_slice %5 {offsets = [9, 0], sizes = [9, 32], strides = [1, 1]} : vector<18x32xf32> to vector<9x32xf32>
    %97 = vector.extract_strided_slice %11 {offsets = [9, 0], sizes = [9, 32], strides = [1, 1]} : vector<18x32xf32> to vector<9x32xf32>
    %c1 = arith.constant 1 : index
    %c0_48 = arith.constant 0 : index
    %c0_49 = arith.constant 0 : index
    %c0_50 = arith.constant 0 : index
    %98 = vector.load %arg4[%c1, %c0_48, %c0_49, %c0_50] : memref<2x9x9x32xf32, #tpu.memory_space<vmem>>, vector<1x9x9x32xf32>
    %99 = vector.shape_cast %98 : vector<1x9x9x32xf32> to vector<9x9x32xf32>
    %c1_51 = arith.constant 1 : index
    %c0_52 = arith.constant 0 : index
    %c0_53 = arith.constant 0 : index
    %c0_54 = arith.constant 0 : index
    %100 = vector.load %arg5[%c1_51, %c0_52, %c0_53, %c0_54] : memref<2x9x9x32xf32, #tpu.memory_space<vmem>>, vector<1x9x9x32xf32>
    %101 = vector.shape_cast %100 : vector<1x9x9x32xf32> to vector<9x9x32xf32>
    %102 = vector.shape_cast %95 : vector<9x32xf32> to vector<9x1x32xf32>
    %103 = vector.broadcast %102 : vector<9x1x32xf32> to vector<9x9x32xf32>
    %104 = arith.addf %103, %101 : vector<9x9x32xf32>
    %105 = vector.shape_cast %96 : vector<9x32xf32> to vector<1x9x32xf32>
    %106 = vector.broadcast %105 : vector<1x9x32xf32> to vector<9x9x32xf32>
    %107 = arith.addf %106, %99 : vector<9x9x32xf32>
    %108 = arith.mulf %104, %107 : vector<9x9x32xf32>
    %109 = vector.extract_strided_slice %108 {offsets = [0, 0, 0], sizes = [9, 9, 8], strides = [1, 1, 1]} : vector<9x9x32xf32> to vector<9x9x8xf32>
    %cst_55 = arith.constant dense<0.000000e+00> : vector<9x9xf32>
    %110 = vector.multi_reduction <add>, %109, %cst_55 [2] : vector<9x9x8xf32> to vector<9x9xf32>
    %111 = vector.extract_strided_slice %108 {offsets = [0, 0, 8], sizes = [9, 9, 8], strides = [1, 1, 1]} : vector<9x9x32xf32> to vector<9x9x8xf32>
    %cst_56 = arith.constant dense<0.000000e+00> : vector<9x9xf32>
    %112 = vector.multi_reduction <add>, %111, %cst_56 [2] : vector<9x9x8xf32> to vector<9x9xf32>
    %113 = vector.extract_strided_slice %108 {offsets = [0, 0, 16], sizes = [9, 9, 8], strides = [1, 1, 1]} : vector<9x9x32xf32> to vector<9x9x8xf32>
    %cst_57 = arith.constant dense<0.000000e+00> : vector<9x9xf32>
    %114 = vector.multi_reduction <add>, %113, %cst_57 [2] : vector<9x9x8xf32> to vector<9x9xf32>
    %115 = vector.extract_strided_slice %108 {offsets = [0, 0, 24], sizes = [9, 9, 8], strides = [1, 1, 1]} : vector<9x9x32xf32> to vector<9x9x8xf32>
    %cst_58 = arith.constant dense<0.000000e+00> : vector<9x9xf32>
    %116 = vector.multi_reduction <add>, %115, %cst_58 [2] : vector<9x9x8xf32> to vector<9x9xf32>
    %117 = vector.shape_cast %110 : vector<9x9xf32> to vector<1x9x9xf32>
    %118 = vector.shape_cast %112 : vector<9x9xf32> to vector<1x9x9xf32>
    %119 = vector.shape_cast %114 : vector<9x9xf32> to vector<1x9x9xf32>
    %120 = vector.shape_cast %116 : vector<9x9xf32> to vector<1x9x9xf32>
    %121 = tpu.concatenate %117, %118, %119, %120 in 0 : vector<1x9x9xf32>, vector<1x9x9xf32>, vector<1x9x9xf32>, vector<1x9x9xf32> -> vector<4x9x9xf32>
    %cst_59 = arith.constant 0.353553385 : f32
    %122 = vector.broadcast %cst_59 : f32 to vector<4x9x9xf32>
    %123 = arith.mulf %121, %122 : vector<4x9x9xf32>
    %c1_60 = arith.constant 1 : index
    %c0_61 = arith.constant 0 : index
    %c0_62 = arith.constant 0 : index
    %124 = vector.load %arg7[%c1_60, %c0_61, %c0_62] : memref<2x9x9xf32, #tpu.memory_space<vmem>>, vector<1x9x9xf32>
    %125 = vector.shape_cast %124 : vector<1x9x9xf32> to vector<9x9xf32>
    %126 = vector.shape_cast %125 : vector<9x9xf32> to vector<1x9x9xf32>
    %cst_63 = arith.constant 5.000000e-01 : f32
    %127 = vector.broadcast %cst_63 : f32 to vector<1x9x9xf32>
    %128 = arith.cmpf ogt, %126, %127 : vector<1x9x9xf32>
    %cst_64 = arith.constant -1.000000e+05 : f32
    %129 = vector.shape_cast %128 : vector<1x9x9xi1> to vector<1x9x9xi1>
    %130 = vector.broadcast %129 : vector<1x9x9xi1> to vector<4x9x9xi1>
    %131 = vector.broadcast %cst_64 : f32 to vector<4x9x9xf32>
    %132 = arith.select %130, %123, %131 : vector<4x9x9xi1>, vector<4x9x9xf32>
    %cst_65 = arith.constant dense<0xFF800000> : vector<4x9xf32>
    %133 = vector.multi_reduction <maximumf>, %132, %cst_65 [2] : vector<4x9x9xf32> to vector<4x9xf32>
    %134 = vector.shape_cast %133 : vector<4x9xf32> to vector<4x9x1xf32>
    %135 = vector.broadcast %134 : vector<4x9x1xf32> to vector<4x9x9xf32>
    %136 = arith.subf %132, %135 : vector<4x9x9xf32>
    %137 = math.exp %136 : vector<4x9x9xf32>
    %cst_66 = arith.constant dense<0.000000e+00> : vector<4x9xf32>
    %138 = vector.multi_reduction <add>, %137, %cst_66 [2] : vector<4x9x9xf32> to vector<4x9xf32>
    %139 = vector.shape_cast %138 : vector<4x9xf32> to vector<4x9x1xf32>
    %140 = vector.broadcast %139 : vector<4x9x1xf32> to vector<4x9x9xf32>
    %141 = arith.divf %137, %140 : vector<4x9x9xf32>
    %142 = vector.extract_strided_slice %141 {offsets = [0, 0, 0], sizes = [1, 9, 9], strides = [1, 1, 1]} : vector<4x9x9xf32> to vector<1x9x9xf32>
    %143 = vector.shape_cast %142 : vector<1x9x9xf32> to vector<9x9xf32>
    %144 = vector.shape_cast %143 : vector<9x9xf32> to vector<9x9x1xf32>
    %145 = vector.shape_cast %144 : vector<9x9x1xf32> to vector<9x9x1xf32>
    %146 = vector.broadcast %145 : vector<9x9x1xf32> to vector<9x9x8xf32>
    %147 = vector.extract_strided_slice %141 {offsets = [1, 0, 0], sizes = [1, 9, 9], strides = [1, 1, 1]} : vector<4x9x9xf32> to vector<1x9x9xf32>
    %148 = vector.shape_cast %147 : vector<1x9x9xf32> to vector<9x9xf32>
    %149 = vector.shape_cast %148 : vector<9x9xf32> to vector<9x9x1xf32>
    %150 = vector.shape_cast %149 : vector<9x9x1xf32> to vector<9x9x1xf32>
    %151 = vector.broadcast %150 : vector<9x9x1xf32> to vector<9x9x8xf32>
    %152 = vector.extract_strided_slice %141 {offsets = [2, 0, 0], sizes = [1, 9, 9], strides = [1, 1, 1]} : vector<4x9x9xf32> to vector<1x9x9xf32>
    %153 = vector.shape_cast %152 : vector<1x9x9xf32> to vector<9x9xf32>
    %154 = vector.shape_cast %153 : vector<9x9xf32> to vector<9x9x1xf32>
    %155 = vector.shape_cast %154 : vector<9x9x1xf32> to vector<9x9x1xf32>
    %156 = vector.broadcast %155 : vector<9x9x1xf32> to vector<9x9x8xf32>
    %157 = vector.extract_strided_slice %141 {offsets = [3, 0, 0], sizes = [1, 9, 9], strides = [1, 1, 1]} : vector<4x9x9xf32> to vector<1x9x9xf32>
    %158 = vector.shape_cast %157 : vector<1x9x9xf32> to vector<9x9xf32>
    %159 = vector.shape_cast %158 : vector<9x9xf32> to vector<9x9x1xf32>
    %160 = vector.shape_cast %159 : vector<9x9x1xf32> to vector<9x9x1xf32>
    %161 = vector.broadcast %160 : vector<9x9x1xf32> to vector<9x9x8xf32>
    %162 = tpu.concatenate %146, %151, %156, %161 in 2 : vector<9x9x8xf32>, vector<9x9x8xf32>, vector<9x9x8xf32>, vector<9x9x8xf32> -> vector<9x9x32xf32>
    %c1_67 = arith.constant 1 : index
    %c0_68 = arith.constant 0 : index
    %c0_69 = arith.constant 0 : index
    %c0_70 = arith.constant 0 : index
    %163 = vector.load %arg6[%c1_67, %c0_68, %c0_69, %c0_70] : memref<2x9x9x32xf32, #tpu.memory_space<vmem>>, vector<1x9x9x32xf32>
    %164 = vector.shape_cast %163 : vector<1x9x9x32xf32> to vector<9x9x32xf32>
    %165 = vector.shape_cast %97 : vector<9x32xf32> to vector<1x9x32xf32>
    %166 = vector.broadcast %165 : vector<1x9x32xf32> to vector<9x9x32xf32>
    %167 = arith.addf %166, %164 : vector<9x9x32xf32>
    %168 = arith.mulf %162, %167 : vector<9x9x32xf32>
    %cst_71 = arith.constant dense<0.000000e+00> : vector<9x32xf32>
    %169 = vector.multi_reduction <add>, %168, %cst_71 [1] : vector<9x9x32xf32> to vector<9x32xf32>
    %cst_72 = arith.constant dense<0.000000e+00> : vector<9x32xf32>
    %170 = tpu.matmul %169, %12, %cst_72 {dimension_numbers = #tpu.dot_dimension_numbers<[1], [0], [0], [1], [0, 0, 1, 1], [], []>, precision = #tpu.contract_precision<fp32>} : vector<9x32xf32>, vector<32x32xf32>, vector<9x32xf32> -> vector<9x32xf32>
    %171 = vector.broadcast %13 : vector<1x32xf32> to vector<9x32xf32>
    %172 = arith.addf %170, %171 : vector<9x32xf32>
    %c1_73 = arith.constant 1 : index
    %c0_74 = arith.constant 0 : index
    %c0_75 = arith.constant 0 : index
    %173 = vector.load %arg14[%c1_73, %c0_74, %c0_75] : memref<2x9x32xf32, #tpu.memory_space<vmem>>, vector<1x9x32xf32>
    %174 = vector.shape_cast %173 : vector<1x9x32xf32> to vector<9x32xf32>
    %175 = vector.shape_cast %172 : vector<9x32xf32> to vector<1x9x32xf32>
    tpu.vector_store %arg14[%c1_73, %c0_74, %c0_75], %175 {strides = array<i32>} : memref<2x9x32xf32, #tpu.memory_space<vmem>>, vector<1x9x32xf32>,
    return
  }
  func.func @transform_0(%arg0: i32) -> (i32, i32) {
    %c0_i32 = arith.constant 0 : i32
    %c0_i32_0 = arith.constant 0 : i32
    %c0_i32_1 = arith.constant 0 : i32
    return %c0_i32, %c0_i32_0 : i32, i32
  }
  func.func @transform_1(%arg0: i32) -> (i32, i32) {
    %c0_i32 = arith.constant 0 : i32
    %c0_i32_0 = arith.constant 0 : i32
    %c0_i32_1 = arith.constant 0 : i32
    return %c0_i32, %c0_i32_0 : i32, i32
  }
  func.func @transform_2(%arg0: i32) -> (i32, i32) {
    %c0_i32 = arith.constant 0 : i32
    %c0_i32_0 = arith.constant 0 : i32
    %c0_i32_1 = arith.constant 0 : i32
    return %c0_i32, %c0_i32_0 : i32, i32
  }
  func.func @transform_3(%arg0: i32) -> (i32, i32, i32, i32) {
    %c0_i32 = arith.constant 0 : i32
    %c0_i32_0 = arith.constant 0 : i32
    %c0_i32_1 = arith.constant 0 : i32
    %c0_i32_2 = arith.constant 0 : i32
    %c0_i32_3 = arith.constant 0 : i32
    return %c0_i32, %c0_i32_0, %c0_i32_1, %c0_i32_2 : i32, i32, i32, i32
  }
  func.func @transform_4(%arg0: i32) -> (i32, i32, i32, i32) {
    %c0_i32 = arith.constant 0 : i32
    %c0_i32_0 = arith.constant 0 : i32
    %c0_i32_1 = arith.constant 0 : i32
    %c0_i32_2 = arith.constant 0 : i32
    %c0_i32_3 = arith.constant 0 : i32
    return %c0_i32, %c0_i32_0, %c0_i32_1, %c0_i32_2 : i32, i32, i32, i32
  }
  func.func @transform_5(%arg0: i32) -> (i32, i32, i32, i32) {
    %c0_i32 = arith.constant 0 : i32
    %c0_i32_0 = arith.constant 0 : i32
    %c0_i32_1 = arith.constant 0 : i32
    %c0_i32_2 = arith.constant 0 : i32
    %c0_i32_3 = arith.constant 0 : i32
    return %c0_i32, %c0_i32_0, %c0_i32_1, %c0_i32_2 : i32, i32, i32, i32
  }
  func.func @transform_6(%arg0: i32) -> (i32, i32, i32) {
    %c0_i32 = arith.constant 0 : i32
    %c0_i32_0 = arith.constant 0 : i32
    %c0_i32_1 = arith.constant 0 : i32
    %c0_i32_2 = arith.constant 0 : i32
    return %c0_i32, %c0_i32_0, %c0_i32_1 : i32, i32, i32
  }
  func.func @transform_7(%arg0: i32) -> (i32, i32) {
    %c0_i32 = arith.constant 0 : i32
    %c0_i32_0 = arith.constant 0 : i32
    %c0_i32_1 = arith.constant 0 : i32
    return %c0_i32, %c0_i32_0 : i32, i32
  }
  func.func @transform_8(%arg0: i32) -> (i32, i32) {
    %c0_i32 = arith.constant 0 : i32
    %c0_i32_0 = arith.constant 0 : i32
    %c0_i32_1 = arith.constant 0 : i32
    return %c0_i32, %c0_i32_0 : i32, i32
  }
  func.func @transform_9(%arg0: i32) -> (i32, i32) {
    %c0_i32 = arith.constant 0 : i32
    %c0_i32_0 = arith.constant 0 : i32
    %c0_i32_1 = arith.constant 0 : i32
    return %c0_i32, %c0_i32_0 : i32, i32
  }
  func.func @transform_10(%arg0: i32) -> (i32, i32) {
    %c0_i32 = arith.constant 0 : i32
    %c0_i32_0 = arith.constant 0 : i32
    %c0_i32_1 = arith.constant 0 : i32
    return %c0_i32, %c0_i32_0 : i32, i32
  }
  func.func @transform_11(%arg0: i32) -> (i32, i32) {
    %c0_i32 = arith.constant 0 : i32
    %c0_i32_0 = arith.constant 0 : i32
    %c0_i32_1 = arith.constant 0 : i32
    return %c0_i32, %c0_i32_0 : i32, i32
  }
  func.func @transform_12(%arg0: i32) -> (i32, i32) {
    %c0_i32 = arith.constant 0 : i32
    %c0_i32_0 = arith.constant 0 : i32
    %c0_i32_1 = arith.constant 0 : i32
    return %c0_i32, %c0_i32_0 : i32, i32
  }
  func.func @transform_13(%arg0: i32) -> (i32, i32, i32) {
    %c0_i32 = arith.constant 0 : i32
    %c0_i32_0 = arith.constant 0 : i32
    %c0_i32_1 = arith.constant 0 : i32
    %c0_i32_2 = arith.constant 0 : i32
    return %c0_i32, %c0_i32_0, %c0_i32_1 : i32, i32, i32
  }
}

</mosaic_0001>

<llo_original>
// kernel: tpu_custom_call.1
$region0: #{tpu_custom_call.1}
  #allocation0 [shape = 'u32[]', space=smem, size = 0x4, offset = 0x4, fixed_abs, tag = 'smem constant byte address 0x4 - core index']
  #allocation1 [shape = 'u32[72,128]{1,0:T(1,128)}', space=vmem, size = 0x9000, scoped, tag = 'internal scratch']
  %s0 = inlined_call_operand.vmem [shape: f32[18,32], index: 0, kind: input, shape index: {}]
  %s1 = inlined_call_operand.vmem [shape: f32[18,32], index: 1, kind: input, shape index: {}]
  %s2 = inlined_call_operand.vmem [shape: f32[18,32], index: 2, kind: input, shape index: {}]
  %s3 = inlined_call_operand.vmem [shape: f32[2,9,9,32], index: 3, kind: input, shape index: {}]
  %s4 = inlined_call_operand.vmem [shape: f32[2,9,9,32], index: 4, kind: input, shape index: {}]
  %s5 = inlined_call_operand.vmem [shape: f32[2,9,9,32], index: 5, kind: input, shape index: {}]
  %s6 = inlined_call_operand.vmem [shape: f32[2,9,9], index: 6, kind: input, shape index: {}]
  %s7 = inlined_call_operand.vmem [shape: f32[32,32], index: 7, kind: input, shape index: {}]
  %s8 = inlined_call_operand.vmem [shape: f32[32,32], index: 8, kind: input, shape index: {}]
  %s9 = inlined_call_operand.vmem [shape: f32[32,32], index: 9, kind: input, shape index: {}]
  %s10 = inlined_call_operand.vmem [shape: f32[1,32], index: 10, kind: input, shape index: {}]
  %s11 = inlined_call_operand.vmem [shape: f32[32,32], index: 11, kind: input, shape index: {}]
  %s12 = inlined_call_operand.vmem [shape: f32[1,32], index: 12, kind: input, shape index: {}]
  %s13 = inlined_call_operand.vmem [shape: f32[2,9,32], index: 13, kind: output, shape index: {}]
  %s14 = sld [smem:[#allocation0]]
  $region62: #{tpu_custom_call.1} parent=0
    _
  %s16 = ssub.s32 1, %s14
  %s17 = scalar_select 0, %s16, %s14
  // Predicated region
  $region2: #{tpu_custom_call.1} parent=0 // pred_check
    _
  $region3: #{tpu_custom_call.1} parent=0 // pred_check_branch
    %19 = sbr.rel (0) target = $region5
  $region4: #{tpu_custom_call.1} parent=0 // pred_region
    _
  $region5: #{tpu_custom_call.1} parent=0 // pred_fallthru
    _
  // Predicated region
  $region6: #{tpu_custom_call.1} parent=0 // pred_check
    _
  $region7: #{tpu_custom_call.1} parent=0 // pred_check_branch
    %21 = sbr.rel (0) target = $region9
  $region8: #{tpu_custom_call.1} parent=0 // pred_region
    _
  $region9: #{tpu_custom_call.1} parent=0 // pred_fallthru
    _
  // Predicated region
  $region10: #{tpu_custom_call.1} parent=0 // pred_check
    _
  $region11: #{tpu_custom_call.1} parent=0 // pred_check_branch
    %23 = sbr.rel (0) target = $region13
  $region12: #{tpu_custom_call.1} parent=0 // pred_region
    _
  $region13: #{tpu_custom_call.1} parent=0 // pred_fallthru
    _
  // Predicated region
  $region14: #{tpu_custom_call.1} parent=0 // pred_check
    _
  $region15: #{tpu_custom_call.1} parent=0 // pred_check_branch
    %25 = sbr.rel (0) target = $region17
  $region16: #{tpu_custom_call.1} parent=0 // pred_region
    _
  $region17: #{tpu_custom_call.1} parent=0 // pred_fallthru
    _
  // Predicated region
  $region18: #{tpu_custom_call.1} parent=0 // pred_check
    _
  $region19: #{tpu_custom_call.1} parent=0 // pred_check_branch
    %27 = sbr.rel (0) target = $region21
  $region20: #{tpu_custom_call.1} parent=0 // pred_region
    _
  $region21: #{tpu_custom_call.1} parent=0 // pred_fallthru
    _
  // Predicated region
  $region22: #{tpu_custom_call.1} parent=0 // pred_check
    _
  $region23: #{tpu_custom_call.1} parent=0 // pred_check_branch
    %29 = sbr.rel (0) target = $region25
  $region24: #{tpu_custom_call.1} parent=0 // pred_region
    _
  $region25: #{tpu_custom_call.1} parent=0 // pred_fallthru
    _
  // Predicated region
  $region26: #{tpu_custom_call.1} parent=0 // pred_check
    _
  $region27: #{tpu_custom_call.1} parent=0 // pred_check_branch
    %31 = sbr.rel (0) target = $region29
  $region28: #{tpu_custom_call.1} parent=0 // pred_region
    _
  $region29: #{tpu_custom_call.1} parent=0 // pred_fallthru
    _
  // Predicated region
  $region30: #{tpu_custom_call.1} parent=0 // pred_check
    _
  $region31: #{tpu_custom_call.1} parent=0 // pred_check_branch
    %33 = sbr.rel (0) target = $region33
  $region32: #{tpu_custom_call.1} parent=0 // pred_region
    _
  $region33: #{tpu_custom_call.1} parent=0 // pred_fallthru
    _
  // Predicated region
  $region34: #{tpu_custom_call.1} parent=0 // pred_check
    _
  $region35: #{tpu_custom_call.1} parent=0 // pred_check_branch
    %35 = sbr.rel (0) target = $region37
  $region36: #{tpu_custom_call.1} parent=0 // pred_region
    _
  $region37: #{tpu_custom_call.1} parent=0 // pred_fallthru
    _
  // Predicated region
  $region38: #{tpu_custom_call.1} parent=0 // pred_check
    _
  $region39: #{tpu_custom_call.1} parent=0 // pred_check_branch
    %37 = sbr.rel (0) target = $region41
  $region40: #{tpu_custom_call.1} parent=0 // pred_region
    _
  $region41: #{tpu_custom_call.1} parent=0 // pred_fallthru
    _
  // Predicated region
  $region42: #{tpu_custom_call.1} parent=0 // pred_check
    _
  $region43: #{tpu_custom_call.1} parent=0 // pred_check_branch
    %39 = sbr.rel (0) target = $region45
  $region44: #{tpu_custom_call.1} parent=0 // pred_region
    _
  $region45: #{tpu_custom_call.1} parent=0 // pred_fallthru
    _
  // Predicated region
  $region46: #{tpu_custom_call.1} parent=0 // pred_check
    _
  $region47: #{tpu_custom_call.1} parent=0 // pred_check_branch
    %41 = sbr.rel (0) target = $region49
  $region48: #{tpu_custom_call.1} parent=0 // pred_region
    _
  $region49: #{tpu_custom_call.1} parent=0 // pred_fallthru
    _
  // Predicated region
  $region50: #{tpu_custom_call.1} parent=0 // pred_check
    _
  $region51: #{tpu_custom_call.1} parent=0 // pred_check_branch
    %43 = sbr.rel (0) target = $region53
  $region52: #{tpu_custom_call.1} parent=0 // pred_region
    _
  $region53: #{tpu_custom_call.1} parent=0 // pred_fallthru
    _
  %v44 = vld [vmem:[%s0] sm:$0xff]
  %v45 = vld [vmem:[%s0 + $0x8] sm:$0xff]
  %v46 = vld [vmem:[%s0 + $0x10] sm:$0x3]
  %v47 = vld [vmem:[%s7] sm:$0xff]
  %v48 = vld [vmem:[%s7 + $0x8] sm:$0xff]
  %v49 = vld [vmem:[%s7 + $0x10] sm:$0xff]
  %v50 = vld [vmem:[%s7 + $0x18] sm:$0xff]
  %vm51 = vcmask 261120
  %v53 = vsel %vm51, %v44, 0
  %v56 = vsel %vm51, %v45, 0
  %v59 = vsel %vm51, %v46, 0
  %61 = vmatpush.msra.mxu0 0.0
  %62 = vmatpush.msra.mxu0 0.0
  %63 = vmatpush.msra.mxu0 0.0
  %64 = vmatpush.msra.mxu0 0.0
  %65 = vmatpush.msra.mxu0 0.0
  %66 = vmatpush.msra.mxu0 0.0
  %67 = vmatpush.msra.mxu0 0.0
  %68 = vmatpush.msra.mxu0 0.0
  %69 = vmatpush.msra.mxu0 0.0
  %70 = vmatpush.msra.mxu0 0.0
  %71 = vmatpush.msra.mxu0 0.0
  %72 = vmatpush.msra.mxu0 0.0
  %v73 = vand.u32 %v50, 4294901760
  %74 = vmatpush.msra.mxu0 %v73
  %v75 = vand.u32 %v49, 4294901760
  %76 = vmatpush.msra.mxu0 %v75
  %v77 = vand.u32 %v48, 4294901760
  %78 = vmatpush.msra.mxu0 %v77
  %v79 = vand.u32 %v47, 4294901760
  %80 = vmatpush.msra.mxu0 %v79
  %v81 = vand.u32 %v53, 4294901760
  %v82 = vsub.f32 %v53, %v81
  %v83 = vand.u32 %v82, 4294901760
  %v84 = vsub.f32 %v82, %v83
  %v85 = vand.u32 %v84, 4294901760
  %86 = vmatmul.f32.gmra.mxu0 %v85
  %v87 = vpop.f32.mrf.mxu0
  %v88 = vadd.f32 0.0, %v87
  %v89 = vand.u32 %v56, 4294901760
  %v90 = vsub.f32 %v56, %v89
  %v91 = vand.u32 %v90, 4294901760
  %v92 = vsub.f32 %v90, %v91
  %v93 = vand.u32 %v92, 4294901760
  %94 = vmatmul.f32.gmra.mxu0 %v93
  %v95 = vpop.f32.mrf.mxu0
  %v96 = vadd.f32 0.0, %v95
  %v97 = vand.u32 %v59, 4294901760
  %v98 = vsub.f32 %v59, %v97
  %v99 = vand.u32 %v98, 4294901760
  %v100 = vsub.f32 %v98, %v99
  %v101 = vand.u32 %v100, 4294901760
  %102 = vmatmul.f32.gmra.mxu0 %v101
  %v103 = vpop.f32.mrf.mxu0
  %v104 = vadd.f32 0.0, %v103
  %105 = vdwg.mxu0
  %106 = vmatpush.msra.mxu0 0.0
  %107 = vmatpush.msra.mxu0 0.0
  %108 = vmatpush.msra.mxu0 0.0
  %109 = vmatpush.msra.mxu0 0.0
  %110 = vmatpush.msra.mxu0 0.0
  %111 = vmatpush.msra.mxu0 0.0
  %112 = vmatpush.msra.mxu0 0.0
  %113 = vmatpush.msra.mxu0 0.0
  %114 = vmatpush.msra.mxu0 0.0
  %115 = vmatpush.msra.mxu0 0.0
  %116 = vmatpush.msra.mxu0 0.0
  %117 = vmatpush.msra.mxu0 0.0
  %v118 = vand.u32 %v50, 4294901760
  %v119 = vsub.f32 %v50, %v118
  %v120 = vand.u32 %v119, 4294901760
  %v121 = vsub.f32 %v119, %v120
  %v122 = vand.u32 %v121, 4294901760
  %123 = vmatpush.msra.mxu0 %v122
  %v124 = vand.u32 %v49, 4294901760
  %v125 = vsub.f32 %v49, %v124
  %v126 = vand.u32 %v125, 4294901760
  %v127 = vsub.f32 %v125, %v126
  %v128 = vand.u32 %v127, 4294901760
  %129 = vmatpush.msra.mxu0 %v128
  %v130 = vand.u32 %v48, 4294901760
  %v131 = vsub.f32 %v48, %v130
  %v132 = vand.u32 %v131, 4294901760
  %v133 = vsub.f32 %v131, %v132
  %v134 = vand.u32 %v133, 4294901760
  %135 = vmatpush.msra.mxu0 %v134
  %v136 = vand.u32 %v47, 4294901760
  %v137 = vsub.f32 %v47, %v136
  %v138 = vand.u32 %v137, 4294901760
  %v139 = vsub.f32 %v137, %v138
  %v140 = vand.u32 %v139, 4294901760
  %141 = vmatpush.msra.mxu0 %v140
  %v142 = vand.u32 %v53, 4294901760
  %143 = vmatmul.f32.gmra.mxu0 %v142
  %v144 = vpop.f32.mrf.mxu0
  %v145 = vadd.f32 %v88, %v144
  %v146 = vand.u32 %v56, 4294901760
  %147 = vmatmul.f32.gmra.mxu0 %v146
  %v148 = vpop.f32.mrf.mxu0
  %v149 = vadd.f32 %v96, %v148
  %v150 = vand.u32 %v59, 4294901760
  %151 = vmatmul.f32.gmra.mxu0 %v150
  %v152 = vpop.f32.mrf.mxu0
  %v153 = vadd.f32 %v104, %v152
  %154 = vdwg.mxu0
  %155 = vmatpush.msra.mxu0 0.0
  %156 = vmatpush.msra.mxu0 0.0
  %157 = vmatpush.msra.mxu0 0.0
  %158 = vmatpush.msra.mxu0 0.0
  %159 = vmatpush.msra.mxu0 0.0
  %160 = vmatpush.msra.mxu0 0.0
  %161 = vmatpush.msra.mxu0 0.0
  %162 = vmatpush.msra.mxu0 0.0
  %163 = vmatpush.msra.mxu0 0.0
  %164 = vmatpush.msra.mxu0 0.0
  %165 = vmatpush.msra.mxu0 0.0
  %166 = vmatpush.msra.mxu0 0.0
  %v167 = vand.u32 %v50, 4294901760
  %v168 = vsub.f32 %v50, %v167
  %169 = vmatpush.msra.mxu0 %v168
  %v170 = vand.u32 %v49, 4294901760
  %v171 = vsub.f32 %v49, %v170
  %172 = vmatpush.msra.mxu0 %v171
  %v173 = vand.u32 %v48, 4294901760
  %v174 = vsub.f32 %v48, %v173
  %175 = vmatpush.msra.mxu0 %v174
  %v176 = vand.u32 %v47, 4294901760
  %v177 = vsub.f32 %v47, %v176
  %178 = vmatpush.msra.mxu0 %v177
  %v179 = vand.u32 %v53, 4294901760
  %v180 = vsub.f32 %v53, %v179
  %181 = vmatmul.f32.gmra.mxu0 %v180
  %v182 = vpop.f32.mrf.mxu0
  %v183 = vadd.f32 %v145, %v182
  %v184 = vand.u32 %v56, 4294901760
  %v185 = vsub.f32 %v56, %v184
  %186 = vmatmul.f32.gmra.mxu0 %v185
  %v187 = vpop.f32.mrf.mxu0
  %v188 = vadd.f32 %v149, %v187
  %v189 = vand.u32 %v59, 4294901760
  %v190 = vsub.f32 %v59, %v189
  %191 = vmatmul.f32.gmra.mxu0 %v190
  %v192 = vpop.f32.mrf.mxu0
  %v193 = vadd.f32 %v153, %v192
  %194 = vdwg.mxu0
  %195 = vmatpush.msra.mxu0 0.0
  %196 = vmatpush.msra.mxu0 0.0
  %197 = vmatpush.msra.mxu0 0.0
  %198 = vmatpush.msra.mxu0 0.0
  %199 = vmatpush.msra.mxu0 0.0
  %200 = vmatpush.msra.mxu0 0.0
  %201 = vmatpush.msra.mxu0 0.0
  %202 = vmatpush.msra.mxu0 0.0
  %203 = vmatpush.msra.mxu0 0.0
  %204 = vmatpush.msra.mxu0 0.0
  %205 = vmatpush.msra.mxu0 0.0
  %206 = vmatpush.msra.mxu0 0.0
  %v207 = vand.u32 %v50, 4294901760
  %208 = vmatpush.msra.mxu0 %v207
  %v209 = vand.u32 %v49, 4294901760
  %210 = vmatpush.msra.mxu0 %v209
  %v211 = vand.u32 %v48, 4294901760
  %212 = vmatpush.msra.mxu0 %v211
  %v213 = vand.u32 %v47, 4294901760
  %214 = vmatpush.msra.mxu0 %v213
  %v215 = vand.u32 %v53, 4294901760
  %v216 = vsub.f32 %v53, %v215
  %v217 = vand.u32 %v216, 4294901760
  %218 = vmatmul.f32.gmra.mxu0 %v217
  %v219 = vpop.f32.mrf.mxu0
  %v220 = vadd.f32 %v183, %v219
  %v221 = vand.u32 %v56, 4294901760
  %v222 = vsub.f32 %v56, %v221
  %v223 = vand.u32 %v222, 4294901760
  %224 = vmatmul.f32.gmra.mxu0 %v223
  %v225 = vpop.f32.mrf.mxu0
  %v226 = vadd.f32 %v188, %v225
  %v227 = vand.u32 %v59, 4294901760
  %v228 = vsub.f32 %v59, %v227
  %v229 = vand.u32 %v228, 4294901760
  %230 = vmatmul.f32.gmra.mxu0 %v229
  %v231 = vpop.f32.mrf.mxu0
  %v232 = vadd.f32 %v193, %v231
  %233 = vdwg.mxu0
  %234 = vmatpush.msra.mxu0 0.0
  %235 = vmatpush.msra.mxu0 0.0
  %236 = vmatpush.msra.mxu0 0.0
  %237 = vmatpush.msra.mxu0 0.0
  %238 = vmatpush.msra.mxu0 0.0
  %239 = vmatpush.msra.mxu0 0.0
  %240 = vmatpush.msra.mxu0 0.0
  %241 = vmatpush.msra.mxu0 0.0
  %242 = vmatpush.msra.mxu0 0.0
  %243 = vmatpush.msra.mxu0 0.0
  %244 = vmatpush.msra.mxu0 0.0
  %245 = vmatpush.msra.mxu0 0.0
  %v246 = vand.u32 %v50, 4294901760
  %v247 = vsub.f32 %v50, %v246
  %v248 = vand.u32 %v247, 4294901760
  %249 = vmatpush.msra.mxu0 %v248
  %v250 = vand.u32 %v49, 4294901760
  %v251 = vsub.f32 %v49, %v250
  %v252 = vand.u32 %v251, 4294901760
  %253 = vmatpush.msra.mxu0 %v252
  %v254 = vand.u32 %v48, 4294901760
  %v255 = vsub.f32 %v48, %v254
  %v256 = vand.u32 %v255, 4294901760
  %257 = vmatpush.msra.mxu0 %v256
  %v258 = vand.u32 %v47, 4294901760
  %v259 = vsub.f32 %v47, %v258
  %v260 = vand.u32 %v259, 4294901760
  %261 = vmatpush.msra.mxu0 %v260
  %v262 = vand.u32 %v53, 4294901760
  %263 = vmatmul.f32.gmra.mxu0 %v262
  %v264 = vpop.f32.mrf.mxu0
  %v265 = vadd.f32 %v220, %v264
  %v266 = vand.u32 %v56, 4294901760
  %267 = vmatmul.f32.gmra.mxu0 %v266
  %v268 = vpop.f32.mrf.mxu0
  %v269 = vadd.f32 %v226, %v268
  %v270 = vand.u32 %v59, 4294901760
  %271 = vmatmul.f32.gmra.mxu0 %v270
  %v272 = vpop.f32.mrf.mxu0
  %v273 = vadd.f32 %v232, %v272
  %274 = vdwg.mxu0
  %275 = vmatpush.msra.mxu0 0.0
  %276 = vmatpush.msra.mxu0 0.0
  %277 = vmatpush.msra.mxu0 0.0
  %278 = vmatpush.msra.mxu0 0.0
  %279 = vmatpush.msra.mxu0 0.0
  %280 = vmatpush.msra.mxu0 0.0
  %281 = vmatpush.msra.mxu0 0.0
  %282 = vmatpush.msra.mxu0 0.0
  %283 = vmatpush.msra.mxu0 0.0
  %284 = vmatpush.msra.mxu0 0.0
  %285 = vmatpush.msra.mxu0 0.0
  %286 = vmatpush.msra.mxu0 0.0
  %v287 = vand.u32 %v50, 4294901760
  %288 = vmatpush.msra.mxu0 %v287
  %v289 = vand.u32 %v49, 4294901760
  %290 = vmatpush.msra.mxu0 %v289
  %v291 = vand.u32 %v48, 4294901760
  %292 = vmatpush.msra.mxu0 %v291
  %v293 = vand.u32 %v47, 4294901760
  %294 = vmatpush.msra.mxu0 %v293
  %v295 = vand.u32 %v53, 4294901760
  %296 = vmatmul.f32.gmra.mxu0 %v295
  %v297 = vpop.f32.mrf.mxu0
  %v298 = vadd.f32 %v265, %v297
  %v299 = vand.u32 %v56, 4294901760
  %300 = vmatmul.f32.gmra.mxu0 %v299
  %v301 = vpop.f32.mrf.mxu0
  %v302 = vadd.f32 %v269, %v301
  %v303 = vand.u32 %v59, 4294901760
  %304 = vmatmul.f32.gmra.mxu0 %v303
  %v305 = vpop.f32.mrf.mxu0
  %v306 = vadd.f32 %v273, %v305
  %307 = vdwg.mxu0
  %v308 = vld [vmem:[%s1] sm:$0xff]
  %v309 = vld [vmem:[%s1 + $0x8] sm:$0xff]
  %v310 = vld [vmem:[%s1 + $0x10] sm:$0x3]
  %v311 = vld [vmem:[%s8] sm:$0xff]
  %v312 = vld [vmem:[%s8 + $0x8] sm:$0xff]
  %v313 = vld [vmem:[%s8 + $0x10] sm:$0xff]
  %v314 = vld [vmem:[%s8 + $0x18] sm:$0xff]
  %v316 = vsel %vm51, %v308, 0
  %v319 = vsel %vm51, %v309, 0
  %v322 = vsel %vm51, %v310, 0
  %324 = vmatpush.msra.mxu0 0.0
  %325 = vmatpush.msra.mxu0 0.0
  %326 = vmatpush.msra.mxu0 0.0
  %327 = vmatpush.msra.mxu0 0.0
  %328 = vmatpush.msra.mxu0 0.0
  %329 = vmatpush.msra.mxu0 0.0
  %330 = vmatpush.msra.mxu0 0.0
  %331 = vmatpush.msra.mxu0 0.0
  %332 = vmatpush.msra.mxu0 0.0
  %333 = vmatpush.msra.mxu0 0.0
  %334 = vmatpush.msra.mxu0 0.0
  %335 = vmatpush.msra.mxu0 0.0
  %v336 = vand.u32 %v314, 4294901760
  %337 = vmatpush.msra.mxu0 %v336
  %v338 = vand.u32 %v313, 4294901760
  %339 = vmatpush.msra.mxu0 %v338
  %v340 = vand.u32 %v312, 4294901760
  %341 = vmatpush.msra.mxu0 %v340
  %v342 = vand.u32 %v311, 4294901760
  %343 = vmatpush.msra.mxu0 %v342
  %v344 = vand.u32 %v316, 4294901760
  %v345 = vsub.f32 %v316, %v344
  %v346 = vand.u32 %v345, 4294901760
  %v347 = vsub.f32 %v345, %v346
  %v348 = vand.u32 %v347, 4294901760
  %349 = vmatmul.f32.gmra.mxu0 %v348
  %v350 = vpop.f32.mrf.mxu0
  %v351 = vadd.f32 0.0, %v350
  %v352 = vand.u32 %v319, 4294901760
  %v353 = vsub.f32 %v319, %v352
  %v354 = vand.u32 %v353, 4294901760
  %v355 = vsub.f32 %v353, %v354
  %v356 = vand.u32 %v355, 4294901760
  %357 = vmatmul.f32.gmra.mxu0 %v356
  %v358 = vpop.f32.mrf.mxu0
  %v359 = vadd.f32 0.0, %v358
  %v360 = vand.u32 %v322, 4294901760
  %v361 = vsub.f32 %v322, %v360
  %v362 = vand.u32 %v361, 4294901760
  %v363 = vsub.f32 %v361, %v362
  %v364 = vand.u32 %v363, 4294901760
  %365 = vmatmul.f32.gmra.mxu0 %v364
  %v366 = vpop.f32.mrf.mxu0
  %v367 = vadd.f32 0.0, %v366
  %368 = vdwg.mxu0
  %369 = vmatpush.msra.mxu0 0.0
  %370 = vmatpush.msra.mxu0 0.0
  %371 = vmatpush.msra.mxu0 0.0
  %372 = vmatpush.msra.mxu0 0.0
  %373 = vmatpush.msra.mxu0 0.0
  %374 = vmatpush.msra.mxu0 0.0
  %375 = vmatpush.msra.mxu0 0.0
  %376 = vmatpush.msra.mxu0 0.0
  %377 = vmatpush.msra.mxu0 0.0
  %378 = vmatpush.msra.mxu0 0.0
  %379 = vmatpush.msra.mxu0 0.0
  %380 = vmatpush.msra.mxu0 0.0
  %v381 = vand.u32 %v314, 4294901760
  %v382 = vsub.f32 %v314, %v381
  %v383 = vand.u32 %v382, 4294901760
  %v384 = vsub.f32 %v382, %v383
  %v385 = vand.u32 %v384, 4294901760
  %386 = vmatpush.msra.mxu0 %v385
  %v387 = vand.u32 %v313, 4294901760
  %v388 = vsub.f32 %v313, %v387
  %v389 = vand.u32 %v388, 4294901760
  %v390 = vsub.f32 %v388, %v389
  %v391 = vand.u32 %v390, 4294901760
  %392 = vmatpush.msra.mxu0 %v391
  %v393 = vand.u32 %v312, 4294901760
  %v394 = vsub.f32 %v312, %v393
  %v395 = vand.u32 %v394, 4294901760
  %v396 = vsub.f32 %v394, %v395
  %v397 = vand.u32 %v396, 4294901760
  %398 = vmatpush.msra.mxu0 %v397
  %v399 = vand.u32 %v311, 4294901760
  %v400 = vsub.f32 %v311, %v399
  %v401 = vand.u32 %v400, 4294901760
  %v402 = vsub.f32 %v400, %v401
  %v403 = vand.u32 %v402, 4294901760
  %404 = vmatpush.msra.mxu0 %v403
  %v405 = vand.u32 %v316, 4294901760
  %406 = vmatmul.f32.gmra.mxu0 %v405
  %v407 = vpop.f32.mrf.mxu0
  %v408 = vadd.f32 %v351, %v407
  %v409 = vand.u32 %v319, 4294901760
  %410 = vmatmul.f32.gmra.mxu0 %v409
  %v411 = vpop.f32.mrf.mxu0
  %v412 = vadd.f32 %v359, %v411
  %v413 = vand.u32 %v322, 4294901760
  %414 = vmatmul.f32.gmra.mxu0 %v413
  %v415 = vpop.f32.mrf.mxu0
  %v416 = vadd.f32 %v367, %v415
  %417 = vdwg.mxu0
  %418 = vmatpush.msra.mxu0 0.0
  %419 = vmatpush.msra.mxu0 0.0
  %420 = vmatpush.msra.mxu0 0.0
  %421 = vmatpush.msra.mxu0 0.0
  %422 = vmatpush.msra.mxu0 0.0
  %423 = vmatpush.msra.mxu0 0.0
  %424 = vmatpush.msra.mxu0 0.0
  %425 = vmatpush.msra.mxu0 0.0
  %426 = vmatpush.msra.mxu0 0.0
  %427 = vmatpush.msra.mxu0 0.0
  %428 = vmatpush.msra.mxu0 0.0
  %429 = vmatpush.msra.mxu0 0.0
  %v430 = vand.u32 %v314, 4294901760
  %v431 = vsub.f32 %v314, %v430
  %432 = vmatpush.msra.mxu0 %v431
  %v433 = vand.u32 %v313, 4294901760
  %v434 = vsub.f32 %v313, %v433
  %435 = vmatpush.msra.mxu0 %v434
  %v436 = vand.u32 %v312, 4294901760
  %v437 = vsub.f32 %v312, %v436
  %438 = vmatpush.msra.mxu0 %v437
  %v439 = vand.u32 %v311, 4294901760
  %v440 = vsub.f32 %v311, %v439
  %441 = vmatpush.msra.mxu0 %v440
  %v442 = vand.u32 %v316, 4294901760
  %v443 = vsub.f32 %v316, %v442
  %444 = vmatmul.f32.gmra.mxu0 %v443
  %v445 = vpop.f32.mrf.mxu0
  %v446 = vadd.f32 %v408, %v445
  %v447 = vand.u32 %v319, 4294901760
  %v448 = vsub.f32 %v319, %v447
  %449 = vmatmul.f32.gmra.mxu0 %v448
  %v450 = vpop.f32.mrf.mxu0
  %v451 = vadd.f32 %v412, %v450
  %v452 = vand.u32 %v322, 4294901760
  %v453 = vsub.f32 %v322, %v452
  %454 = vmatmul.f32.gmra.mxu0 %v453
  %v455 = vpop.f32.mrf.mxu0
  %v456 = vadd.f32 %v416, %v455
  %457 = vdwg.mxu0
  %458 = vmatpush.msra.mxu0 0.0
  %459 = vmatpush.msra.mxu0 0.0
  %460 = vmatpush.msra.mxu0 0.0
  %461 = vmatpush.msra.mxu0 0.0
  %462 = vmatpush.msra.mxu0 0.0
  %463 = vmatpush.msra.mxu0 0.0
  %464 = vmatpush.msra.mxu0 0.0
  %465 = vmatpush.msra.mxu0 0.0
  %466 = vmatpush.msra.mxu0 0.0
  %467 = vmatpush.msra.mxu0 0.0
  %468 = vmatpush.msra.mxu0 0.0
  %469 = vmatpush.msra.mxu0 0.0
  %v470 = vand.u32 %v314, 4294901760
  %471 = vmatpush.msra.mxu0 %v470
  %v472 = vand.u32 %v313, 4294901760
  %473 = vmatpush.msra.mxu0 %v472
  %v474 = vand.u32 %v312, 4294901760
  %475 = vmatpush.msra.mxu0 %v474
  %v476 = vand.u32 %v311, 4294901760
  %477 = vmatpush.msra.mxu0 %v476
  %v478 = vand.u32 %v316, 4294901760
  %v479 = vsub.f32 %v316, %v478
  %v480 = vand.u32 %v479, 4294901760
  %481 = vmatmul.f32.gmra.mxu0 %v480
  %v482 = vpop.f32.mrf.mxu0
  %v483 = vadd.f32 %v446, %v482
  %v484 = vand.u32 %v319, 4294901760
  %v485 = vsub.f32 %v319, %v484
  %v486 = vand.u32 %v485, 4294901760
  %487 = vmatmul.f32.gmra.mxu0 %v486
  %v488 = vpop.f32.mrf.mxu0
  %v489 = vadd.f32 %v451, %v488
  %v490 = vand.u32 %v322, 4294901760
  %v491 = vsub.f32 %v322, %v490
  %v492 = vand.u32 %v491, 4294901760
  %493 = vmatmul.f32.gmra.mxu0 %v492
  %v494 = vpop.f32.mrf.mxu0
  %v495 = vadd.f32 %v456, %v494
  %496 = vdwg.mxu0
  %497 = vmatpush.msra.mxu0 0.0
  %498 = vmatpush.msra.mxu0 0.0
  %499 = vmatpush.msra.mxu0 0.0
  %500 = vmatpush.msra.mxu0 0.0
  %501 = vmatpush.msra.mxu0 0.0
  %502 = vmatpush.msra.mxu0 0.0
  %503 = vmatpush.msra.mxu0 0.0
  %504 = vmatpush.msra.mxu0 0.0
  %505 = vmatpush.msra.mxu0 0.0
  %506 = vmatpush.msra.mxu0 0.0
  %507 = vmatpush.msra.mxu0 0.0
  %508 = vmatpush.msra.mxu0 0.0
  %v509 = vand.u32 %v314, 4294901760
  %v510 = vsub.f32 %v314, %v509
  %v511 = vand.u32 %v510, 4294901760
  %512 = vmatpush.msra.mxu0 %v511
  %v513 = vand.u32 %v313, 4294901760
  %v514 = vsub.f32 %v313, %v513
  %v515 = vand.u32 %v514, 4294901760
  %516 = vmatpush.msra.mxu0 %v515
  %v517 = vand.u32 %v312, 4294901760
  %v518 = vsub.f32 %v312, %v517
  %v519 = vand.u32 %v518, 4294901760
  %520 = vmatpush.msra.mxu0 %v519
  %v521 = vand.u32 %v311, 4294901760
  %v522 = vsub.f32 %v311, %v521
  %v523 = vand.u32 %v522, 4294901760
  %524 = vmatpush.msra.mxu0 %v523
  %v525 = vand.u32 %v316, 4294901760
  %526 = vmatmul.f32.gmra.mxu0 %v525
  %v527 = vpop.f32.mrf.mxu0
  %v528 = vadd.f32 %v483, %v527
  %v529 = vand.u32 %v319, 4294901760
  %530 = vmatmul.f32.gmra.mxu0 %v529
  %v531 = vpop.f32.mrf.mxu0
  %v532 = vadd.f32 %v489, %v531
  %v533 = vand.u32 %v322, 4294901760
  %534 = vmatmul.f32.gmra.mxu0 %v533
  %v535 = vpop.f32.mrf.mxu0
  %v536 = vadd.f32 %v495, %v535
  %537 = vdwg.mxu0
  %538 = vmatpush.msra.mxu0 0.0
  %539 = vmatpush.msra.mxu0 0.0
  %540 = vmatpush.msra.mxu0 0.0
  %541 = vmatpush.msra.mxu0 0.0
  %542 = vmatpush.msra.mxu0 0.0
  %543 = vmatpush.msra.mxu0 0.0
  %544 = vmatpush.msra.mxu0 0.0
  %545 = vmatpush.msra.mxu0 0.0
  %546 = vmatpush.msra.mxu0 0.0
  %547 = vmatpush.msra.mxu0 0.0
  %548 = vmatpush.msra.mxu0 0.0
  %549 = vmatpush.msra.mxu0 0.0
  %v550 = vand.u32 %v314, 4294901760
  %551 = vmatpush.msra.mxu0 %v550
  %v552 = vand.u32 %v313, 4294901760
  %553 = vmatpush.msra.mxu0 %v552
  %v554 = vand.u32 %v312, 4294901760
  %555 = vmatpush.msra.mxu0 %v554
  %v556 = vand.u32 %v311, 4294901760
  %557 = vmatpush.msra.mxu0 %v556
  %v558 = vand.u32 %v316, 4294901760
  %559 = vmatmul.f32.gmra.mxu0 %v558
  %v560 = vpop.f32.mrf.mxu0
  %v561 = vadd.f32 %v528, %v560
  %v562 = vand.u32 %v319, 4294901760
  %563 = vmatmul.f32.gmra.mxu0 %v562
  %v564 = vpop.f32.mrf.mxu0
  %v565 = vadd.f32 %v532, %v564
  %v566 = vand.u32 %v322, 4294901760
  %567 = vmatmul.f32.gmra.mxu0 %v566
  %v568 = vpop.f32.mrf.mxu0
  %v569 = vadd.f32 %v536, %v568
  %570 = vdwg.mxu0
  %v571 = vld [vmem:[%s2] sm:$0xff]
  %v572 = vld [vmem:[%s2 + $0x8] sm:$0xff]
  %v573 = vld [vmem:[%s2 + $0x10] sm:$0x3]
  %v574 = vld [vmem:[%s9] sm:$0xff]
  %v575 = vld [vmem:[%s9 + $0x8] sm:$0xff]
  %v576 = vld [vmem:[%s9 + $0x10] sm:$0xff]
  %v577 = vld [vmem:[%s9 + $0x18] sm:$0xff]
  %v578 = vld [vmem:[%s10] sm:$0x1]
  %v580 = vperm.slane %v578, 0
  %v583 = vsel %vm51, %v571, 0
  %v586 = vsel %vm51, %v572, 0
  %v589 = vsel %vm51, %v573, 0
  %591 = vmatpush.msra.mxu0 0.0
  %592 = vmatpush.msra.mxu0 0.0
  %593 = vmatpush.msra.mxu0 0.0
  %594 = vmatpush.msra.mxu0 0.0
  %595 = vmatpush.msra.mxu0 0.0
  %596 = vmatpush.msra.mxu0 0.0
  %597 = vmatpush.msra.mxu0 0.0
  %598 = vmatpush.msra.mxu0 0.0
  %599 = vmatpush.msra.mxu0 0.0
  %600 = vmatpush.msra.mxu0 0.0
  %601 = vmatpush.msra.mxu0 0.0
  %602 = vmatpush.msra.mxu0 0.0
  %v603 = vand.u32 %v577, 4294901760
  %604 = vmatpush.msra.mxu0 %v603
  %v605 = vand.u32 %v576, 4294901760
  %606 = vmatpush.msra.mxu0 %v605
  %v607 = vand.u32 %v575, 4294901760
  %608 = vmatpush.msra.mxu0 %v607
  %v609 = vand.u32 %v574, 4294901760
  %610 = vmatpush.msra.mxu0 %v609
  %v611 = vand.u32 %v583, 4294901760
  %v612 = vsub.f32 %v583, %v611
  %v613 = vand.u32 %v612, 4294901760
  %v614 = vsub.f32 %v612, %v613
  %v615 = vand.u32 %v614, 4294901760
  %616 = vmatmul.f32.gmra.mxu0 %v615
  %v617 = vpop.f32.mrf.mxu0
  %v618 = vadd.f32 %v580, %v617
  %v619 = vand.u32 %v586, 4294901760
  %v620 = vsub.f32 %v586, %v619
  %v621 = vand.u32 %v620, 4294901760
  %v622 = vsub.f32 %v620, %v621
  %v623 = vand.u32 %v622, 4294901760
  %624 = vmatmul.f32.gmra.mxu0 %v623
  %v625 = vpop.f32.mrf.mxu0
  %v626 = vadd.f32 %v580, %v625
  %v627 = vand.u32 %v589, 4294901760
  %v628 = vsub.f32 %v589, %v627
  %v629 = vand.u32 %v628, 4294901760
  %v630 = vsub.f32 %v628, %v629
  %v631 = vand.u32 %v630, 4294901760
  %632 = vmatmul.f32.gmra.mxu0 %v631
  %v633 = vpop.f32.mrf.mxu0
  %v634 = vadd.f32 %v580, %v633
  %635 = vdwg.mxu0
  %636 = vmatpush.msra.mxu0 0.0
  %637 = vmatpush.msra.mxu0 0.0
  %638 = vmatpush.msra.mxu0 0.0
  %639 = vmatpush.msra.mxu0 0.0
  %640 = vmatpush.msra.mxu0 0.0
  %641 = vmatpush.msra.mxu0 0.0
  %642 = vmatpush.msra.mxu0 0.0
  %643 = vmatpush.msra.mxu0 0.0
  %644 = vmatpush.msra.mxu0 0.0
  %645 = vmatpush.msra.mxu0 0.0
  %646 = vmatpush.msra.mxu0 0.0
  %647 = vmatpush.msra.mxu0 0.0
  %v648 = vand.u32 %v577, 4294901760
  %v649 = vsub.f32 %v577, %v648
  %v650 = vand.u32 %v649, 4294901760
  %v651 = vsub.f32 %v649, %v650
  %v652 = vand.u32 %v651, 4294901760
  %653 = vmatpush.msra.mxu0 %v652
  %v654 = vand.u32 %v576, 4294901760
  %v655 = vsub.f32 %v576, %v654
  %v656 = vand.u32 %v655, 4294901760
  %v657 = vsub.f32 %v655, %v656
  %v658 = vand.u32 %v657, 4294901760
  %659 = vmatpush.msra.mxu0 %v658
  %v660 = vand.u32 %v575, 4294901760
  %v661 = vsub.f32 %v575, %v660
  %v662 = vand.u32 %v661, 4294901760
  %v663 = vsub.f32 %v661, %v662
  %v664 = vand.u32 %v663, 4294901760
  %665 = vmatpush.msra.mxu0 %v664
  %v666 = vand.u32 %v574, 4294901760
  %v667 = vsub.f32 %v574, %v666
  %v668 = vand.u32 %v667, 4294901760
  %v669 = vsub.f32 %v667, %v668
  %v670 = vand.u32 %v669, 4294901760
  %671 = vmatpush.msra.mxu0 %v670
  %v672 = vand.u32 %v583, 4294901760
  %673 = vmatmul.f32.gmra.mxu0 %v672
  %v674 = vpop.f32.mrf.mxu0
  %v675 = vadd.f32 %v618, %v674
  %v676 = vand.u32 %v586, 4294901760
  %677 = vmatmul.f32.gmra.mxu0 %v676
  %v678 = vpop.f32.mrf.mxu0
  %v679 = vadd.f32 %v626, %v678
  %v680 = vand.u32 %v589, 4294901760
  %681 = vmatmul.f32.gmra.mxu0 %v680
  %v682 = vpop.f32.mrf.mxu0
  %v683 = vadd.f32 %v634, %v682
  %684 = vdwg.mxu0
  %685 = vmatpush.msra.mxu0 0.0
  %686 = vmatpush.msra.mxu0 0.0
  %687 = vmatpush.msra.mxu0 0.0
  %688 = vmatpush.msra.mxu0 0.0
  %689 = vmatpush.msra.mxu0 0.0
  %690 = vmatpush.msra.mxu0 0.0
  %691 = vmatpush.msra.mxu0 0.0
  %692 = vmatpush.msra.mxu0 0.0
  %693 = vmatpush.msra.mxu0 0.0
  %694 = vmatpush.msra.mxu0 0.0
  %695 = vmatpush.msra.mxu0 0.0
  %696 = vmatpush.msra.mxu0 0.0
  %v697 = vand.u32 %v577, 4294901760
  %v698 = vsub.f32 %v577, %v697
  %699 = vmatpush.msra.mxu0 %v698
  %v700 = vand.u32 %v576, 4294901760
  %v701 = vsub.f32 %v576, %v700
  %702 = vmatpush.msra.mxu0 %v701
  %v703 = vand.u32 %v575, 4294901760
  %v704 = vsub.f32 %v575, %v703
  %705 = vmatpush.msra.mxu0 %v704
  %v706 = vand.u32 %v574, 4294901760
  %v707 = vsub.f32 %v574, %v706
  %708 = vmatpush.msra.mxu0 %v707
  %v709 = vand.u32 %v583, 4294901760
  %v710 = vsub.f32 %v583, %v709
  %711 = vmatmul.f32.gmra.mxu0 %v710
  %v712 = vpop.f32.mrf.mxu0
  %v713 = vadd.f32 %v675, %v712
  %v714 = vand.u32 %v586, 4294901760
  %v715 = vsub.f32 %v586, %v714
  %716 = vmatmul.f32.gmra.mxu0 %v715
  %v717 = vpop.f32.mrf.mxu0
  %v718 = vadd.f32 %v679, %v717
  %v719 = vand.u32 %v589, 4294901760
  %v720 = vsub.f32 %v589, %v719
  %721 = vmatmul.f32.gmra.mxu0 %v720
  %v722 = vpop.f32.mrf.mxu0
  %v723 = vadd.f32 %v683, %v722
  %724 = vdwg.mxu0
  %725 = vmatpush.msra.mxu0 0.0
  %726 = vmatpush.msra.mxu0 0.0
  %727 = vmatpush.msra.mxu0 0.0
  %728 = vmatpush.msra.mxu0 0.0
  %729 = vmatpush.msra.mxu0 0.0
  %730 = vmatpush.msra.mxu0 0.0
  %731 = vmatpush.msra.mxu0 0.0
  %732 = vmatpush.msra.mxu0 0.0
  %733 = vmatpush.msra.mxu0 0.0
  %734 = vmatpush.msra.mxu0 0.0
  %735 = vmatpush.msra.mxu0 0.0
  %736 = vmatpush.msra.mxu0 0.0
  %v737 = vand.u32 %v577, 4294901760
  %738 = vmatpush.msra.mxu0 %v737
  %v739 = vand.u32 %v576, 4294901760
  %740 = vmatpush.msra.mxu0 %v739
  %v741 = vand.u32 %v575, 4294901760
  %742 = vmatpush.msra.mxu0 %v741
  %v743 = vand.u32 %v574, 4294901760
  %744 = vmatpush.msra.mxu0 %v743
  %v745 = vand.u32 %v583, 4294901760
  %v746 = vsub.f32 %v583, %v745
  %v747 = vand.u32 %v746, 4294901760
  %748 = vmatmul.f32.gmra.mxu0 %v747
  %v749 = vpop.f32.mrf.mxu0
  %v750 = vadd.f32 %v713, %v749
  %v751 = vand.u32 %v586, 4294901760
  %v752 = vsub.f32 %v586, %v751
  %v753 = vand.u32 %v752, 4294901760
  %754 = vmatmul.f32.gmra.mxu0 %v753
  %v755 = vpop.f32.mrf.mxu0
  %v756 = vadd.f32 %v718, %v755
  %v757 = vand.u32 %v589, 4294901760
  %v758 = vsub.f32 %v589, %v757
  %v759 = vand.u32 %v758, 4294901760
  %760 = vmatmul.f32.gmra.mxu0 %v759
  %v761 = vpop.f32.mrf.mxu0
  %v762 = vadd.f32 %v723, %v761
  %763 = vdwg.mxu0
  %764 = vmatpush.msra.mxu0 0.0
  %765 = vmatpush.msra.mxu0 0.0
  %766 = vmatpush.msra.mxu0 0.0
  %767 = vmatpush.msra.mxu0 0.0
  %768 = vmatpush.msra.mxu0 0.0
  %769 = vmatpush.msra.mxu0 0.0
  %770 = vmatpush.msra.mxu0 0.0
  %771 = vmatpush.msra.mxu0 0.0
  %772 = vmatpush.msra.mxu0 0.0
  %773 = vmatpush.msra.mxu0 0.0
  %774 = vmatpush.msra.mxu0 0.0
  %775 = vmatpush.msra.mxu0 0.0
  %v776 = vand.u32 %v577, 4294901760
  %v777 = vsub.f32 %v577, %v776
  %v778 = vand.u32 %v777, 4294901760
  %779 = vmatpush.msra.mxu0 %v778
  %v780 = vand.u32 %v576, 4294901760
  %v781 = vsub.f32 %v576, %v780
  %v782 = vand.u32 %v781, 4294901760
  %783 = vmatpush.msra.mxu0 %v782
  %v784 = vand.u32 %v575, 4294901760
  %v785 = vsub.f32 %v575, %v784
  %v786 = vand.u32 %v785, 4294901760
  %787 = vmatpush.msra.mxu0 %v786
  %v788 = vand.u32 %v574, 4294901760
  %v789 = vsub.f32 %v574, %v788
  %v790 = vand.u32 %v789, 4294901760
  %791 = vmatpush.msra.mxu0 %v790
  %v792 = vand.u32 %v583, 4294901760
  %793 = vmatmul.f32.gmra.mxu0 %v792
  %v794 = vpop.f32.mrf.mxu0
  %v795 = vadd.f32 %v750, %v794
  %v796 = vand.u32 %v586, 4294901760
  %797 = vmatmul.f32.gmra.mxu0 %v796
  %v798 = vpop.f32.mrf.mxu0
  %v799 = vadd.f32 %v756, %v798
  %v800 = vand.u32 %v589, 4294901760
  %801 = vmatmul.f32.gmra.mxu0 %v800
  %v802 = vpop.f32.mrf.mxu0
  %v803 = vadd.f32 %v762, %v802
  %804 = vdwg.mxu0
  %805 = vmatpush.msra.mxu0 0.0
  %806 = vmatpush.msra.mxu0 0.0
  %807 = vmatpush.msra.mxu0 0.0
  %808 = vmatpush.msra.mxu0 0.0
  %809 = vmatpush.msra.mxu0 0.0
  %810 = vmatpush.msra.mxu0 0.0
  %811 = vmatpush.msra.mxu0 0.0
  %812 = vmatpush.msra.mxu0 0.0
  %813 = vmatpush.msra.mxu0 0.0
  %814 = vmatpush.msra.mxu0 0.0
  %815 = vmatpush.msra.mxu0 0.0
  %816 = vmatpush.msra.mxu0 0.0
  %v817 = vand.u32 %v577, 4294901760
  %818 = vmatpush.msra.mxu0 %v817
  %v819 = vand.u32 %v576, 4294901760
  %820 = vmatpush.msra.mxu0 %v819
  %v821 = vand.u32 %v575, 4294901760
  %822 = vmatpush.msra.mxu0 %v821
  %v823 = vand.u32 %v574, 4294901760
  %824 = vmatpush.msra.mxu0 %v823
  %v825 = vand.u32 %v583, 4294901760
  %826 = vmatmul.f32.gmra.mxu0 %v825
  %v827 = vpop.f32.mrf.mxu0
  %v828 = vadd.f32 %v795, %v827
  %v829 = vand.u32 %v586, 4294901760
  %830 = vmatmul.f32.gmra.mxu0 %v829
  %v831 = vpop.f32.mrf.mxu0
  %v832 = vadd.f32 %v799, %v831
  %v833 = vand.u32 %v589, 4294901760
  %834 = vmatmul.f32.gmra.mxu0 %v833
  %v835 = vpop.f32.mrf.mxu0
  %v836 = vadd.f32 %v803, %v835
  %837 = vdwg.mxu0
  %v838 = vld [vmem:[%s11] sm:$0xff]
  %v839 = vld [vmem:[%s11 + $0x8] sm:$0xff]
  %v840 = vld [vmem:[%s11 + $0x10] sm:$0xff]
  %v841 = vld [vmem:[%s11 + $0x18] sm:$0xff]
  %v842 = vld [vmem:[%s12] sm:$0x1]
  %v843 = vld [vmem:[%s3] sm:$0xff]
  %v844 = vld [vmem:[%s3 + $0x8] sm:$0x1]
  %v845 = vld [vmem:[%s3 + $0x10] sm:$0xff]
  %v846 = vld [vmem:[%s3 + $0x18] sm:$0x1]
  %v847 = vld [vmem:[%s3 + $0x20] sm:$0xff]
  %v848 = vld [vmem:[%s3 + $0x28] sm:$0x1]
  %v849 = vld [vmem:[%s3 + $0x30] sm:$0xff]
  %v850 = vld [vmem:[%s3 + $0x38] sm:$0x1]
  %v851 = vld [vmem:[%s3 + $0x40] sm:$0xff]
  %v852 = vld [vmem:[%s3 + $0x48] sm:$0x1]
  %v853 = vld [vmem:[%s3 + $0x50] sm:$0xff]
  %v854 = vld [vmem:[%s3 + $0x58] sm:$0x1]
  %v855 = vld [vmem:[%s3 + $0x60] sm:$0xff]
  %v856 = vld [vmem:[%s3 + $0x68] sm:$0x1]
  %v857 = vld [vmem:[%s3 + $0x70] sm:$0xff]
  %v858 = vld [vmem:[%s3 + $0x78] sm:$0x1]
  %v859 = vld [vmem:[%s3 + $0x80] sm:$0xff]
  %v860 = vld [vmem:[%s3 + $0x88] sm:$0x1]
  %v861 = vld [vmem:[%s4] sm:$0xff]
  %v862 = vld [vmem:[%s4 + $0x8] sm:$0x1]
  %v863 = vld [vmem:[%s4 + $0x10] sm:$0xff]
  %v864 = vld [vmem:[%s4 + $0x18] sm:$0x1]
  %v865 = vld [vmem:[%s4 + $0x20] sm:$0xff]
  %v866 = vld [vmem:[%s4 + $0x28] sm:$0x1]
  %v867 = vld [vmem:[%s4 + $0x30] sm:$0xff]
  %v868 = vld [vmem:[%s4 + $0x38] sm:$0x1]
  %v869 = vld [vmem:[%s4 + $0x40] sm:$0xff]
  %v870 = vld [vmem:[%s4 + $0x48] sm:$0x1]
  %v871 = vld [vmem:[%s4 + $0x50] sm:$0xff]
  %v872 = vld [vmem:[%s4 + $0x58] sm:$0x1]
  %v873 = vld [vmem:[%s4 + $0x60] sm:$0xff]
  %v874 = vld [vmem:[%s4 + $0x68] sm:$0x1]
  %v875 = vld [vmem:[%s4 + $0x70] sm:$0xff]
  %v876 = vld [vmem:[%s4 + $0x78] sm:$0x1]
  %v877 = vld [vmem:[%s4 + $0x80] sm:$0xff]
  %v878 = vld [vmem:[%s4 + $0x88] sm:$0x1]
  %v881 = vrot.slane %v298, 1
  %v882 = vrot.slane %v298, 2
  %v883 = vrot.slane %v298, 3
  %v884 = vrot.slane %v298, 4
  %v885 = vrot.slane %v298, 5
  %v886 = vrot.slane %v298, 6
  %v887 = vrot.slane %v298, 7
  %v888 = vperm.slane %v298, 0
  %v889 = vperm.slane %v881, 0
  %v890 = vperm.slane %v882, 0
  %v891 = vperm.slane %v883, 0
  %v892 = vperm.slane %v884, 0
  %v893 = vperm.slane %v885, 0
  %v894 = vperm.slane %v886, 0
  %v895 = vperm.slane %v887, 0
  %v896 = vperm.slane %v302, 0
  %v906 = vadd.f32 %v888, %v861
  %v907 = vadd.f32 %v888, %v862
  %v908 = vadd.f32 %v889, %v863
  %v909 = vadd.f32 %v889, %v864
  %v910 = vadd.f32 %v890, %v865
  %v911 = vadd.f32 %v890, %v866
  %v912 = vadd.f32 %v891, %v867
  %v913 = vadd.f32 %v891, %v868
  %v914 = vadd.f32 %v892, %v869
  %v915 = vadd.f32 %v892, %v870
  %v916 = vadd.f32 %v893, %v871
  %v917 = vadd.f32 %v893, %v872
  %v918 = vadd.f32 %v894, %v873
  %v919 = vadd.f32 %v894, %v874
  %v920 = vadd.f32 %v895, %v875
  %v921 = vadd.f32 %v895, %v876
  %v922 = vadd.f32 %v896, %v877
  %v923 = vadd.f32 %v896, %v878
  %v924 = vadd.f32 %v561, %v843
  %v925 = vadd.f32 %v565, %v844
  %v926 = vadd.f32 %v561, %v845
  %v927 = vadd.f32 %v565, %v846
  %v928 = vadd.f32 %v561, %v847
  %v929 = vadd.f32 %v565, %v848
  %v930 = vadd.f32 %v561, %v849
  %v931 = vadd.f32 %v565, %v850
  %v932 = vadd.f32 %v561, %v851
  %v933 = vadd.f32 %v565, %v852
  %v934 = vadd.f32 %v561, %v853
  %v935 = vadd.f32 %v565, %v854
  %v936 = vadd.f32 %v561, %v855
  %v937 = vadd.f32 %v565, %v856
  %v938 = vadd.f32 %v561, %v857
  %v939 = vadd.f32 %v565, %v858
  %v940 = vadd.f32 %v561, %v859
  %v941 = vadd.f32 %v565, %v860
  %v942 = vmul.f32 %v906, %v924
  %v943 = vmul.f32 %v907, %v925
  %v944 = vmul.f32 %v908, %v926
  %v945 = vmul.f32 %v909, %v927
  %v946 = vmul.f32 %v910, %v928
  %v947 = vmul.f32 %v911, %v929
  %v948 = vmul.f32 %v912, %v930
  %v949 = vmul.f32 %v913, %v931
  %v950 = vmul.f32 %v914, %v932
  %v951 = vmul.f32 %v915, %v933
  %v952 = vmul.f32 %v916, %v934
  %v953 = vmul.f32 %v917, %v935
  %v954 = vmul.f32 %v918, %v936
  %v955 = vmul.f32 %v919, %v937
  %v956 = vmul.f32 %v920, %v938
  %v957 = vmul.f32 %v921, %v939
  %v958 = vmul.f32 %v922, %v940
  %v959 = vmul.f32 %v923, %v941
  %vm960 = vcmask 64512
  %v961 = vsel %vm960, %v942, 0.0
  %962 = vadd.xlane.f32.xlu0 %v961
  %v963 = vpop.xlane.xlu0 %962
  %vm964 = vcmask 57344
  %v965 = vsel %vm964, %v943, 0.0
  %966 = vadd.xlane.f32.xlu0 %v965
  %v967 = vpop.xlane.xlu0 %966
  %v968 = vsel %vm960, %v944, 0.0
  %969 = vadd.xlane.f32.xlu0 %v968
  %v970 = vpop.xlane.xlu0 %969
  %v971 = vsel %vm964, %v945, 0.0
  %972 = vadd.xlane.f32.xlu0 %v971
  %v973 = vpop.xlane.xlu0 %972
  %v974 = vsel %vm960, %v946, 0.0
  %975 = vadd.xlane.f32.xlu0 %v974
  %v976 = vpop.xlane.xlu0 %975
  %v977 = vsel %vm964, %v947, 0.0
  %978 = vadd.xlane.f32.xlu0 %v977
  %v979 = vpop.xlane.xlu0 %978
  %v980 = vsel %vm960, %v948, 0.0
  %981 = vadd.xlane.f32.xlu0 %v980
  %v982 = vpop.xlane.xlu0 %981
  %v983 = vsel %vm964, %v949, 0.0
  %984 = vadd.xlane.f32.xlu0 %v983
  %v985 = vpop.xlane.xlu0 %984
  %v986 = vsel %vm960, %v950, 0.0
  %987 = vadd.xlane.f32.xlu0 %v986
  %v988 = vpop.xlane.xlu0 %987
  %v989 = vsel %vm964, %v951, 0.0
  %990 = vadd.xlane.f32.xlu0 %v989
  %v991 = vpop.xlane.xlu0 %990
  %v992 = vsel %vm960, %v952, 0.0
  %993 = vadd.xlane.f32.xlu0 %v992
  %v994 = vpop.xlane.xlu0 %993
  %v995 = vsel %vm964, %v953, 0.0
  %996 = vadd.xlane.f32.xlu0 %v995
  %v997 = vpop.xlane.xlu0 %996
  %v998 = vsel %vm960, %v954, 0.0
  %999 = vadd.xlane.f32.xlu0 %v998
  %v1000 = vpop.xlane.xlu0 %999
  %v1001 = vsel %vm964, %v955, 0.0
  %1002 = vadd.xlane.f32.xlu0 %v1001
  %v1003 = vpop.xlane.xlu0 %1002
  %v1004 = vsel %vm960, %v956, 0.0
  %1005 = vadd.xlane.f32.xlu0 %v1004
  %v1006 = vpop.xlane.xlu0 %1005
  %v1007 = vsel %vm964, %v957, 0.0
  %1008 = vadd.xlane.f32.xlu0 %v1007
  %v1009 = vpop.xlane.xlu0 %1008
  %v1010 = vsel %vm960, %v958, 0.0
  %1011 = vadd.xlane.f32.xlu0 %v1010
  %v1012 = vpop.xlane.xlu0 %1011
  %v1013 = vsel %vm964, %v959, 0.0
  %1014 = vadd.xlane.f32.xlu0 %v1013
  %v1015 = vpop.xlane.xlu0 %1014
  %1034 = vrot.lane.b32.xlu0 %v942, 120
  %v1035 = vpop.permute.xlu0 %1034
  %1036 = vrot.lane.b32.xlu0 %v943, 120
  %v1037 = vpop.permute.xlu0 %1036
  %1038 = vrot.lane.b32.xlu0 %v944, 120
  %v1039 = vpop.permute.xlu0 %1038
  %1040 = vrot.lane.b32.xlu0 %v945, 120
  %v1041 = vpop.permute.xlu0 %1040
  %1042 = vrot.lane.b32.xlu0 %v946, 120
  %v1043 = vpop.permute.xlu0 %1042
  %1044 = vrot.lane.b32.xlu0 %v947, 120
  %v1045 = vpop.permute.xlu0 %1044
  %1046 = vrot.lane.b32.xlu0 %v948, 120
  %v1047 = vpop.permute.xlu0 %1046
  %1048 = vrot.lane.b32.xlu0 %v949, 120
  %v1049 = vpop.permute.xlu0 %1048
  %1050 = vrot.lane.b32.xlu0 %v950, 120
  %v1051 = vpop.permute.xlu0 %1050
  %1052 = vrot.lane.b32.xlu0 %v951, 120
  %v1053 = vpop.permute.xlu0 %1052
  %1054 = vrot.lane.b32.xlu0 %v952, 120
  %v1055 = vpop.permute.xlu0 %1054
  %1056 = vrot.lane.b32.xlu0 %v953, 120
  %v1057 = vpop.permute.xlu0 %1056
  %1058 = vrot.lane.b32.xlu0 %v954, 120
  %v1059 = vpop.permute.xlu0 %1058
  %1060 = vrot.lane.b32.xlu0 %v955, 120
  %v1061 = vpop.permute.xlu0 %1060
  %1062 = vrot.lane.b32.xlu0 %v956, 120
  %v1063 = vpop.permute.xlu0 %1062
  %1064 = vrot.lane.b32.xlu0 %v957, 120
  %v1065 = vpop.permute.xlu0 %1064
  %1066 = vrot.lane.b32.xlu0 %v958, 120
  %v1067 = vpop.permute.xlu0 %1066
  %1068 = vrot.lane.b32.xlu0 %v959, 120
  %v1069 = vpop.permute.xlu0 %1068
  %v1088 = vsel %vm960, %v1035, 0.0
  %1089 = vadd.xlane.f32.xlu0 %v1088
  %v1090 = vpop.xlane.xlu0 %1089
  %v1091 = vsel %vm964, %v1037, 0.0
  %1092 = vadd.xlane.f32.xlu0 %v1091
  %v1093 = vpop.xlane.xlu0 %1092
  %v1094 = vsel %vm960, %v1039, 0.0
  %1095 = vadd.xlane.f32.xlu0 %v1094
  %v1096 = vpop.xlane.xlu0 %1095
  %v1097 = vsel %vm964, %v1041, 0.0
  %1098 = vadd.xlane.f32.xlu0 %v1097
  %v1099 = vpop.xlane.xlu0 %1098
  %v1100 = vsel %vm960, %v1043, 0.0
  %1101 = vadd.xlane.f32.xlu0 %v1100
  %v1102 = vpop.xlane.xlu0 %1101
  %v1103 = vsel %vm964, %v1045, 0.0
  %1104 = vadd.xlane.f32.xlu0 %v1103
  %v1105 = vpop.xlane.xlu0 %1104
  %v1106 = vsel %vm960, %v1047, 0.0
  %1107 = vadd.xlane.f32.xlu0 %v1106
  %v1108 = vpop.xlane.xlu0 %1107
  %v1109 = vsel %vm964, %v1049, 0.0
  %1110 = vadd.xlane.f32.xlu0 %v1109
  %v1111 = vpop.xlane.xlu0 %1110
  %v1112 = vsel %vm960, %v1051, 0.0
  %1113 = vadd.xlane.f32.xlu0 %v1112
  %v1114 = vpop.xlane.xlu0 %1113
  %v1115 = vsel %vm964, %v1053, 0.0
  %1116 = vadd.xlane.f32.xlu0 %v1115
  %v1117 = vpop.xlane.xlu0 %1116
  %v1118 = vsel %vm960, %v1055, 0.0
  %1119 = vadd.xlane.f32.xlu0 %v1118
  %v1120 = vpop.xlane.xlu0 %1119
  %v1121 = vsel %vm964, %v1057, 0.0
  %1122 = vadd.xlane.f32.xlu0 %v1121
  %v1123 = vpop.xlane.xlu0 %1122
  %v1124 = vsel %vm960, %v1059, 0.0
  %1125 = vadd.xlane.f32.xlu0 %v1124
  %v1126 = vpop.xlane.xlu0 %1125
  %v1127 = vsel %vm964, %v1061, 0.0
  %1128 = vadd.xlane.f32.xlu0 %v1127
  %v1129 = vpop.xlane.xlu0 %1128
  %v1130 = vsel %vm960, %v1063, 0.0
  %1131 = vadd.xlane.f32.xlu0 %v1130
  %v1132 = vpop.xlane.xlu0 %1131
  %v1133 = vsel %vm964, %v1065, 0.0
  %1134 = vadd.xlane.f32.xlu0 %v1133
  %v1135 = vpop.xlane.xlu0 %1134
  %v1136 = vsel %vm960, %v1067, 0.0
  %1137 = vadd.xlane.f32.xlu0 %v1136
  %v1138 = vpop.xlane.xlu0 %1137
  %v1139 = vsel %vm964, %v1069, 0.0
  %1140 = vadd.xlane.f32.xlu0 %v1139
  %v1141 = vpop.xlane.xlu0 %1140
  %1142 = vrot.lane.b32.xlu0 %v942, 112
  %v1143 = vpop.permute.xlu0 %1142
  %1144 = vrot.lane.b32.xlu0 %v943, 112
  %v1145 = vpop.permute.xlu0 %1144
  %1146 = vrot.lane.b32.xlu0 %v944, 112
  %v1147 = vpop.permute.xlu0 %1146
  %1148 = vrot.lane.b32.xlu0 %v945, 112
  %v1149 = vpop.permute.xlu0 %1148
  %1150 = vrot.lane.b32.xlu0 %v946, 112
  %v1151 = vpop.permute.xlu0 %1150
  %1152 = vrot.lane.b32.xlu0 %v947, 112
  %v1153 = vpop.permute.xlu0 %1152
  %1154 = vrot.lane.b32.xlu0 %v948, 112
  %v1155 = vpop.permute.xlu0 %1154
  %1156 = vrot.lane.b32.xlu0 %v949, 112
  %v1157 = vpop.permute.xlu0 %1156
  %1158 = vrot.lane.b32.xlu0 %v950, 112
  %v1159 = vpop.permute.xlu0 %1158
  %1160 = vrot.lane.b32.xlu0 %v951, 112
  %v1161 = vpop.permute.xlu0 %1160
  %1162 = vrot.lane.b32.xlu0 %v952, 112
  %v1163 = vpop.permute.xlu0 %1162
  %1164 = vrot.lane.b32.xlu0 %v953, 112
  %v1165 = vpop.permute.xlu0 %1164
  %1166 = vrot.lane.b32.xlu0 %v954, 112
  %v1167 = vpop.permute.xlu0 %1166
  %1168 = vrot.lane.b32.xlu0 %v955, 112
  %v1169 = vpop.permute.xlu0 %1168
  %1170 = vrot.lane.b32.xlu0 %v956, 112
  %v1171 = vpop.permute.xlu0 %1170
  %1172 = vrot.lane.b32.xlu0 %v957, 112
  %v1173 = vpop.permute.xlu0 %1172
  %1174 = vrot.lane.b32.xlu0 %v958, 112
  %v1175 = vpop.permute.xlu0 %1174
  %1176 = vrot.lane.b32.xlu0 %v959, 112
  %v1177 = vpop.permute.xlu0 %1176
  %v1196 = vsel %vm960, %v1143, 0.0
  %1197 = vadd.xlane.f32.xlu0 %v1196
  %v1198 = vpop.xlane.xlu0 %1197
  %v1199 = vsel %vm964, %v1145, 0.0
  %1200 = vadd.xlane.f32.xlu0 %v1199
  %v1201 = vpop.xlane.xlu0 %1200
  %v1202 = vsel %vm960, %v1147, 0.0
  %1203 = vadd.xlane.f32.xlu0 %v1202
  %v1204 = vpop.xlane.xlu0 %1203
  %v1205 = vsel %vm964, %v1149, 0.0
  %1206 = vadd.xlane.f32.xlu0 %v1205
  %v1207 = vpop.xlane.xlu0 %1206
  %v1208 = vsel %vm960, %v1151, 0.0
  %1209 = vadd.xlane.f32.xlu0 %v1208
  %v1210 = vpop.xlane.xlu0 %1209
  %v1211 = vsel %vm964, %v1153, 0.0
  %1212 = vadd.xlane.f32.xlu0 %v1211
  %v1213 = vpop.xlane.xlu0 %1212
  %v1214 = vsel %vm960, %v1155, 0.0
  %1215 = vadd.xlane.f32.xlu0 %v1214
  %v1216 = vpop.xlane.xlu0 %1215
  %v1217 = vsel %vm964, %v1157, 0.0
  %1218 = vadd.xlane.f32.xlu0 %v1217
  %v1219 = vpop.xlane.xlu0 %1218
  %v1220 = vsel %vm960, %v1159, 0.0
  %1221 = vadd.xlane.f32.xlu0 %v1220
  %v1222 = vpop.xlane.xlu0 %1221
  %v1223 = vsel %vm964, %v1161, 0.0
  %1224 = vadd.xlane.f32.xlu0 %v1223
  %v1225 = vpop.xlane.xlu0 %1224
  %v1226 = vsel %vm960, %v1163, 0.0
  %1227 = vadd.xlane.f32.xlu0 %v1226
  %v1228 = vpop.xlane.xlu0 %1227
  %v1229 = vsel %vm964, %v1165, 0.0
  %1230 = vadd.xlane.f32.xlu0 %v1229
  %v1231 = vpop.xlane.xlu0 %1230
  %v1232 = vsel %vm960, %v1167, 0.0
  %1233 = vadd.xlane.f32.xlu0 %v1232
  %v1234 = vpop.xlane.xlu0 %1233
  %v1235 = vsel %vm964, %v1169, 0.0
  %1236 = vadd.xlane.f32.xlu0 %v1235
  %v1237 = vpop.xlane.xlu0 %1236
  %v1238 = vsel %vm960, %v1171, 0.0
  %1239 = vadd.xlane.f32.xlu0 %v1238
  %v1240 = vpop.xlane.xlu0 %1239
  %v1241 = vsel %vm964, %v1173, 0.0
  %1242 = vadd.xlane.f32.xlu0 %v1241
  %v1243 = vpop.xlane.xlu0 %1242
  %v1244 = vsel %vm960, %v1175, 0.0
  %1245 = vadd.xlane.f32.xlu0 %v1244
  %v1246 = vpop.xlane.xlu0 %1245
  %v1247 = vsel %vm964, %v1177, 0.0
  %1248 = vadd.xlane.f32.xlu0 %v1247
  %v1249 = vpop.xlane.xlu0 %1248
  %1250 = vrot.lane.b32.xlu0 %v942, 104
  %v1251 = vpop.permute.xlu0 %1250
  %1252 = vrot.lane.b32.xlu0 %v943, 104
  %v1253 = vpop.permute.xlu0 %1252
  %1254 = vrot.lane.b32.xlu0 %v944, 104
  %v1255 = vpop.permute.xlu0 %1254
  %1256 = vrot.lane.b32.xlu0 %v945, 104
  %v1257 = vpop.permute.xlu0 %1256
  %1258 = vrot.lane.b32.xlu0 %v946, 104
  %v1259 = vpop.permute.xlu0 %1258
  %1260 = vrot.lane.b32.xlu0 %v947, 104
  %v1261 = vpop.permute.xlu0 %1260
  %1262 = vrot.lane.b32.xlu0 %v948, 104
  %v1263 = vpop.permute.xlu0 %1262
  %1264 = vrot.lane.b32.xlu0 %v949, 104
  %v1265 = vpop.permute.xlu0 %1264
  %1266 = vrot.lane.b32.xlu0 %v950, 104
  %v1267 = vpop.permute.xlu0 %1266
  %1268 = vrot.lane.b32.xlu0 %v951, 104
  %v1269 = vpop.permute.xlu0 %1268
  %1270 = vrot.lane.b32.xlu0 %v952, 104
  %v1271 = vpop.permute.xlu0 %1270
  %1272 = vrot.lane.b32.xlu0 %v953, 104
  %v1273 = vpop.permute.xlu0 %1272
  %1274 = vrot.lane.b32.xlu0 %v954, 104
  %v1275 = vpop.permute.xlu0 %1274
  %1276 = vrot.lane.b32.xlu0 %v955, 104
  %v1277 = vpop.permute.xlu0 %1276
  %1278 = vrot.lane.b32.xlu0 %v956, 104
  %v1279 = vpop.permute.xlu0 %1278
  %1280 = vrot.lane.b32.xlu0 %v957, 104
  %v1281 = vpop.permute.xlu0 %1280
  %1282 = vrot.lane.b32.xlu0 %v958, 104
  %v1283 = vpop.permute.xlu0 %1282
  %1284 = vrot.lane.b32.xlu0 %v959, 104
  %v1285 = vpop.permute.xlu0 %1284
  %v1304 = vsel %vm960, %v1251, 0.0
  %1305 = vadd.xlane.f32.xlu0 %v1304
  %v1306 = vpop.xlane.xlu0 %1305
  %v1307 = vsel %vm964, %v1253, 0.0
  %1308 = vadd.xlane.f32.xlu0 %v1307
  %v1309 = vpop.xlane.xlu0 %1308
  %v1310 = vsel %vm960, %v1255, 0.0
  %1311 = vadd.xlane.f32.xlu0 %v1310
  %v1312 = vpop.xlane.xlu0 %1311
  %v1313 = vsel %vm964, %v1257, 0.0
  %1314 = vadd.xlane.f32.xlu0 %v1313
  %v1315 = vpop.xlane.xlu0 %1314
  %v1316 = vsel %vm960, %v1259, 0.0
  %1317 = vadd.xlane.f32.xlu0 %v1316
  %v1318 = vpop.xlane.xlu0 %1317
  %v1319 = vsel %vm964, %v1261, 0.0
  %1320 = vadd.xlane.f32.xlu0 %v1319
  %v1321 = vpop.xlane.xlu0 %1320
  %v1322 = vsel %vm960, %v1263, 0.0
  %1323 = vadd.xlane.f32.xlu0 %v1322
  %v1324 = vpop.xlane.xlu0 %1323
  %v1325 = vsel %vm964, %v1265, 0.0
  %1326 = vadd.xlane.f32.xlu0 %v1325
  %v1327 = vpop.xlane.xlu0 %1326
  %v1328 = vsel %vm960, %v1267, 0.0
  %1329 = vadd.xlane.f32.xlu0 %v1328
  %v1330 = vpop.xlane.xlu0 %1329
  %v1331 = vsel %vm964, %v1269, 0.0
  %1332 = vadd.xlane.f32.xlu0 %v1331
  %v1333 = vpop.xlane.xlu0 %1332
  %v1334 = vsel %vm960, %v1271, 0.0
  %1335 = vadd.xlane.f32.xlu0 %v1334
  %v1336 = vpop.xlane.xlu0 %1335
  %v1337 = vsel %vm964, %v1273, 0.0
  %1338 = vadd.xlane.f32.xlu0 %v1337
  %v1339 = vpop.xlane.xlu0 %1338
  %v1340 = vsel %vm960, %v1275, 0.0
  %1341 = vadd.xlane.f32.xlu0 %v1340
  %v1342 = vpop.xlane.xlu0 %1341
  %v1343 = vsel %vm964, %v1277, 0.0
  %1344 = vadd.xlane.f32.xlu0 %v1343
  %v1345 = vpop.xlane.xlu0 %1344
  %v1346 = vsel %vm960, %v1279, 0.0
  %1347 = vadd.xlane.f32.xlu0 %v1346
  %v1348 = vpop.xlane.xlu0 %1347
  %v1349 = vsel %vm964, %v1281, 0.0
  %1350 = vadd.xlane.f32.xlu0 %v1349
  %v1351 = vpop.xlane.xlu0 %1350
  %v1352 = vsel %vm960, %v1283, 0.0
  %1353 = vadd.xlane.f32.xlu0 %v1352
  %v1354 = vpop.xlane.xlu0 %1353
  %v1355 = vsel %vm964, %v1285, 0.0
  %1356 = vadd.xlane.f32.xlu0 %v1355
  %v1357 = vpop.xlane.xlu0 %1356
  %v1358 = vmul.f32 %v963, 0.35355338
  %v1359 = vmul.f32 %v967, 0.35355338
  %v1360 = vmul.f32 %v970, 0.35355338
  %v1361 = vmul.f32 %v973, 0.35355338
  %v1362 = vmul.f32 %v976, 0.35355338
  %v1363 = vmul.f32 %v979, 0.35355338
  %v1364 = vmul.f32 %v982, 0.35355338
  %v1365 = vmul.f32 %v985, 0.35355338
  %v1366 = vmul.f32 %v988, 0.35355338
  %v1367 = vmul.f32 %v991, 0.35355338
  %v1368 = vmul.f32 %v994, 0.35355338
  %v1369 = vmul.f32 %v997, 0.35355338
  %v1370 = vmul.f32 %v1000, 0.35355338
  %v1371 = vmul.f32 %v1003, 0.35355338
  %v1372 = vmul.f32 %v1006, 0.35355338
  %v1373 = vmul.f32 %v1009, 0.35355338
  %v1374 = vmul.f32 %v1012, 0.35355338
  %v1375 = vmul.f32 %v1015, 0.35355338
  %v1376 = vmul.f32 %v1090, 0.35355338
  %v1377 = vmul.f32 %v1093, 0.35355338
  %v1378 = vmul.f32 %v1096, 0.35355338
  %v1379 = vmul.f32 %v1099, 0.35355338
  %v1380 = vmul.f32 %v1102, 0.35355338
  %v1381 = vmul.f32 %v1105, 0.35355338
  %v1382 = vmul.f32 %v1108, 0.35355338
  %v1383 = vmul.f32 %v1111, 0.35355338
  %v1384 = vmul.f32 %v1114, 0.35355338
  %v1385 = vmul.f32 %v1117, 0.35355338
  %v1386 = vmul.f32 %v1120, 0.35355338
  %v1387 = vmul.f32 %v1123, 0.35355338
  %v1388 = vmul.f32 %v1126, 0.35355338
  %v1389 = vmul.f32 %v1129, 0.35355338
  %v1390 = vmul.f32 %v1132, 0.35355338
  %v1391 = vmul.f32 %v1135, 0.35355338
  %v1392 = vmul.f32 %v1138, 0.35355338
  %v1393 = vmul.f32 %v1141, 0.35355338
  %v1394 = vmul.f32 %v1198, 0.35355338
  %v1395 = vmul.f32 %v1201, 0.35355338
  %v1396 = vmul.f32 %v1204, 0.35355338
  %v1397 = vmul.f32 %v1207, 0.35355338
  %v1398 = vmul.f32 %v1210, 0.35355338
  %v1399 = vmul.f32 %v1213, 0.35355338
  %v1400 = vmul.f32 %v1216, 0.35355338
  %v1401 = vmul.f32 %v1219, 0.35355338
  %v1402 = vmul.f32 %v1222, 0.35355338
  %v1403 = vmul.f32 %v1225, 0.35355338
  %v1404 = vmul.f32 %v1228, 0.35355338
  %v1405 = vmul.f32 %v1231, 0.35355338
  %v1406 = vmul.f32 %v1234, 0.35355338
  %v1407 = vmul.f32 %v1237, 0.35355338
  %v1408 = vmul.f32 %v1240, 0.35355338
  %v1409 = vmul.f32 %v1243, 0.35355338
  %v1410 = vmul.f32 %v1246, 0.35355338
  %v1411 = vmul.f32 %v1249, 0.35355338
  %v1412 = vmul.f32 %v1306, 0.35355338
  %v1413 = vmul.f32 %v1309, 0.35355338
  %v1414 = vmul.f32 %v1312, 0.35355338
  %v1415 = vmul.f32 %v1315, 0.35355338
  %v1416 = vmul.f32 %v1318, 0.35355338
  %v1417 = vmul.f32 %v1321, 0.35355338
  %v1418 = vmul.f32 %v1324, 0.35355338
  %v1419 = vmul.f32 %v1327, 0.35355338
  %v1420 = vmul.f32 %v1330, 0.35355338
  %v1421 = vmul.f32 %v1333, 0.35355338
  %v1422 = vmul.f32 %v1336, 0.35355338
  %v1423 = vmul.f32 %v1339, 0.35355338
  %v1424 = vmul.f32 %v1342, 0.35355338
  %v1425 = vmul.f32 %v1345, 0.35355338
  %v1426 = vmul.f32 %v1348, 0.35355338
  %v1427 = vmul.f32 %v1351, 0.35355338
  %v1428 = vmul.f32 %v1354, 0.35355338
  %v1429 = vmul.f32 %v1357, 0.35355338
  %v1430 = vld [vmem:[%s6] sm:$0xff]
  %v1431 = vld [vmem:[%s6 + $0x8] sm:$0x1]
  %vm1432 = vcmp.gt.f32.partialorder %v1430, 0.5
  %vm1433 = vcmp.gt.f32.partialorder %v1431, 0.5
  %v1434 = vsel %vm1432, 1, 0
  %v1435 = vsel %vm1433, 1, 0
  %vm1436 = vcmp.eq.s32.totalorder %v1434, 1
  %vm1437 = vcmp.eq.s32.totalorder %v1435, 1
  %1510 = vset.pattern.permute.xlu0 0
  %1511 = vperm.xlu0 %1510, %v1358
  %v1512 = vpop.permute.xlu0 %1511
  %1513 = vset.pattern.permute.xlu0 0
  %1514 = vperm.xlu0 %1513, %v1359
  %v1515 = vpop.permute.xlu0 %1514
  %1516 = vset.pattern.permute.xlu0 0
  %1517 = vperm.xlu0 %1516, %v1360
  %v1518 = vpop.permute.xlu0 %1517
  %1519 = vset.pattern.permute.xlu0 0
  %1520 = vperm.xlu0 %1519, %v1361
  %v1521 = vpop.permute.xlu0 %1520
  %1522 = vset.pattern.permute.xlu0 0
  %1523 = vperm.xlu0 %1522, %v1362
  %v1524 = vpop.permute.xlu0 %1523
  %1525 = vset.pattern.permute.xlu0 0
  %1526 = vperm.xlu0 %1525, %v1363
  %v1527 = vpop.permute.xlu0 %1526
  %1528 = vset.pattern.permute.xlu0 0
  %1529 = vperm.xlu0 %1528, %v1364
  %v1530 = vpop.permute.xlu0 %1529
  %1531 = vset.pattern.permute.xlu0 0
  %1532 = vperm.xlu0 %1531, %v1365
  %v1533 = vpop.permute.xlu0 %1532
  %1534 = vset.pattern.permute.xlu0 0
  %1535 = vperm.xlu0 %1534, %v1366
  %v1536 = vpop.permute.xlu0 %1535
  %1537 = vset.pattern.permute.xlu0 0
  %1538 = vperm.xlu0 %1537, %v1367
  %v1539 = vpop.permute.xlu0 %1538
  %1540 = vset.pattern.permute.xlu0 0
  %1541 = vperm.xlu0 %1540, %v1368
  %v1542 = vpop.permute.xlu0 %1541
  %1543 = vset.pattern.permute.xlu0 0
  %1544 = vperm.xlu0 %1543, %v1369
  %v1545 = vpop.permute.xlu0 %1544
  %1546 = vset.pattern.permute.xlu0 0
  %1547 = vperm.xlu0 %1546, %v1370
  %v1548 = vpop.permute.xlu0 %1547
  %1549 = vset.pattern.permute.xlu0 0
  %1550 = vperm.xlu0 %1549, %v1371
  %v1551 = vpop.permute.xlu0 %1550
  %1552 = vset.pattern.permute.xlu0 0
  %1553 = vperm.xlu0 %1552, %v1372
  %v1554 = vpop.permute.xlu0 %1553
  %1555 = vset.pattern.permute.xlu0 0
  %1556 = vperm.xlu0 %1555, %v1373
  %v1557 = vpop.permute.xlu0 %1556
  %1558 = vset.pattern.permute.xlu0 0
  %1559 = vperm.xlu0 %1558, %v1374
  %v1560 = vpop.permute.xlu0 %1559
  %1561 = vset.pattern.permute.xlu0 0
  %1562 = vperm.xlu0 %1561, %v1375
  %v1563 = vpop.permute.xlu0 %1562
  %1564 = vset.pattern.permute.xlu0 0
  %1565 = vperm.xlu0 %1564, %v1376
  %v1566 = vpop.permute.xlu0 %1565
  %1567 = vset.pattern.permute.xlu0 0
  %1568 = vperm.xlu0 %1567, %v1377
  %v1569 = vpop.permute.xlu0 %1568
  %1570 = vset.pattern.permute.xlu0 0
  %1571 = vperm.xlu0 %1570, %v1378
  %v1572 = vpop.permute.xlu0 %1571
  %1573 = vset.pattern.permute.xlu0 0
  %1574 = vperm.xlu0 %1573, %v1379
  %v1575 = vpop.permute.xlu0 %1574
  %1576 = vset.pattern.permute.xlu0 0
  %1577 = vperm.xlu0 %1576, %v1380
  %v1578 = vpop.permute.xlu0 %1577
  %1579 = vset.pattern.permute.xlu0 0
  %1580 = vperm.xlu0 %1579, %v1381
  %v1581 = vpop.permute.xlu0 %1580
  %1582 = vset.pattern.permute.xlu0 0
  %1583 = vperm.xlu0 %1582, %v1382
  %v1584 = vpop.permute.xlu0 %1583
  %1585 = vset.pattern.permute.xlu0 0
  %1586 = vperm.xlu0 %1585, %v1383
  %v1587 = vpop.permute.xlu0 %1586
  %1588 = vset.pattern.permute.xlu0 0
  %1589 = vperm.xlu0 %1588, %v1384
  %v1590 = vpop.permute.xlu0 %1589
  %1591 = vset.pattern.permute.xlu0 0
  %1592 = vperm.xlu0 %1591, %v1385
  %v1593 = vpop.permute.xlu0 %1592
  %1594 = vset.pattern.permute.xlu0 0
  %1595 = vperm.xlu0 %1594, %v1386
  %v1596 = vpop.permute.xlu0 %1595
  %1597 = vset.pattern.permute.xlu0 0
  %1598 = vperm.xlu0 %1597, %v1387
  %v1599 = vpop.permute.xlu0 %1598
  %1600 = vset.pattern.permute.xlu0 0
  %1601 = vperm.xlu0 %1600, %v1388
  %v1602 = vpop.permute.xlu0 %1601
  %1603 = vset.pattern.permute.xlu0 0
  %1604 = vperm.xlu0 %1603, %v1389
  %v1605 = vpop.permute.xlu0 %1604
  %1606 = vset.pattern.permute.xlu0 0
  %1607 = vperm.xlu0 %1606, %v1390
  %v1608 = vpop.permute.xlu0 %1607
  %1609 = vset.pattern.permute.xlu0 0
  %1610 = vperm.xlu0 %1609, %v1391
  %v1611 = vpop.permute.xlu0 %1610
  %1612 = vset.pattern.permute.xlu0 0
  %1613 = vperm.xlu0 %1612, %v1392
  %v1614 = vpop.permute.xlu0 %1613
  %1615 = vset.pattern.permute.xlu0 0
  %1616 = vperm.xlu0 %1615, %v1393
  %v1617 = vpop.permute.xlu0 %1616
  %1618 = vset.pattern.permute.xlu0 0
  %1619 = vperm.xlu0 %1618, %v1394
  %v1620 = vpop.permute.xlu0 %1619
  %1621 = vset.pattern.permute.xlu0 0
  %1622 = vperm.xlu0 %1621, %v1395
  %v1623 = vpop.permute.xlu0 %1622
  %1624 = vset.pattern.permute.xlu0 0
  %1625 = vperm.xlu0 %1624, %v1396
  %v1626 = vpop.permute.xlu0 %1625
  %1627 = vset.pattern.permute.xlu0 0
  %1628 = vperm.xlu0 %1627, %v1397
  %v1629 = vpop.permute.xlu0 %1628
  %1630 = vset.pattern.permute.xlu0 0
  %1631 = vperm.xlu0 %1630, %v1398
  %v1632 = vpop.permute.xlu0 %1631
  %1633 = vset.pattern.permute.xlu0 0
  %1634 = vperm.xlu0 %1633, %v1399
  %v1635 = vpop.permute.xlu0 %1634
  %1636 = vset.pattern.permute.xlu0 0
  %1637 = vperm.xlu0 %1636, %v1400
  %v1638 = vpop.permute.xlu0 %1637
  %1639 = vset.pattern.permute.xlu0 0
  %1640 = vperm.xlu0 %1639, %v1401
  %v1641 = vpop.permute.xlu0 %1640
  %1642 = vset.pattern.permute.xlu0 0
  %1643 = vperm.xlu0 %1642, %v1402
  %v1644 = vpop.permute.xlu0 %1643
  %1645 = vset.pattern.permute.xlu0 0
  %1646 = vperm.xlu0 %1645, %v1403
  %v1647 = vpop.permute.xlu0 %1646
  %1648 = vset.pattern.permute.xlu0 0
  %1649 = vperm.xlu0 %1648, %v1404
  %v1650 = vpop.permute.xlu0 %1649
  %1651 = vset.pattern.permute.xlu0 0
  %1652 = vperm.xlu0 %1651, %v1405
  %v1653 = vpop.permute.xlu0 %1652
  %1654 = vset.pattern.permute.xlu0 0
  %1655 = vperm.xlu0 %1654, %v1406
  %v1656 = vpop.permute.xlu0 %1655
  %1657 = vset.pattern.permute.xlu0 0
  %1658 = vperm.xlu0 %1657, %v1407
  %v1659 = vpop.permute.xlu0 %1658
  %1660 = vset.pattern.permute.xlu0 0
  %1661 = vperm.xlu0 %1660, %v1408
  %v1662 = vpop.permute.xlu0 %1661
  %1663 = vset.pattern.permute.xlu0 0
  %1664 = vperm.xlu0 %1663, %v1409
  %v1665 = vpop.permute.xlu0 %1664
  %1666 = vset.pattern.permute.xlu0 0
  %1667 = vperm.xlu0 %1666, %v1410
  %v1668 = vpop.permute.xlu0 %1667
  %1669 = vset.pattern.permute.xlu0 0
  %1670 = vperm.xlu0 %1669, %v1411
  %v1671 = vpop.permute.xlu0 %1670
  %1672 = vset.pattern.permute.xlu0 0
  %1673 = vperm.xlu0 %1672, %v1412
  %v1674 = vpop.permute.xlu0 %1673
  %1675 = vset.pattern.permute.xlu0 0
  %1676 = vperm.xlu0 %1675, %v1413
  %v1677 = vpop.permute.xlu0 %1676
  %1678 = vset.pattern.permute.xlu0 0
  %1679 = vperm.xlu0 %1678, %v1414
  %v1680 = vpop.permute.xlu0 %1679
  %1681 = vset.pattern.permute.xlu0 0
  %1682 = vperm.xlu0 %1681, %v1415
  %v1683 = vpop.permute.xlu0 %1682
  %1684 = vset.pattern.permute.xlu0 0
  %1685 = vperm.xlu0 %1684, %v1416
  %v1686 = vpop.permute.xlu0 %1685
  %1687 = vset.pattern.permute.xlu0 0
  %1688 = vperm.xlu0 %1687, %v1417
  %v1689 = vpop.permute.xlu0 %1688
  %1690 = vset.pattern.permute.xlu0 0
  %1691 = vperm.xlu0 %1690, %v1418
  %v1692 = vpop.permute.xlu0 %1691
  %1693 = vset.pattern.permute.xlu0 0
  %1694 = vperm.xlu0 %1693, %v1419
  %v1695 = vpop.permute.xlu0 %1694
  %1696 = vset.pattern.permute.xlu0 0
  %1697 = vperm.xlu0 %1696, %v1420
  %v1698 = vpop.permute.xlu0 %1697
  %1699 = vset.pattern.permute.xlu0 0
  %1700 = vperm.xlu0 %1699, %v1421
  %v1701 = vpop.permute.xlu0 %1700
  %1702 = vset.pattern.permute.xlu0 0
  %1703 = vperm.xlu0 %1702, %v1422
  %v1704 = vpop.permute.xlu0 %1703
  %1705 = vset.pattern.permute.xlu0 0
  %1706 = vperm.xlu0 %1705, %v1423
  %v1707 = vpop.permute.xlu0 %1706
  %1708 = vset.pattern.permute.xlu0 0
  %1709 = vperm.xlu0 %1708, %v1424
  %v1710 = vpop.permute.xlu0 %1709
  %1711 = vset.pattern.permute.xlu0 0
  %1712 = vperm.xlu0 %1711, %v1425
  %v1713 = vpop.permute.xlu0 %1712
  %1714 = vset.pattern.permute.xlu0 0
  %1715 = vperm.xlu0 %1714, %v1426
  %v1716 = vpop.permute.xlu0 %1715
  %1717 = vset.pattern.permute.xlu0 0
  %1718 = vperm.xlu0 %1717, %v1427
  %v1719 = vpop.permute.xlu0 %1718
  %1720 = vset.pattern.permute.xlu0 0
  %1721 = vperm.xlu0 %1720, %v1428
  %v1722 = vpop.permute.xlu0 %1721
  %1723 = vset.pattern.permute.xlu0 0
  %1724 = vperm.xlu0 %1723, %v1429
  %v1725 = vpop.permute.xlu0 %1724
  %v1726 = vlaneseq
  %v1727 = vand.u32 %v1726, 127
  %v1728 = vperm.slane %v1512, %v1727
  %v1729 = vadd.s32 %v1727, 4294967288
  %v1730 = vperm.slane %v1515, %v1729
  %vm1731 = vcmask 130112
  %v1732 = vsel %vm1731, %v1730, %v1728
  %v1733 = vperm.slane %v1518, %v1727
  %v1734 = vperm.slane %v1521, %v1729
  %v1735 = vsel %vm1731, %v1734, %v1733
  %v1736 = vperm.slane %v1524, %v1727
  %v1737 = vperm.slane %v1527, %v1729
  %v1738 = vsel %vm1731, %v1737, %v1736
  %v1739 = vperm.slane %v1530, %v1727
  %v1740 = vperm.slane %v1533, %v1729
  %v1741 = vsel %vm1731, %v1740, %v1739
  %v1742 = vperm.slane %v1536, %v1727
  %v1743 = vperm.slane %v1539, %v1729
  %v1744 = vsel %vm1731, %v1743, %v1742
  %v1745 = vperm.slane %v1542, %v1727
  %v1746 = vperm.slane %v1545, %v1729
  %v1747 = vsel %vm1731, %v1746, %v1745
  %v1748 = vperm.slane %v1548, %v1727
  %v1749 = vperm.slane %v1551, %v1729
  %v1750 = vsel %vm1731, %v1749, %v1748
  %v1751 = vperm.slane %v1554, %v1727
  %v1752 = vperm.slane %v1557, %v1729
  %v1753 = vsel %vm1731, %v1752, %v1751
  %v1754 = vperm.slane %v1560, %v1727
  %v1755 = vperm.slane %v1563, %v1729
  %v1756 = vsel %vm1731, %v1755, %v1754
  %v1757 = vperm.slane %v1566, %v1727
  %v1758 = vperm.slane %v1569, %v1729
  %v1759 = vsel %vm1731, %v1758, %v1757
  %v1760 = vperm.slane %v1572, %v1727
  %v1761 = vperm.slane %v1575, %v1729
  %v1762 = vsel %vm1731, %v1761, %v1760
  %v1763 = vperm.slane %v1578, %v1727
  %v1764 = vperm.slane %v1581, %v1729
  %v1765 = vsel %vm1731, %v1764, %v1763
  %v1766 = vperm.slane %v1584, %v1727
  %v1767 = vperm.slane %v1587, %v1729
  %v1768 = vsel %vm1731, %v1767, %v1766
  %v1769 = vperm.slane %v1590, %v1727
  %v1770 = vperm.slane %v1593, %v1729
  %v1771 = vsel %vm1731, %v1770, %v1769
  %v1772 = vperm.slane %v1596, %v1727
  %v1773 = vperm.slane %v1599, %v1729
  %v1774 = vsel %vm1731, %v1773, %v1772
  %v1775 = vperm.slane %v1602, %v1727
  %v1776 = vperm.slane %v1605, %v1729
  %v1777 = vsel %vm1731, %v1776, %v1775
  %v1778 = vperm.slane %v1608, %v1727
  %v1779 = vperm.slane %v1611, %v1729
  %v1780 = vsel %vm1731, %v1779, %v1778
  %v1781 = vperm.slane %v1614, %v1727
  %v1782 = vperm.slane %v1617, %v1729
  %v1783 = vsel %vm1731, %v1782, %v1781
  %v1784 = vperm.slane %v1620, %v1727
  %v1785 = vperm.slane %v1623, %v1729
  %v1786 = vsel %vm1731, %v1785, %v1784
  %v1787 = vperm.slane %v1626, %v1727
  %v1788 = vperm.slane %v1629, %v1729
  %v1789 = vsel %vm1731, %v1788, %v1787
  %v1790 = vperm.slane %v1632, %v1727
  %v1791 = vperm.slane %v1635, %v1729
  %v1792 = vsel %vm1731, %v1791, %v1790
  %v1793 = vperm.slane %v1638, %v1727
  %v1794 = vperm.slane %v1641, %v1729
  %v1795 = vsel %vm1731, %v1794, %v1793
  %v1796 = vperm.slane %v1644, %v1727
  %v1797 = vperm.slane %v1647, %v1729
  %v1798 = vsel %vm1731, %v1797, %v1796
  %v1799 = vperm.slane %v1650, %v1727
  %v1800 = vperm.slane %v1653, %v1729
  %v1801 = vsel %vm1731, %v1800, %v1799
  %v1802 = vperm.slane %v1656, %v1727
  %v1803 = vperm.slane %v1659, %v1729
  %v1804 = vsel %vm1731, %v1803, %v1802
  %v1805 = vperm.slane %v1662, %v1727
  %v1806 = vperm.slane %v1665, %v1729
  %v1807 = vsel %vm1731, %v1806, %v1805
  %v1808 = vperm.slane %v1668, %v1727
  %v1809 = vperm.slane %v1671, %v1729
  %v1810 = vsel %vm1731, %v1809, %v1808
  %v1811 = vperm.slane %v1674, %v1727
  %v1812 = vperm.slane %v1677, %v1729
  %v1813 = vsel %vm1731, %v1812, %v1811
  %v1814 = vperm.slane %v1680, %v1727
  %v1815 = vperm.slane %v1683, %v1729
  %v1816 = vsel %vm1731, %v1815, %v1814
  %v1817 = vperm.slane %v1686, %v1727
  %v1818 = vperm.slane %v1689, %v1729
  %v1819 = vsel %vm1731, %v1818, %v1817
  %v1820 = vperm.slane %v1692, %v1727
  %v1821 = vperm.slane %v1695, %v1729
  %v1822 = vsel %vm1731, %v1821, %v1820
  %v1823 = vperm.slane %v1698, %v1727
  %v1824 = vperm.slane %v1701, %v1729
  %v1825 = vsel %vm1731, %v1824, %v1823
  %v1826 = vperm.slane %v1704, %v1727
  %v1827 = vperm.slane %v1707, %v1729
  %v1828 = vsel %vm1731, %v1827, %v1826
  %v1829 = vperm.slane %v1710, %v1727
  %v1830 = vperm.slane %v1713, %v1729
  %v1831 = vsel %vm1731, %v1830, %v1829
  %v1832 = vperm.slane %v1716, %v1727
  %v1833 = vperm.slane %v1719, %v1729
  %v1834 = vsel %vm1731, %v1833, %v1832
  %v1835 = vperm.slane %v1722, %v1727
  %v1836 = vperm.slane %v1725, %v1729
  %v1837 = vsel %vm1731, %v1836, %v1835
  %vm1838 = vcmask 1041409
  %v1839 = vsel %vm1838, %v1735, %v1732
  %vm1840 = vcmask 1042434
  %v1841 = vsel %vm1840, %v1738, %v1839
  %vm1842 = vcmask 1043459
  %v1843 = vsel %vm1842, %v1741, %v1841
  %vm1844 = vcmask 1044484
  %v1845 = vsel %vm1844, %v1744, %v1843
  %vm1846 = vcmask 1045509
  %v1847 = vsel %vm1846, %v1747, %v1845
  %vm1848 = vcmask 1046534
  %v1849 = vsel %vm1848, %v1750, %v1847
  %vm1850 = vcmask 1047559
  %v1851 = vsel %vm1850, %v1753, %v1849
  %v1852 = vsel %vm1838, %v1762, %v1759
  %v1853 = vsel %vm1840, %v1765, %v1852
  %v1854 = vsel %vm1842, %v1768, %v1853
  %v1855 = vsel %vm1844, %v1771, %v1854
  %v1856 = vsel %vm1846, %v1774, %v1855
  %v1857 = vsel %vm1848, %v1777, %v1856
  %v1858 = vsel %vm1850, %v1780, %v1857
  %v1859 = vsel %vm1838, %v1789, %v1786
  %v1860 = vsel %vm1840, %v1792, %v1859
  %v1861 = vsel %vm1842, %v1795, %v1860
  %v1862 = vsel %vm1844, %v1798, %v1861
  %v1863 = vsel %vm1846, %v1801, %v1862
  %v1864 = vsel %vm1848, %v1804, %v1863
  %v1865 = vsel %vm1850, %v1807, %v1864
  %v1866 = vsel %vm1838, %v1816, %v1813
  %v1867 = vsel %vm1840, %v1819, %v1866
  %v1868 = vsel %vm1842, %v1822, %v1867
  %v1869 = vsel %vm1844, %v1825, %v1868
  %v1870 = vsel %vm1846, %v1828, %v1869
  %v1871 = vsel %vm1848, %v1831, %v1870
  %v1872 = vsel %vm1850, %v1834, %v1871
  %v1881 = vsel %vm1436, %v1851, -100000.0
  %v1882 = vsel %vm1437, %v1756, -100000.0
  %v1883 = vsel %vm1436, %v1858, -100000.0
  %v1884 = vsel %vm1437, %v1783, -100000.0
  %v1885 = vsel %vm1436, %v1865, -100000.0
  %v1886 = vsel %vm1437, %v1810, -100000.0
  %v1887 = vsel %vm1436, %v1872, -100000.0
  %v1888 = vsel %vm1437, %v1837, -100000.0
  %vm1889 = vcmask 72704
  %v1890 = vsel %vm1889, %v1881, -inf
  %1891 = vmax.xlane.f32.xlu0 %v1890
  %v1892 = vpop.xlane.xlu0 %1891
  %vm1893 = vcmask 65536
  %v1894 = vsel %vm1893, %v1882, -inf
  %1895 = vmax.xlane.f32.xlu0 %v1894
  %v1896 = vpop.xlane.xlu0 %1895
  %v1897 = vsel %vm1889, %v1883, -inf
  %1898 = vmax.xlane.f32.xlu0 %v1897
  %v1899 = vpop.xlane.xlu0 %1898
  %v1900 = vsel %vm1893, %v1884, -inf
  %1901 = vmax.xlane.f32.xlu0 %v1900
  %v1902 = vpop.xlane.xlu0 %1901
  %v1903 = vsel %vm1889, %v1885, -inf
  %1904 = vmax.xlane.f32.xlu0 %v1903
  %v1905 = vpop.xlane.xlu0 %1904
  %v1906 = vsel %vm1893, %v1886, -inf
  %1907 = vmax.xlane.f32.xlu0 %v1906
  %v1908 = vpop.xlane.xlu0 %1907
  %v1909 = vsel %vm1889, %v1887, -inf
  %1910 = vmax.xlane.f32.xlu0 %v1909
  %v1911 = vpop.xlane.xlu0 %1910
  %v1912 = vsel %vm1893, %v1888, -inf
  %1913 = vmax.xlane.f32.xlu0 %v1912
  %v1914 = vpop.xlane.xlu0 %1913
  %v1915 = vsub.f32 %v1881, %v1892
  %v1916 = vsub.f32 %v1882, %v1896
  %v1917 = vsub.f32 %v1883, %v1899
  %v1918 = vsub.f32 %v1884, %v1902
  %v1919 = vsub.f32 %v1885, %v1905
  %v1920 = vsub.f32 %v1886, %v1908
  %v1921 = vsub.f32 %v1887, %v1911
  %v1922 = vsub.f32 %v1888, %v1914
  %v1923 = vmul.f32 %v1915, 1.442695
  %v1924 = vpow.pop %v1923
  %v1925 = vmul.f32 %v1916, 1.442695
  %v1926 = vpow.pop %v1925
  %v1927 = vmul.f32 %v1917, 1.442695
  %v1928 = vpow.pop %v1927
  %v1929 = vmul.f32 %v1918, 1.442695
  %v1930 = vpow.pop %v1929
  %v1931 = vmul.f32 %v1919, 1.442695
  %v1932 = vpow.pop %v1931
  %v1933 = vmul.f32 %v1920, 1.442695
  %v1934 = vpow.pop %v1933
  %v1935 = vmul.f32 %v1921, 1.442695
  %v1936 = vpow.pop %v1935
  %v1937 = vmul.f32 %v1922, 1.442695
  %v1938 = vpow.pop %v1937
  %v1939 = vsel %vm1889, %v1924, 0.0
  %1940 = vadd.xlane.f32.xlu0 %v1939
  %v1941 = vpop.xlane.xlu0 %1940
  %v1942 = vsel %vm1893, %v1926, 0.0
  %1943 = vadd.xlane.f32.xlu0 %v1942
  %v1944 = vpop.xlane.xlu0 %1943
  %v1945 = vsel %vm1889, %v1928, 0.0
  %1946 = vadd.xlane.f32.xlu0 %v1945
  %v1947 = vpop.xlane.xlu0 %1946
  %v1948 = vsel %vm1893, %v1930, 0.0
  %1949 = vadd.xlane.f32.xlu0 %v1948
  %v1950 = vpop.xlane.xlu0 %1949
  %v1951 = vsel %vm1889, %v1932, 0.0
  %1952 = vadd.xlane.f32.xlu0 %v1951
  %v1953 = vpop.xlane.xlu0 %1952
  %v1954 = vsel %vm1893, %v1934, 0.0
  %1955 = vadd.xlane.f32.xlu0 %v1954
  %v1956 = vpop.xlane.xlu0 %1955
  %v1957 = vsel %vm1889, %v1936, 0.0
  %1958 = vadd.xlane.f32.xlu0 %v1957
  %v1959 = vpop.xlane.xlu0 %1958
  %v1960 = vsel %vm1893, %v1938, 0.0
  %1961 = vadd.xlane.f32.xlu0 %v1960
  %v1962 = vpop.xlane.xlu0 %1961
  %v1963 = vrcp.pop %v1941
  %v1964 = vmul.f32 %v1941, %v1963
  %v1965 = vsub.f32 1.0, %v1964
  %v1966 = vmul.f32 %v1963, %v1965
  %v1967 = vadd.f32 %v1963, %v1966
  %vm1968 = vweird.f32 %v1941
  %vm1969 = vweird.f32 %v1963
  %vm1970 = vmor %vm1968, %vm1969
  %v1971 = vsel %vm1970, %v1963, %v1967
  %v1972 = vand.u32 2147483647, %v1941
  %vm1973 = vcmp.eq.f32.partialorder %v1972, 8.507059e+37
  %v1974 = vand.u32 %v1941, 2147483648
  %v1975 = vor.u32 1.1754944e-38, %v1974
  %v1976 = vsel %vm1973, %v1975, %v1971
  %v1977 = vmul.f32 %v1924, %v1976
  %v1978 = vrcp.pop %v1944
  %v1979 = vmul.f32 %v1944, %v1978
  %v1980 = vsub.f32 1.0, %v1979
  %v1981 = vmul.f32 %v1978, %v1980
  %v1982 = vadd.f32 %v1978, %v1981
  %vm1983 = vweird.f32 %v1944
  %vm1984 = vweird.f32 %v1978
  %vm1985 = vmor %vm1983, %vm1984
  %v1986 = vsel %vm1985, %v1978, %v1982
  %v1987 = vand.u32 2147483647, %v1944
  %vm1988 = vcmp.eq.f32.partialorder %v1987, 8.507059e+37
  %v1989 = vand.u32 %v1944, 2147483648
  %v1990 = vor.u32 1.1754944e-38, %v1989
  %v1991 = vsel %vm1988, %v1990, %v1986
  %v1992 = vmul.f32 %v1926, %v1991
  %v1993 = vrcp.pop %v1947
  %v1994 = vmul.f32 %v1947, %v1993
  %v1995 = vsub.f32 1.0, %v1994
  %v1996 = vmul.f32 %v1993, %v1995
  %v1997 = vadd.f32 %v1993, %v1996
  %vm1998 = vweird.f32 %v1947
  %vm1999 = vweird.f32 %v1993
  %vm2000 = vmor %vm1998, %vm1999
  %v2001 = vsel %vm2000, %v1993, %v1997
  %v2002 = vand.u32 2147483647, %v1947
  %vm2003 = vcmp.eq.f32.partialorder %v2002, 8.507059e+37
  %v2004 = vand.u32 %v1947, 2147483648
  %v2005 = vor.u32 1.1754944e-38, %v2004
  %v2006 = vsel %vm2003, %v2005, %v2001
  %v2007 = vmul.f32 %v1928, %v2006
  %v2008 = vrcp.pop %v1950
  %v2009 = vmul.f32 %v1950, %v2008
  %v2010 = vsub.f32 1.0, %v2009
  %v2011 = vmul.f32 %v2008, %v2010
  %v2012 = vadd.f32 %v2008, %v2011
  %vm2013 = vweird.f32 %v1950
  %vm2014 = vweird.f32 %v2008
  %vm2015 = vmor %vm2013, %vm2014
  %v2016 = vsel %vm2015, %v2008, %v2012
  %v2017 = vand.u32 2147483647, %v1950
  %vm2018 = vcmp.eq.f32.partialorder %v2017, 8.507059e+37
  %v2019 = vand.u32 %v1950, 2147483648
  %v2020 = vor.u32 1.1754944e-38, %v2019
  %v2021 = vsel %vm2018, %v2020, %v2016
  %v2022 = vmul.f32 %v1930, %v2021
  %v2023 = vrcp.pop %v1953
  %v2024 = vmul.f32 %v1953, %v2023
  %v2025 = vsub.f32 1.0, %v2024
  %v2026 = vmul.f32 %v2023, %v2025
  %v2027 = vadd.f32 %v2023, %v2026
  %vm2028 = vweird.f32 %v1953
  %vm2029 = vweird.f32 %v2023
  %vm2030 = vmor %vm2028, %vm2029
  %v2031 = vsel %vm2030, %v2023, %v2027
  %v2032 = vand.u32 2147483647, %v1953
  %vm2033 = vcmp.eq.f32.partialorder %v2032, 8.507059e+37
  %v2034 = vand.u32 %v1953, 2147483648
  %v2035 = vor.u32 1.1754944e-38, %v2034
  %v2036 = vsel %vm2033, %v2035, %v2031
  %v2037 = vmul.f32 %v1932, %v2036
  %v2038 = vrcp.pop %v1956
  %v2039 = vmul.f32 %v1956, %v2038
  %v2040 = vsub.f32 1.0, %v2039
  %v2041 = vmul.f32 %v2038, %v2040
  %v2042 = vadd.f32 %v2038, %v2041
  %vm2043 = vweird.f32 %v1956
  %vm2044 = vweird.f32 %v2038
  %vm2045 = vmor %vm2043, %vm2044
  %v2046 = vsel %vm2045, %v2038, %v2042
  %v2047 = vand.u32 2147483647, %v1956
  %vm2048 = vcmp.eq.f32.partialorder %v2047, 8.507059e+37
  %v2049 = vand.u32 %v1956, 2147483648
  %v2050 = vor.u32 1.1754944e-38, %v2049
  %v2051 = vsel %vm2048, %v2050, %v2046
  %v2052 = vmul.f32 %v1934, %v2051
  %v2053 = vrcp.pop %v1959
  %v2054 = vmul.f32 %v1959, %v2053
  %v2055 = vsub.f32 1.0, %v2054
  %v2056 = vmul.f32 %v2053, %v2055
  %v2057 = vadd.f32 %v2053, %v2056
  %vm2058 = vweird.f32 %v1959
  %vm2059 = vweird.f32 %v2053
  %vm2060 = vmor %vm2058, %vm2059
  %v2061 = vsel %vm2060, %v2053, %v2057
  %v2062 = vand.u32 2147483647, %v1959
  %vm2063 = vcmp.eq.f32.partialorder %v2062, 8.507059e+37
  %v2064 = vand.u32 %v1959, 2147483648
  %v2065 = vor.u32 1.1754944e-38, %v2064
  %v2066 = vsel %vm2063, %v2065, %v2061
  %v2067 = vmul.f32 %v1936, %v2066
  %v2068 = vrcp.pop %v1962
  %v2069 = vmul.f32 %v1962, %v2068
  %v2070 = vsub.f32 1.0, %v2069
  %v2071 = vmul.f32 %v2068, %v2070
  %v2072 = vadd.f32 %v2068, %v2071
  %vm2073 = vweird.f32 %v1962
  %vm2074 = vweird.f32 %v2068
  %vm2075 = vmor %vm2073, %vm2074
  %v2076 = vsel %vm2075, %v2068, %v2072
  %v2077 = vand.u32 2147483647, %v1962
  %vm2078 = vcmp.eq.f32.partialorder %v2077, 8.507059e+37
  %v2079 = vand.u32 %v1962, 2147483648
  %v2080 = vor.u32 1.1754944e-38, %v2079
  %v2081 = vsel %vm2078, %v2080, %v2076
  %v2082 = vmul.f32 %v1938, %v2081
  %v2083 = vperm.slane %v1977, 0
  %v2084 = vlaneseq
  %v2085 = vshrl.u32 %v2084, 7
  %2087 = vset.pattern.permute.xlu0 %v2085
  %2088 = vperm.xlu0 %2087, %v2083
  %v2089 = vpop.permute.xlu0 %2088
  %v2090 = vlaneseq
  %v2091 = vshrl.u32 %v2090, 7
  %v2092 = vadd.s32 %v2091, 8
  %2093 = vset.pattern.permute.xlu0 %v2092
  %2094 = vperm.xlu0 %2093, %v2083
  %v2095 = vpop.permute.xlu0 %2094
  %v2096 = vperm.slane %v1977, 1
  %v2097 = vlaneseq
  %v2098 = vshrl.u32 %v2097, 7
  %2100 = vset.pattern.permute.xlu0 %v2098
  %2101 = vperm.xlu0 %2100, %v2096
  %v2102 = vpop.permute.xlu0 %2101
  %v2103 = vlaneseq
  %v2104 = vshrl.u32 %v2103, 7
  %v2105 = vadd.s32 %v2104, 8
  %2106 = vset.pattern.permute.xlu0 %v2105
  %2107 = vperm.xlu0 %2106, %v2096
  %v2108 = vpop.permute.xlu0 %2107
  %v2109 = vperm.slane %v1977, 2
  %v2110 = vlaneseq
  %v2111 = vshrl.u32 %v2110, 7
  %2113 = vset.pattern.permute.xlu0 %v2111
  %2114 = vperm.xlu0 %2113, %v2109
  %v2115 = vpop.permute.xlu0 %2114
  %v2116 = vlaneseq
  %v2117 = vshrl.u32 %v2116, 7
  %v2118 = vadd.s32 %v2117, 8
  %2119 = vset.pattern.permute.xlu0 %v2118
  %2120 = vperm.xlu0 %2119, %v2109
  %v2121 = vpop.permute.xlu0 %2120
  %v2122 = vperm.slane %v1977, 3
  %v2123 = vlaneseq
  %v2124 = vshrl.u32 %v2123, 7
  %2126 = vset.pattern.permute.xlu0 %v2124
  %2127 = vperm.xlu0 %2126, %v2122
  %v2128 = vpop.permute.xlu0 %2127
  %v2129 = vlaneseq
  %v2130 = vshrl.u32 %v2129, 7
  %v2131 = vadd.s32 %v2130, 8
  %2132 = vset.pattern.permute.xlu0 %v2131
  %2133 = vperm.xlu0 %2132, %v2122
  %v2134 = vpop.permute.xlu0 %2133
  %v2135 = vperm.slane %v1977, 4
  %v2136 = vlaneseq
  %v2137 = vshrl.u32 %v2136, 7
  %2139 = vset.pattern.permute.xlu0 %v2137
  %2140 = vperm.xlu0 %2139, %v2135
  %v2141 = vpop.permute.xlu0 %2140
  %v2142 = vlaneseq
  %v2143 = vshrl.u32 %v2142, 7
  %v2144 = vadd.s32 %v2143, 8
  %2145 = vset.pattern.permute.xlu0 %v2144
  %2146 = vperm.xlu0 %2145, %v2135
  %v2147 = vpop.permute.xlu0 %2146
  %v2148 = vperm.slane %v1977, 5
  %v2149 = vlaneseq
  %v2150 = vshrl.u32 %v2149, 7
  %2152 = vset.pattern.permute.xlu0 %v2150
  %2153 = vperm.xlu0 %2152, %v2148
  %v2154 = vpop.permute.xlu0 %2153
  %v2155 = vlaneseq
  %v2156 = vshrl.u32 %v2155, 7
  %v2157 = vadd.s32 %v2156, 8
  %2158 = vset.pattern.permute.xlu0 %v2157
  %2159 = vperm.xlu0 %2158, %v2148
  %v2160 = vpop.permute.xlu0 %2159
  %v2161 = vperm.slane %v1977, 6
  %v2162 = vlaneseq
  %v2163 = vshrl.u32 %v2162, 7
  %2165 = vset.pattern.permute.xlu0 %v2163
  %2166 = vperm.xlu0 %2165, %v2161
  %v2167 = vpop.permute.xlu0 %2166
  %v2168 = vlaneseq
  %v2169 = vshrl.u32 %v2168, 7
  %v2170 = vadd.s32 %v2169, 8
  %2171 = vset.pattern.permute.xlu0 %v2170
  %2172 = vperm.xlu0 %2171, %v2161
  %v2173 = vpop.permute.xlu0 %2172
  %v2174 = vperm.slane %v1977, 7
  %v2175 = vlaneseq
  %v2176 = vshrl.u32 %v2175, 7
  %2178 = vset.pattern.permute.xlu0 %v2176
  %2179 = vperm.xlu0 %2178, %v2174
  %v2180 = vpop.permute.xlu0 %2179
  %v2181 = vlaneseq
  %v2182 = vshrl.u32 %v2181, 7
  %v2183 = vadd.s32 %v2182, 8
  %2184 = vset.pattern.permute.xlu0 %v2183
  %2185 = vperm.xlu0 %2184, %v2174
  %v2186 = vpop.permute.xlu0 %2185
  %v2187 = vperm.slane %v1992, 0
  %v2188 = vlaneseq
  %v2189 = vshrl.u32 %v2188, 7
  %2191 = vset.pattern.permute.xlu0 %v2189
  %2192 = vperm.xlu0 %2191, %v2187
  %v2193 = vpop.permute.xlu0 %2192
  %v2194 = vlaneseq
  %v2195 = vshrl.u32 %v2194, 7
  %v2196 = vadd.s32 %v2195, 8
  %2197 = vset.pattern.permute.xlu0 %v2196
  %2198 = vperm.xlu0 %2197, %v2187
  %v2199 = vpop.permute.xlu0 %2198
  %v2200 = vperm.slane %v2007, 0
  %v2201 = vlaneseq
  %v2202 = vshrl.u32 %v2201, 7
  %2204 = vset.pattern.permute.xlu0 %v2202
  %2205 = vperm.xlu0 %2204, %v2200
  %v2206 = vpop.permute.xlu0 %2205
  %v2207 = vlaneseq
  %v2208 = vshrl.u32 %v2207, 7
  %v2209 = vadd.s32 %v2208, 8
  %2210 = vset.pattern.permute.xlu0 %v2209
  %2211 = vperm.xlu0 %2210, %v2200
  %v2212 = vpop.permute.xlu0 %2211
  %v2213 = vperm.slane %v2007, 1
  %v2214 = vlaneseq
  %v2215 = vshrl.u32 %v2214, 7
  %2217 = vset.pattern.permute.xlu0 %v2215
  %2218 = vperm.xlu0 %2217, %v2213
  %v2219 = vpop.permute.xlu0 %2218
  %v2220 = vlaneseq
  %v2221 = vshrl.u32 %v2220, 7
  %v2222 = vadd.s32 %v2221, 8
  %2223 = vset.pattern.permute.xlu0 %v2222
  %2224 = vperm.xlu0 %2223, %v2213
  %v2225 = vpop.permute.xlu0 %2224
  %v2226 = vperm.slane %v2007, 2
  %v2227 = vlaneseq
  %v2228 = vshrl.u32 %v2227, 7
  %2230 = vset.pattern.permute.xlu0 %v2228
  %2231 = vperm.xlu0 %2230, %v2226
  %v2232 = vpop.permute.xlu0 %2231
  %v2233 = vlaneseq
  %v2234 = vshrl.u32 %v2233, 7
  %v2235 = vadd.s32 %v2234, 8
  %2236 = vset.pattern.permute.xlu0 %v2235
  %2237 = vperm.xlu0 %2236, %v2226
  %v2238 = vpop.permute.xlu0 %2237
  %v2239 = vperm.slane %v2007, 3
  %v2240 = vlaneseq
  %v2241 = vshrl.u32 %v2240, 7
  %2243 = vset.pattern.permute.xlu0 %v2241
  %2244 = vperm.xlu0 %2243, %v2239
  %v2245 = vpop.permute.xlu0 %2244
  %v2246 = vlaneseq
  %v2247 = vshrl.u32 %v2246, 7
  %v2248 = vadd.s32 %v2247, 8
  %2249 = vset.pattern.permute.xlu0 %v2248
  %2250 = vperm.xlu0 %2249, %v2239
  %v2251 = vpop.permute.xlu0 %2250
  %v2252 = vperm.slane %v2007, 4
  %v2253 = vlaneseq
  %v2254 = vshrl.u32 %v2253, 7
  %2256 = vset.pattern.permute.xlu0 %v2254
  %2257 = vperm.xlu0 %2256, %v2252
  %v2258 = vpop.permute.xlu0 %2257
  %v2259 = vlaneseq
  %v2260 = vshrl.u32 %v2259, 7
  %v2261 = vadd.s32 %v2260, 8
  %2262 = vset.pattern.permute.xlu0 %v2261
  %2263 = vperm.xlu0 %2262, %v2252
  %v2264 = vpop.permute.xlu0 %2263
  %v2265 = vperm.slane %v2007, 5
  %v2266 = vlaneseq
  %v2267 = vshrl.u32 %v2266, 7
  %2269 = vset.pattern.permute.xlu0 %v2267
  %2270 = vperm.xlu0 %2269, %v2265
  %v2271 = vpop.permute.xlu0 %2270
  %v2272 = vlaneseq
  %v2273 = vshrl.u32 %v2272, 7
  %v2274 = vadd.s32 %v2273, 8
  %2275 = vset.pattern.permute.xlu0 %v2274
  %2276 = vperm.xlu0 %2275, %v2265
  %v2277 = vpop.permute.xlu0 %2276
  %v2278 = vperm.slane %v2007, 6
  %v2279 = vlaneseq
  %v2280 = vshrl.u32 %v2279, 7
  %2282 = vset.pattern.permute.xlu0 %v2280
  %2283 = vperm.xlu0 %2282, %v2278
  %v2284 = vpop.permute.xlu0 %2283
  %v2285 = vlaneseq
  %v2286 = vshrl.u32 %v2285, 7
  %v2287 = vadd.s32 %v2286, 8
  %2288 = vset.pattern.permute.xlu0 %v2287
  %2289 = vperm.xlu0 %2288, %v2278
  %v2290 = vpop.permute.xlu0 %2289
  %v2291 = vperm.slane %v2007, 7
  %v2292 = vlaneseq
  %v2293 = vshrl.u32 %v2292, 7
  %2295 = vset.pattern.permute.xlu0 %v2293
  %2296 = vperm.xlu0 %2295, %v2291
  %v2297 = vpop.permute.xlu0 %2296
  %v2298 = vlaneseq
  %v2299 = vshrl.u32 %v2298, 7
  %v2300 = vadd.s32 %v2299, 8
  %2301 = vset.pattern.permute.xlu0 %v2300
  %2302 = vperm.xlu0 %2301, %v2291
  %v2303 = vpop.permute.xlu0 %2302
  %v2304 = vperm.slane %v2022, 0
  %v2305 = vlaneseq
  %v2306 = vshrl.u32 %v2305, 7
  %2308 = vset.pattern.permute.xlu0 %v2306
  %2309 = vperm.xlu0 %2308, %v2304
  %v2310 = vpop.permute.xlu0 %2309
  %v2311 = vlaneseq
  %v2312 = vshrl.u32 %v2311, 7
  %v2313 = vadd.s32 %v2312, 8
  %2314 = vset.pattern.permute.xlu0 %v2313
  %2315 = vperm.xlu0 %2314, %v2304
  %v2316 = vpop.permute.xlu0 %2315
  %v2317 = vperm.slane %v2037, 0
  %v2318 = vlaneseq
  %v2319 = vshrl.u32 %v2318, 7
  %2321 = vset.pattern.permute.xlu0 %v2319
  %2322 = vperm.xlu0 %2321, %v2317
  %v2323 = vpop.permute.xlu0 %2322
  %v2324 = vlaneseq
  %v2325 = vshrl.u32 %v2324, 7
  %v2326 = vadd.s32 %v2325, 8
  %2327 = vset.pattern.permute.xlu0 %v2326
  %2328 = vperm.xlu0 %2327, %v2317
  %v2329 = vpop.permute.xlu0 %2328
  %v2330 = vperm.slane %v2037, 1
  %v2331 = vlaneseq
  %v2332 = vshrl.u32 %v2331, 7
  %2334 = vset.pattern.permute.xlu0 %v2332
  %2335 = vperm.xlu0 %2334, %v2330
  %v2336 = vpop.permute.xlu0 %2335
  %v2337 = vlaneseq
  %v2338 = vshrl.u32 %v2337, 7
  %v2339 = vadd.s32 %v2338, 8
  %2340 = vset.pattern.permute.xlu0 %v2339
  %2341 = vperm.xlu0 %2340, %v2330
  %v2342 = vpop.permute.xlu0 %2341
  %v2343 = vperm.slane %v2037, 2
  %v2344 = vlaneseq
  %v2345 = vshrl.u32 %v2344, 7
  %2347 = vset.pattern.permute.xlu0 %v2345
  %2348 = vperm.xlu0 %2347, %v2343
  %v2349 = vpop.permute.xlu0 %2348
  %v2350 = vlaneseq
  %v2351 = vshrl.u32 %v2350, 7
  %v2352 = vadd.s32 %v2351, 8
  %2353 = vset.pattern.permute.xlu0 %v2352
  %2354 = vperm.xlu0 %2353, %v2343
  %v2355 = vpop.permute.xlu0 %2354
  %v2356 = vperm.slane %v2037, 3
  %v2357 = vlaneseq
  %v2358 = vshrl.u32 %v2357, 7
  %2360 = vset.pattern.permute.xlu0 %v2358
  %2361 = vperm.xlu0 %2360, %v2356
  %v2362 = vpop.permute.xlu0 %2361
  %v2363 = vlaneseq
  %v2364 = vshrl.u32 %v2363, 7
  %v2365 = vadd.s32 %v2364, 8
  %2366 = vset.pattern.permute.xlu0 %v2365
  %2367 = vperm.xlu0 %2366, %v2356
  %v2368 = vpop.permute.xlu0 %2367
  %v2369 = vperm.slane %v2037, 4
  %v2370 = vlaneseq
  %v2371 = vshrl.u32 %v2370, 7
  %2373 = vset.pattern.permute.xlu0 %v2371
  %2374 = vperm.xlu0 %2373, %v2369
  %v2375 = vpop.permute.xlu0 %2374
  %v2376 = vlaneseq
  %v2377 = vshrl.u32 %v2376, 7
  %v2378 = vadd.s32 %v2377, 8
  %2379 = vset.pattern.permute.xlu0 %v2378
  %2380 = vperm.xlu0 %2379, %v2369
  %v2381 = vpop.permute.xlu0 %2380
  %v2382 = vperm.slane %v2037, 5
  %v2383 = vlaneseq
  %v2384 = vshrl.u32 %v2383, 7
  %2386 = vset.pattern.permute.xlu0 %v2384
  %2387 = vperm.xlu0 %2386, %v2382
  %v2388 = vpop.permute.xlu0 %2387
  %v2389 = vlaneseq
  %v2390 = vshrl.u32 %v2389, 7
  %v2391 = vadd.s32 %v2390, 8
  %2392 = vset.pattern.permute.xlu0 %v2391
  %2393 = vperm.xlu0 %2392, %v2382
  %v2394 = vpop.permute.xlu0 %2393
  %v2395 = vperm.slane %v2037, 6
  %v2396 = vlaneseq
  %v2397 = vshrl.u32 %v2396, 7
  %2399 = vset.pattern.permute.xlu0 %v2397
  %2400 = vperm.xlu0 %2399, %v2395
  %v2401 = vpop.permute.xlu0 %2400
  %v2402 = vlaneseq
  %v2403 = vshrl.u32 %v2402, 7
  %v2404 = vadd.s32 %v2403, 8
  %2405 = vset.pattern.permute.xlu0 %v2404
  %2406 = vperm.xlu0 %2405, %v2395
  %v2407 = vpop.permute.xlu0 %2406
  %v2408 = vperm.slane %v2037, 7
  %v2409 = vlaneseq
  %v2410 = vshrl.u32 %v2409, 7
  %2412 = vset.pattern.permute.xlu0 %v2410
  %2413 = vperm.xlu0 %2412, %v2408
  %v2414 = vpop.permute.xlu0 %2413
  %v2415 = vlaneseq
  %v2416 = vshrl.u32 %v2415, 7
  %v2417 = vadd.s32 %v2416, 8
  %2418 = vset.pattern.permute.xlu0 %v2417
  %2419 = vperm.xlu0 %2418, %v2408
  %v2420 = vpop.permute.xlu0 %2419
  %v2421 = vperm.slane %v2052, 0
  %v2422 = vlaneseq
  %v2423 = vshrl.u32 %v2422, 7
  %2425 = vset.pattern.permute.xlu0 %v2423
  %2426 = vperm.xlu0 %2425, %v2421
  %v2427 = vpop.permute.xlu0 %2426
  %v2428 = vlaneseq
  %v2429 = vshrl.u32 %v2428, 7
  %v2430 = vadd.s32 %v2429, 8
  %2431 = vset.pattern.permute.xlu0 %v2430
  %2432 = vperm.xlu0 %2431, %v2421
  %v2433 = vpop.permute.xlu0 %2432
  %v2434 = vperm.slane %v2067, 0
  %v2435 = vlaneseq
  %v2436 = vshrl.u32 %v2435, 7
  %2438 = vset.pattern.permute.xlu0 %v2436
  %2439 = vperm.xlu0 %2438, %v2434
  %v2440 = vpop.permute.xlu0 %2439
  %v2441 = vlaneseq
  %v2442 = vshrl.u32 %v2441, 7
  %v2443 = vadd.s32 %v2442, 8
  %2444 = vset.pattern.permute.xlu0 %v2443
  %2445 = vperm.xlu0 %2444, %v2434
  %v2446 = vpop.permute.xlu0 %2445
  %v2447 = vperm.slane %v2067, 1
  %v2448 = vlaneseq
  %v2449 = vshrl.u32 %v2448, 7
  %2451 = vset.pattern.permute.xlu0 %v2449
  %2452 = vperm.xlu0 %2451, %v2447
  %v2453 = vpop.permute.xlu0 %2452
  %v2454 = vlaneseq
  %v2455 = vshrl.u32 %v2454, 7
  %v2456 = vadd.s32 %v2455, 8
  %2457 = vset.pattern.permute.xlu0 %v2456
  %2458 = vperm.xlu0 %2457, %v2447
  %v2459 = vpop.permute.xlu0 %2458
  %v2460 = vperm.slane %v2067, 2
  %v2461 = vlaneseq
  %v2462 = vshrl.u32 %v2461, 7
  %2464 = vset.pattern.permute.xlu0 %v2462
  %2465 = vperm.xlu0 %2464, %v2460
  %v2466 = vpop.permute.xlu0 %2465
  %v2467 = vlaneseq
  %v2468 = vshrl.u32 %v2467, 7
  %v2469 = vadd.s32 %v2468, 8
  %2470 = vset.pattern.permute.xlu0 %v2469
  %2471 = vperm.xlu0 %2470, %v2460
  %v2472 = vpop.permute.xlu0 %2471
  %v2473 = vperm.slane %v2067, 3
  %v2474 = vlaneseq
  %v2475 = vshrl.u32 %v2474, 7
  %2477 = vset.pattern.permute.xlu0 %v2475
  %2478 = vperm.xlu0 %2477, %v2473
  %v2479 = vpop.permute.xlu0 %2478
  %v2480 = vlaneseq
  %v2481 = vshrl.u32 %v2480, 7
  %v2482 = vadd.s32 %v2481, 8
  %2483 = vset.pattern.permute.xlu0 %v2482
  %2484 = vperm.xlu0 %2483, %v2473
  %v2485 = vpop.permute.xlu0 %2484
  %v2486 = vperm.slane %v2067, 4
  %v2487 = vlaneseq
  %v2488 = vshrl.u32 %v2487, 7
  %2490 = vset.pattern.permute.xlu0 %v2488
  %2491 = vperm.xlu0 %2490, %v2486
  %v2492 = vpop.permute.xlu0 %2491
  %v2493 = vlaneseq
  %v2494 = vshrl.u32 %v2493, 7
  %v2495 = vadd.s32 %v2494, 8
  %2496 = vset.pattern.permute.xlu0 %v2495
  %2497 = vperm.xlu0 %2496, %v2486
  %v2498 = vpop.permute.xlu0 %2497
  %v2499 = vperm.slane %v2067, 5
  %v2500 = vlaneseq
  %v2501 = vshrl.u32 %v2500, 7
  %2503 = vset.pattern.permute.xlu0 %v2501
  %2504 = vperm.xlu0 %2503, %v2499
  %v2505 = vpop.permute.xlu0 %2504
  %v2506 = vlaneseq
  %v2507 = vshrl.u32 %v2506, 7
  %v2508 = vadd.s32 %v2507, 8
  %2509 = vset.pattern.permute.xlu0 %v2508
  %2510 = vperm.xlu0 %2509, %v2499
  %v2511 = vpop.permute.xlu0 %2510
  %v2512 = vperm.slane %v2067, 6
  %v2513 = vlaneseq
  %v2514 = vshrl.u32 %v2513, 7
  %2516 = vset.pattern.permute.xlu0 %v2514
  %2517 = vperm.xlu0 %2516, %v2512
  %v2518 = vpop.permute.xlu0 %2517
  %v2519 = vlaneseq
  %v2520 = vshrl.u32 %v2519, 7
  %v2521 = vadd.s32 %v2520, 8
  %2522 = vset.pattern.permute.xlu0 %v2521
  %2523 = vperm.xlu0 %2522, %v2512
  %v2524 = vpop.permute.xlu0 %2523
  %v2525 = vperm.slane %v2067, 7
  %v2526 = vlaneseq
  %v2527 = vshrl.u32 %v2526, 7
  %2529 = vset.pattern.permute.xlu0 %v2527
  %2530 = vperm.xlu0 %2529, %v2525
  %v2531 = vpop.permute.xlu0 %2530
  %v2532 = vlaneseq
  %v2533 = vshrl.u32 %v2532, 7
  %v2534 = vadd.s32 %v2533, 8
  %2535 = vset.pattern.permute.xlu0 %v2534
  %2536 = vperm.xlu0 %2535, %v2525
  %v2537 = vpop.permute.xlu0 %2536
  %v2538 = vperm.slane %v2082, 0
  %v2539 = vlaneseq
  %v2540 = vshrl.u32 %v2539, 7
  %2542 = vset.pattern.permute.xlu0 %v2540
  %2543 = vperm.xlu0 %2542, %v2538
  %v2544 = vpop.permute.xlu0 %2543
  %v2545 = vlaneseq
  %v2546 = vshrl.u32 %v2545, 7
  %v2547 = vadd.s32 %v2546, 8
  %2548 = vset.pattern.permute.xlu0 %v2547
  %2549 = vperm.xlu0 %2548, %v2538
  %v2550 = vpop.permute.xlu0 %2549
  %v2551 = vsel %vm960, %v2089, %v2206
  %v2552 = vsel %vm960, %v2095, %v2212
  %v2553 = vsel %vm960, %v2102, %v2219
  %v2554 = vsel %vm960, %v2108, %v2225
  %v2555 = vsel %vm960, %v2115, %v2232
  %v2556 = vsel %vm960, %v2121, %v2238
  %v2557 = vsel %vm960, %v2128, %v2245
  %v2558 = vsel %vm960, %v2134, %v2251
  %v2559 = vsel %vm960, %v2141, %v2258
  %v2560 = vsel %vm960, %v2147, %v2264
  %v2561 = vsel %vm960, %v2154, %v2271
  %v2562 = vsel %vm960, %v2160, %v2277
  %v2563 = vsel %vm960, %v2167, %v2284
  %v2564 = vsel %vm960, %v2173, %v2290
  %v2565 = vsel %vm960, %v2180, %v2297
  %v2566 = vsel %vm960, %v2186, %v2303
  %v2567 = vsel %vm960, %v2193, %v2310
  %v2568 = vsel %vm960, %v2199, %v2316
  %vm2569 = vcmask 130048
  %v2570 = vsel %vm2569, %v2551, %v2323
  %v2571 = vsel %vm2569, %v2552, %v2329
  %v2572 = vsel %vm2569, %v2553, %v2336
  %v2573 = vsel %vm2569, %v2554, %v2342
  %v2574 = vsel %vm2569, %v2555, %v2349
  %v2575 = vsel %vm2569, %v2556, %v2355
  %v2576 = vsel %vm2569, %v2557, %v2362
  %v2577 = vsel %vm2569, %v2558, %v2368
  %v2578 = vsel %vm2569, %v2559, %v2375
  %v2579 = vsel %vm2569, %v2560, %v2381
  %v2580 = vsel %vm2569, %v2561, %v2388
  %v2581 = vsel %vm2569, %v2562, %v2394
  %v2582 = vsel %vm2569, %v2563, %v2401
  %v2583 = vsel %vm2569, %v2564, %v2407
  %v2584 = vsel %vm2569, %v2565, %v2414
  %v2585 = vsel %vm2569, %v2566, %v2420
  %v2586 = vsel %vm2569, %v2567, %v2427
  %v2587 = vsel %vm2569, %v2568, %v2433
  %vm2588 = vcmask 195584
  %v2589 = vsel %vm2588, %v2570, %v2440
  %v2590 = vsel %vm2588, %v2571, %v2446
  %v2591 = vsel %vm2588, %v2572, %v2453
  %v2592 = vsel %vm2588, %v2573, %v2459
  %v2593 = vsel %vm2588, %v2574, %v2466
  %v2594 = vsel %vm2588, %v2575, %v2472
  %v2595 = vsel %vm2588, %v2576, %v2479
  %v2596 = vsel %vm2588, %v2577, %v2485
  %v2597 = vsel %vm2588, %v2578, %v2492
  %v2598 = vsel %vm2588, %v2579, %v2498
  %v2599 = vsel %vm2588, %v2580, %v2505
  %v2600 = vsel %vm2588, %v2581, %v2511
  %v2601 = vsel %vm2588, %v2582, %v2518
  %v2602 = vsel %vm2588, %v2583, %v2524
  %v2603 = vsel %vm2588, %v2584, %v2531
  %v2604 = vsel %vm2588, %v2585, %v2537
  %v2605 = vsel %vm2588, %v2586, %v2544
  %v2606 = vsel %vm2588, %v2587, %v2550
  %v2607 = vld [vmem:[%s5] sm:$0xff]
  %v2608 = vld [vmem:[%s5 + $0x8] sm:$0x1]
  %v2609 = vld [vmem:[%s5 + $0x10] sm:$0xff]
  %v2610 = vld [vmem:[%s5 + $0x18] sm:$0x1]
  %v2611 = vld [vmem:[%s5 + $0x20] sm:$0xff]
  %v2612 = vld [vmem:[%s5 + $0x28] sm:$0x1]
  %v2613 = vld [vmem:[%s5 + $0x30] sm:$0xff]
  %v2614 = vld [vmem:[%s5 + $0x38] sm:$0x1]
  %v2615 = vld [vmem:[%s5 + $0x40] sm:$0xff]
  %v2616 = vld [vmem:[%s5 + $0x48] sm:$0x1]
  %v2617 = vld [vmem:[%s5 + $0x50] sm:$0xff]
  %v2618 = vld [vmem:[%s5 + $0x58] sm:$0x1]
  %v2619 = vld [vmem:[%s5 + $0x60] sm:$0xff]
  %v2620 = vld [vmem:[%s5 + $0x68] sm:$0x1]
  %v2621 = vld [vmem:[%s5 + $0x70] sm:$0xff]
  %v2622 = vld [vmem:[%s5 + $0x78] sm:$0x1]
  %v2623 = vld [vmem:[%s5 + $0x80] sm:$0xff]
  %v2624 = vld [vmem:[%s5 + $0x88] sm:$0x1]
  %v2625 = vadd.f32 %v828, %v2607
  %v2626 = vadd.f32 %v832, %v2608
  %v2627 = vadd.f32 %v828, %v2609
  %v2628 = vadd.f32 %v832, %v2610
  %v2629 = vadd.f32 %v828, %v2611
  %v2630 = vadd.f32 %v832, %v2612
  %v2631 = vadd.f32 %v828, %v2613
  %v2632 = vadd.f32 %v832, %v2614
  %v2633 = vadd.f32 %v828, %v2615
  %v2634 = vadd.f32 %v832, %v2616
  %v2635 = vadd.f32 %v828, %v2617
  %v2636 = vadd.f32 %v832, %v2618
  %v2637 = vadd.f32 %v828, %v2619
  %v2638 = vadd.f32 %v832, %v2620
  %v2639 = vadd.f32 %v828, %v2621
  %v2640 = vadd.f32 %v832, %v2622
  %v2641 = vadd.f32 %v828, %v2623
  %v2642 = vadd.f32 %v832, %v2624
  %v2643 = vmul.f32 %v2589, %v2625
  %v2644 = vmul.f32 %v2590, %v2626
  %v2645 = vmul.f32 %v2591, %v2627
  %v2646 = vmul.f32 %v2592, %v2628
  %v2647 = vmul.f32 %v2593, %v2629
  %v2648 = vmul.f32 %v2594, %v2630
  %v2649 = vmul.f32 %v2595, %v2631
  %v2650 = vmul.f32 %v2596, %v2632
  %v2651 = vmul.f32 %v2597, %v2633
  %v2652 = vmul.f32 %v2598, %v2634
  %v2653 = vmul.f32 %v2599, %v2635
  %v2654 = vmul.f32 %v2600, %v2636
  %v2655 = vmul.f32 %v2601, %v2637
  %v2656 = vmul.f32 %v2602, %v2638
  %v2657 = vmul.f32 %v2603, %v2639
  %v2658 = vmul.f32 %v2604, %v2640
  %v2659 = vmul.f32 %v2605, %v2641
  %v2660 = vmul.f32 %v2606, %v2642
  %v2661 = vsel %vm51, %v2643, 0.0
  %vm2662 = vcmask 253952
  %v2663 = vsel %vm2662, %v2644, 0.0
  %v2664 = vadd.f32 %v2661, %v2663
  %v2665 = vrot.slane %v2664, 4
  %v2666 = vadd.f32 %v2664, %v2665
  %v2667 = vrot.slane %v2666, 2
  %v2668 = vadd.f32 %v2666, %v2667
  %v2669 = vrot.slane %v2668, 1
  %v2670 = vadd.f32 %v2668, %v2669
  %v2671 = vsel %vm51, %v2645, 0.0
  %v2672 = vsel %vm2662, %v2646, 0.0
  %v2673 = vadd.f32 %v2671, %v2672
  %v2674 = vrot.slane %v2673, 4
  %v2675 = vadd.f32 %v2673, %v2674
  %v2676 = vrot.slane %v2675, 2
  %v2677 = vadd.f32 %v2675, %v2676
  %v2678 = vrot.slane %v2677, 1
  %v2679 = vadd.f32 %v2677, %v2678
  %v2680 = vsel %vm51, %v2647, 0.0
  %v2681 = vsel %vm2662, %v2648, 0.0
  %v2682 = vadd.f32 %v2680, %v2681
  %v2683 = vrot.slane %v2682, 4
  %v2684 = vadd.f32 %v2682, %v2683
  %v2685 = vrot.slane %v2684, 2
  %v2686 = vadd.f32 %v2684, %v2685
  %v2687 = vrot.slane %v2686, 1
  %v2688 = vadd.f32 %v2686, %v2687
  %v2689 = vsel %vm51, %v2649, 0.0
  %v2690 = vsel %vm2662, %v2650, 0.0
  %v2691 = vadd.f32 %v2689, %v2690
  %v2692 = vrot.slane %v2691, 4
  %v2693 = vadd.f32 %v2691, %v2692
  %v2694 = vrot.slane %v2693, 2
  %v2695 = vadd.f32 %v2693, %v2694
  %v2696 = vrot.slane %v2695, 1
  %v2697 = vadd.f32 %v2695, %v2696
  %v2698 = vsel %vm51, %v2651, 0.0
  %v2699 = vsel %vm2662, %v2652, 0.0
  %v2700 = vadd.f32 %v2698, %v2699
  %v2701 = vrot.slane %v2700, 4
  %v2702 = vadd.f32 %v2700, %v2701
  %v2703 = vrot.slane %v2702, 2
  %v2704 = vadd.f32 %v2702, %v2703
  %v2705 = vrot.slane %v2704, 1
  %v2706 = vadd.f32 %v2704, %v2705
  %v2707 = vsel %vm51, %v2653, 0.0
  %v2708 = vsel %vm2662, %v2654, 0.0
  %v2709 = vadd.f32 %v2707, %v2708
  %v2710 = vrot.slane %v2709, 4
  %v2711 = vadd.f32 %v2709, %v2710
  %v2712 = vrot.slane %v2711, 2
  %v2713 = vadd.f32 %v2711, %v2712
  %v2714 = vrot.slane %v2713, 1
  %v2715 = vadd.f32 %v2713, %v2714
  %v2716 = vsel %vm51, %v2655, 0.0
  %v2717 = vsel %vm2662, %v2656, 0.0
  %v2718 = vadd.f32 %v2716, %v2717
  %v2719 = vrot.slane %v2718, 4
  %v2720 = vadd.f32 %v2718, %v2719
  %v2721 = vrot.slane %v2720, 2
  %v2722 = vadd.f32 %v2720, %v2721
  %v2723 = vrot.slane %v2722, 1
  %v2724 = vadd.f32 %v2722, %v2723
  %v2725 = vsel %vm51, %v2657, 0.0
  %v2726 = vsel %vm2662, %v2658, 0.0
  %v2727 = vadd.f32 %v2725, %v2726
  %v2728 = vrot.slane %v2727, 4
  %v2729 = vadd.f32 %v2727, %v2728
  %v2730 = vrot.slane %v2729, 2
  %v2731 = vadd.f32 %v2729, %v2730
  %v2732 = vrot.slane %v2731, 1
  %v2733 = vadd.f32 %v2731, %v2732
  %v2734 = vsel %vm51, %v2659, 0.0
  %v2735 = vsel %vm2662, %v2660, 0.0
  %v2736 = vadd.f32 %v2734, %v2735
  %v2737 = vrot.slane %v2736, 4
  %v2738 = vadd.f32 %v2736, %v2737
  %v2739 = vrot.slane %v2738, 2
  %v2740 = vadd.f32 %v2738, %v2739
  %v2741 = vrot.slane %v2740, 1
  %v2742 = vadd.f32 %v2740, %v2741
  %v2744 = vperm.slane %v842, 0
  %v2755 = vsel %vm1838, %v2679, %v2670
  %v2756 = vsel %vm1840, %v2688, %v2755
  %v2757 = vsel %vm1842, %v2697, %v2756
  %v2758 = vsel %vm1844, %v2706, %v2757
  %v2759 = vsel %vm1846, %v2715, %v2758
  %v2760 = vsel %vm1848, %v2724, %v2759
  %v2761 = vsel %vm1850, %v2733, %v2760
  %v2762 = vsel %vm51, %v2761, 0
  %v2764 = vsel %vm51, %v2742, 0
  %2766 = vmatpush.msra.mxu0 0.0
  %2767 = vmatpush.msra.mxu0 0.0
  %2768 = vmatpush.msra.mxu0 0.0
  %2769 = vmatpush.msra.mxu0 0.0
  %2770 = vmatpush.msra.mxu0 0.0
  %2771 = vmatpush.msra.mxu0 0.0
  %2772 = vmatpush.msra.mxu0 0.0
  %2773 = vmatpush.msra.mxu0 0.0
  %2774 = vmatpush.msra.mxu0 0.0
  %2775 = vmatpush.msra.mxu0 0.0
  %2776 = vmatpush.msra.mxu0 0.0
  %2777 = vmatpush.msra.mxu0 0.0
  %v2778 = vand.u32 %v841, 4294901760
  %2779 = vmatpush.msra.mxu0 %v2778
  %v2780 = vand.u32 %v840, 4294901760
  %2781 = vmatpush.msra.mxu0 %v2780
  %v2782 = vand.u32 %v839, 4294901760
  %2783 = vmatpush.msra.mxu0 %v2782
  %v2784 = vand.u32 %v838, 4294901760
  %2785 = vmatpush.msra.mxu0 %v2784
  %v2786 = vand.u32 %v2762, 4294901760
  %v2787 = vsub.f32 %v2762, %v2786
  %v2788 = vand.u32 %v2787, 4294901760
  %v2789 = vsub.f32 %v2787, %v2788
  %v2790 = vand.u32 %v2789, 4294901760
  %2791 = vmatmul.f32.gmra.mxu0 %v2790
  %v2792 = vpop.f32.mrf.mxu0
  %v2793 = vadd.f32 %v2744, %v2792
  %v2794 = vand.u32 %v2764, 4294901760
  %v2795 = vsub.f32 %v2764, %v2794
  %v2796 = vand.u32 %v2795, 4294901760
  %v2797 = vsub.f32 %v2795, %v2796
  %v2798 = vand.u32 %v2797, 4294901760
  %2799 = vmatmul.f32.gmra.mxu0 %v2798
  %v2800 = vpop.f32.mrf.mxu0
  %v2801 = vadd.f32 %v2744, %v2800
  %2802 = vdwg.mxu0
  %2803 = vmatpush.msra.mxu0 0.0
  %2804 = vmatpush.msra.mxu0 0.0
  %2805 = vmatpush.msra.mxu0 0.0
  %2806 = vmatpush.msra.mxu0 0.0
  %2807 = vmatpush.msra.mxu0 0.0
  %2808 = vmatpush.msra.mxu0 0.0
  %2809 = vmatpush.msra.mxu0 0.0
  %2810 = vmatpush.msra.mxu0 0.0
  %2811 = vmatpush.msra.mxu0 0.0
  %2812 = vmatpush.msra.mxu0 0.0
  %2813 = vmatpush.msra.mxu0 0.0
  %2814 = vmatpush.msra.mxu0 0.0
  %v2815 = vand.u32 %v841, 4294901760
  %v2816 = vsub.f32 %v841, %v2815
  %v2817 = vand.u32 %v2816, 4294901760
  %v2818 = vsub.f32 %v2816, %v2817
  %v2819 = vand.u32 %v2818, 4294901760
  %2820 = vmatpush.msra.mxu0 %v2819
  %v2821 = vand.u32 %v840, 4294901760
  %v2822 = vsub.f32 %v840, %v2821
  %v2823 = vand.u32 %v2822, 4294901760
  %v2824 = vsub.f32 %v2822, %v2823
  %v2825 = vand.u32 %v2824, 4294901760
  %2826 = vmatpush.msra.mxu0 %v2825
  %v2827 = vand.u32 %v839, 4294901760
  %v2828 = vsub.f32 %v839, %v2827
  %v2829 = vand.u32 %v2828, 4294901760
  %v2830 = vsub.f32 %v2828, %v2829
  %v2831 = vand.u32 %v2830, 4294901760
  %2832 = vmatpush.msra.mxu0 %v2831
  %v2833 = vand.u32 %v838, 4294901760
  %v2834 = vsub.f32 %v838, %v2833
  %v2835 = vand.u32 %v2834, 4294901760
  %v2836 = vsub.f32 %v2834, %v2835
  %v2837 = vand.u32 %v2836, 4294901760
  %2838 = vmatpush.msra.mxu0 %v2837
  %v2839 = vand.u32 %v2762, 4294901760
  %2840 = vmatmul.f32.gmra.mxu0 %v2839
  %v2841 = vpop.f32.mrf.mxu0
  %v2842 = vadd.f32 %v2793, %v2841
  %v2843 = vand.u32 %v2764, 4294901760
  %2844 = vmatmul.f32.gmra.mxu0 %v2843
  %v2845 = vpop.f32.mrf.mxu0
  %v2846 = vadd.f32 %v2801, %v2845
  %2847 = vdwg.mxu0
  %2848 = vmatpush.msra.mxu0 0.0
  %2849 = vmatpush.msra.mxu0 0.0
  %2850 = vmatpush.msra.mxu0 0.0
  %2851 = vmatpush.msra.mxu0 0.0
  %2852 = vmatpush.msra.mxu0 0.0
  %2853 = vmatpush.msra.mxu0 0.0
  %2854 = vmatpush.msra.mxu0 0.0
  %2855 = vmatpush.msra.mxu0 0.0
  %2856 = vmatpush.msra.mxu0 0.0
  %2857 = vmatpush.msra.mxu0 0.0
  %2858 = vmatpush.msra.mxu0 0.0
  %2859 = vmatpush.msra.mxu0 0.0
  %v2860 = vand.u32 %v841, 4294901760
  %v2861 = vsub.f32 %v841, %v2860
  %2862 = vmatpush.msra.mxu0 %v2861
  %v2863 = vand.u32 %v840, 4294901760
  %v2864 = vsub.f32 %v840, %v2863
  %2865 = vmatpush.msra.mxu0 %v2864
  %v2866 = vand.u32 %v839, 4294901760
  %v2867 = vsub.f32 %v839, %v2866
  %2868 = vmatpush.msra.mxu0 %v2867
  %v2869 = vand.u32 %v838, 4294901760
  %v2870 = vsub.f32 %v838, %v2869
  %2871 = vmatpush.msra.mxu0 %v2870
  %v2872 = vand.u32 %v2762, 4294901760
  %v2873 = vsub.f32 %v2762, %v2872
  %2874 = vmatmul.f32.gmra.mxu0 %v2873
  %v2875 = vpop.f32.mrf.mxu0
  %v2876 = vadd.f32 %v2842, %v2875
  %v2877 = vand.u32 %v2764, 4294901760
  %v2878 = vsub.f32 %v2764, %v2877
  %2879 = vmatmul.f32.gmra.mxu0 %v2878
  %v2880 = vpop.f32.mrf.mxu0
  %v2881 = vadd.f32 %v2846, %v2880
  %2882 = vdwg.mxu0
  %2883 = vmatpush.msra.mxu0 0.0
  %2884 = vmatpush.msra.mxu0 0.0
  %2885 = vmatpush.msra.mxu0 0.0
  %2886 = vmatpush.msra.mxu0 0.0
  %2887 = vmatpush.msra.mxu0 0.0
  %2888 = vmatpush.msra.mxu0 0.0
  %2889 = vmatpush.msra.mxu0 0.0
  %2890 = vmatpush.msra.mxu0 0.0
  %2891 = vmatpush.msra.mxu0 0.0
  %2892 = vmatpush.msra.mxu0 0.0
  %2893 = vmatpush.msra.mxu0 0.0
  %2894 = vmatpush.msra.mxu0 0.0
  %v2895 = vand.u32 %v841, 4294901760
  %2896 = vmatpush.msra.mxu0 %v2895
  %v2897 = vand.u32 %v840, 4294901760
  %2898 = vmatpush.msra.mxu0 %v2897
  %v2899 = vand.u32 %v839, 4294901760
  %2900 = vmatpush.msra.mxu0 %v2899
  %v2901 = vand.u32 %v838, 4294901760
  %2902 = vmatpush.msra.mxu0 %v2901
  %v2903 = vand.u32 %v2762, 4294901760
  %v2904 = vsub.f32 %v2762, %v2903
  %v2905 = vand.u32 %v2904, 4294901760
  %2906 = vmatmul.f32.gmra.mxu0 %v2905
  %v2907 = vpop.f32.mrf.mxu0
  %v2908 = vadd.f32 %v2876, %v2907
  %v2909 = vand.u32 %v2764, 4294901760
  %v2910 = vsub.f32 %v2764, %v2909
  %v2911 = vand.u32 %v2910, 4294901760
  %2912 = vmatmul.f32.gmra.mxu0 %v2911
  %v2913 = vpop.f32.mrf.mxu0
  %v2914 = vadd.f32 %v2881, %v2913
  %2915 = vdwg.mxu0
  %2916 = vmatpush.msra.mxu0 0.0
  %2917 = vmatpush.msra.mxu0 0.0
  %2918 = vmatpush.msra.mxu0 0.0
  %2919 = vmatpush.msra.mxu0 0.0
  %2920 = vmatpush.msra.mxu0 0.0
  %2921 = vmatpush.msra.mxu0 0.0
  %2922 = vmatpush.msra.mxu0 0.0
  %2923 = vmatpush.msra.mxu0 0.0
  %2924 = vmatpush.msra.mxu0 0.0
  %2925 = vmatpush.msra.mxu0 0.0
  %2926 = vmatpush.msra.mxu0 0.0
  %2927 = vmatpush.msra.mxu0 0.0
  %v2928 = vand.u32 %v841, 4294901760
  %v2929 = vsub.f32 %v841, %v2928
  %v2930 = vand.u32 %v2929, 4294901760
  %2931 = vmatpush.msra.mxu0 %v2930
  %v2932 = vand.u32 %v840, 4294901760
  %v2933 = vsub.f32 %v840, %v2932
  %v2934 = vand.u32 %v2933, 4294901760
  %2935 = vmatpush.msra.mxu0 %v2934
  %v2936 = vand.u32 %v839, 4294901760
  %v2937 = vsub.f32 %v839, %v2936
  %v2938 = vand.u32 %v2937, 4294901760
  %2939 = vmatpush.msra.mxu0 %v2938
  %v2940 = vand.u32 %v838, 4294901760
  %v2941 = vsub.f32 %v838, %v2940
  %v2942 = vand.u32 %v2941, 4294901760
  %2943 = vmatpush.msra.mxu0 %v2942
  %v2944 = vand.u32 %v2762, 4294901760
  %2945 = vmatmul.f32.gmra.mxu0 %v2944
  %v2946 = vpop.f32.mrf.mxu0
  %v2947 = vadd.f32 %v2908, %v2946
  %v2948 = vand.u32 %v2764, 4294901760
  %2949 = vmatmul.f32.gmra.mxu0 %v2948
  %v2950 = vpop.f32.mrf.mxu0
  %v2951 = vadd.f32 %v2914, %v2950
  %2952 = vdwg.mxu0
  %2953 = vmatpush.msra.mxu0 0.0
  %2954 = vmatpush.msra.mxu0 0.0
  %2955 = vmatpush.msra.mxu0 0.0
  %2956 = vmatpush.msra.mxu0 0.0
  %2957 = vmatpush.msra.mxu0 0.0
  %2958 = vmatpush.msra.mxu0 0.0
  %2959 = vmatpush.msra.mxu0 0.0
  %2960 = vmatpush.msra.mxu0 0.0
  %2961 = vmatpush.msra.mxu0 0.0
  %2962 = vmatpush.msra.mxu0 0.0
  %2963 = vmatpush.msra.mxu0 0.0
  %2964 = vmatpush.msra.mxu0 0.0
  %v2965 = vand.u32 %v841, 4294901760
  %2966 = vmatpush.msra.mxu0 %v2965
  %v2967 = vand.u32 %v840, 4294901760
  %2968 = vmatpush.msra.mxu0 %v2967
  %v2969 = vand.u32 %v839, 4294901760
  %2970 = vmatpush.msra.mxu0 %v2969
  %v2971 = vand.u32 %v838, 4294901760
  %2972 = vmatpush.msra.mxu0 %v2971
  %v2973 = vand.u32 %v2762, 4294901760
  %2974 = vmatmul.f32.gmra.mxu0 %v2973
  %v2975 = vpop.f32.mrf.mxu0
  %v2976 = vadd.f32 %v2947, %v2975
  %v2977 = vand.u32 %v2764, 4294901760
  %2978 = vmatmul.f32.gmra.mxu0 %v2977
  %v2979 = vpop.f32.mrf.mxu0
  %v2980 = vadd.f32 %v2951, %v2979
  %2981 = vdwg.mxu0
  %2982 = vst.msk [vmem:[%s13] sm:$0xff] %vm51, %v2976
  %2983 = vst.msk [vmem:[%s13 + $0x8] sm:$0x1] %vm2662, %v2980
  %s2984 = scalar_lea.vmem %s3, 144
  %v2985 = vld [vmem:[%s2984] sm:$0xff]
  %v2986 = vld [vmem:[%s2984 + $0x8] sm:$0x1]
  %v2987 = vld [vmem:[%s2984 + $0x10] sm:$0xff]
  %v2988 = vld [vmem:[%s2984 + $0x18] sm:$0x1]
  %v2989 = vld [vmem:[%s2984 + $0x20] sm:$0xff]
  %v2990 = vld [vmem:[%s2984 + $0x28] sm:$0x1]
  %v2991 = vld [vmem:[%s2984 + $0x30] sm:$0xff]
  %v2992 = vld [vmem:[%s2984 + $0x38] sm:$0x1]
  %v2993 = vld [vmem:[%s2984 + $0x40] sm:$0xff]
  %v2994 = vld [vmem:[%s2984 + $0x48] sm:$0x1]
  %v2995 = vld [vmem:[%s2984 + $0x50] sm:$0xff]
  %v2996 = vld [vmem:[%s2984 + $0x58] sm:$0x1]
  %v2997 = vld [vmem:[%s2984 + $0x60] sm:$0xff]
  %v2998 = vld [vmem:[%s2984 + $0x68] sm:$0x1]
  %v2999 = vld [vmem:[%s2984 + $0x70] sm:$0xff]
  %v3000 = vld [vmem:[%s2984 + $0x78] sm:$0x1]
  %v3001 = vld [vmem:[%s2984 + $0x80] sm:$0xff]
  %v3002 = vld [vmem:[%s2984 + $0x88] sm:$0x1]
  %s3003 = scalar_lea.vmem %s4, 144
  %v3004 = vld [vmem:[%s3003] sm:$0xff]
  %v3005 = vld [vmem:[%s3003 + $0x8] sm:$0x1]
  %v3006 = vld [vmem:[%s3003 + $0x10] sm:$0xff]
  %v3007 = vld [vmem:[%s3003 + $0x18] sm:$0x1]
  %v3008 = vld [vmem:[%s3003 + $0x20] sm:$0xff]
  %v3009 = vld [vmem:[%s3003 + $0x28] sm:$0x1]
  %v3010 = vld [vmem:[%s3003 + $0x30] sm:$0xff]
  %v3011 = vld [vmem:[%s3003 + $0x38] sm:$0x1]
  %v3012 = vld [vmem:[%s3003 + $0x40] sm:$0xff]
  %v3013 = vld [vmem:[%s3003 + $0x48] sm:$0x1]
  %v3014 = vld [vmem:[%s3003 + $0x50] sm:$0xff]
  %v3015 = vld [vmem:[%s3003 + $0x58] sm:$0x1]
  %v3016 = vld [vmem:[%s3003 + $0x60] sm:$0xff]
  %v3017 = vld [vmem:[%s3003 + $0x68] sm:$0x1]
  %v3018 = vld [vmem:[%s3003 + $0x70] sm:$0xff]
  %v3019 = vld [vmem:[%s3003 + $0x78] sm:$0x1]
  %v3020 = vld [vmem:[%s3003 + $0x80] sm:$0xff]
  %v3021 = vld [vmem:[%s3003 + $0x88] sm:$0x1]
  %3023 = vst [vmem:[#allocation1] sm:$0xff] %v302
  %s3024 = scalar_lea.vmem [#allocation1], 1
  %v3025 = vld [vmem:[%s3024] ss:$9 sm:$0xff]
  %s3026 = scalar_lea.vmem [#allocation1], 2
  %v3027 = vld [vmem:[%s3026] ss:$9 sm:$0xff]
  %s3028 = scalar_lea.vmem [#allocation1], 3
  %v3029 = vld [vmem:[%s3028] ss:$9 sm:$0xff]
  %s3030 = scalar_lea.vmem [#allocation1], 4
  %v3031 = vld [vmem:[%s3030] ss:$9 sm:$0xff]
  %s3032 = scalar_lea.vmem [#allocation1], 5
  %v3033 = vld [vmem:[%s3032] ss:$9 sm:$0xff]
  %s3034 = scalar_lea.vmem [#allocation1], 6
  %v3035 = vld [vmem:[%s3034] ss:$9 sm:$0xff]
  %s3036 = scalar_lea.vmem [#allocation1], 7
  %v3037 = vld [vmem:[%s3036] ss:$9 sm:$0xff]
  %3038 = vst [vmem:[#allocation1] sm:$0xff] %v306
  %v3039 = vld [vmem:[#allocation1] ss:$9 sm:$0xff]
  %v3040 = vld [vmem:[%s3024] ss:$9 sm:$0xff]
  %v3041 = vperm.slane %v3025, 0
  %v3042 = vperm.slane %v3027, 0
  %v3043 = vperm.slane %v3029, 0
  %v3044 = vperm.slane %v3031, 0
  %v3045 = vperm.slane %v3033, 0
  %v3046 = vperm.slane %v3035, 0
  %v3047 = vperm.slane %v3037, 0
  %v3048 = vperm.slane %v3039, 0
  %v3049 = vperm.slane %v3040, 0
  %v3059 = vadd.f32 %v3041, %v3004
  %v3060 = vadd.f32 %v3041, %v3005
  %v3061 = vadd.f32 %v3042, %v3006
  %v3062 = vadd.f32 %v3042, %v3007
  %v3063 = vadd.f32 %v3043, %v3008
  %v3064 = vadd.f32 %v3043, %v3009
  %v3065 = vadd.f32 %v3044, %v3010
  %v3066 = vadd.f32 %v3044, %v3011
  %v3067 = vadd.f32 %v3045, %v3012
  %v3068 = vadd.f32 %v3045, %v3013
  %v3069 = vadd.f32 %v3046, %v3014
  %v3070 = vadd.f32 %v3046, %v3015
  %v3071 = vadd.f32 %v3047, %v3016
  %v3072 = vadd.f32 %v3047, %v3017
  %v3073 = vadd.f32 %v3048, %v3018
  %v3074 = vadd.f32 %v3048, %v3019
  %v3075 = vadd.f32 %v3049, %v3020
  %v3076 = vadd.f32 %v3049, %v3021
  %vm3095 = vcmask 1040384
  %v3096 = vrot.slane %v2985, 7
  %v3097 = vrot.slane %v2986, 7
  %v3098 = vsel %vm3095, %v3096, %v3097
  %v3099 = vrot.slane %v2987, 7
  %v3100 = vrot.slane %v2988, 7
  %v3101 = vsel %vm3095, %v3099, %v3100
  %v3102 = vrot.slane %v2989, 7
  %v3103 = vrot.slane %v2990, 7
  %v3104 = vsel %vm3095, %v3102, %v3103
  %v3105 = vrot.slane %v2991, 7
  %v3106 = vrot.slane %v2992, 7
  %v3107 = vsel %vm3095, %v3105, %v3106
  %v3108 = vrot.slane %v2993, 7
  %v3109 = vrot.slane %v2994, 7
  %v3110 = vsel %vm3095, %v3108, %v3109
  %v3111 = vrot.slane %v2995, 7
  %v3112 = vrot.slane %v2996, 7
  %v3113 = vsel %vm3095, %v3111, %v3112
  %v3114 = vrot.slane %v2997, 7
  %v3115 = vrot.slane %v2998, 7
  %v3116 = vsel %vm3095, %v3114, %v3115
  %v3117 = vrot.slane %v2999, 7
  %v3118 = vrot.slane %v3000, 7
  %v3119 = vsel %vm3095, %v3117, %v3118
  %v3120 = vrot.slane %v3001, 7
  %v3121 = vrot.slane %v3002, 7
  %v3122 = vsel %vm3095, %v3120, %v3121
  %v3141 = vadd.f32 %v565, %v3096
  %v3142 = vadd.f32 %v569, %v3098
  %v3143 = vadd.f32 %v565, %v3099
  %v3144 = vadd.f32 %v569, %v3101
  %v3145 = vadd.f32 %v565, %v3102
  %v3146 = vadd.f32 %v569, %v3104
  %v3147 = vadd.f32 %v565, %v3105
  %v3148 = vadd.f32 %v569, %v3107
  %v3149 = vadd.f32 %v565, %v3108
  %v3150 = vadd.f32 %v569, %v3110
  %v3151 = vadd.f32 %v565, %v3111
  %v3152 = vadd.f32 %v569, %v3113
  %v3153 = vadd.f32 %v565, %v3114
  %v3154 = vadd.f32 %v569, %v3116
  %v3155 = vadd.f32 %v565, %v3117
  %v3156 = vadd.f32 %v569, %v3119
  %v3157 = vadd.f32 %v565, %v3120
  %v3158 = vadd.f32 %v569, %v3122
  %vm3177 = vcmask 1046528
  %v3178 = vrot.slane %v3141, 1
  %v3179 = vrot.slane %v3142, 1
  %v3180 = vsel %vm3177, %v3178, %v3179
  %v3181 = vrot.slane %v3143, 1
  %v3182 = vrot.slane %v3144, 1
  %v3183 = vsel %vm3177, %v3181, %v3182
  %v3184 = vrot.slane %v3145, 1
  %v3185 = vrot.slane %v3146, 1
  %v3186 = vsel %vm3177, %v3184, %v3185
  %v3187 = vrot.slane %v3147, 1
  %v3188 = vrot.slane %v3148, 1
  %v3189 = vsel %vm3177, %v3187, %v3188
  %v3190 = vrot.slane %v3149, 1
  %v3191 = vrot.slane %v3150, 1
  %v3192 = vsel %vm3177, %v3190, %v3191
  %v3193 = vrot.slane %v3151, 1
  %v3194 = vrot.slane %v3152, 1
  %v3195 = vsel %vm3177, %v3193, %v3194
  %v3196 = vrot.slane %v3153, 1
  %v3197 = vrot.slane %v3154, 1
  %v3198 = vsel %vm3177, %v3196, %v3197
  %v3199 = vrot.slane %v3155, 1
  %v3200 = vrot.slane %v3156, 1
  %v3201 = vsel %vm3177, %v3199, %v3200
  %v3202 = vrot.slane %v3157, 1
  %v3203 = vrot.slane %v3158, 1
  %v3204 = vsel %vm3177, %v3202, %v3203
  %v3223 = vmul.f32 %v3059, %v3180
  %v3224 = vmul.f32 %v3060, %v3179
  %v3225 = vmul.f32 %v3061, %v3183
  %v3226 = vmul.f32 %v3062, %v3182
  %v3227 = vmul.f32 %v3063, %v3186
  %v3228 = vmul.f32 %v3064, %v3185
  %v3229 = vmul.f32 %v3065, %v3189
  %v3230 = vmul.f32 %v3066, %v3188
  %v3231 = vmul.f32 %v3067, %v3192
  %v3232 = vmul.f32 %v3068, %v3191
  %v3233 = vmul.f32 %v3069, %v3195
  %v3234 = vmul.f32 %v3070, %v3194
  %v3235 = vmul.f32 %v3071, %v3198
  %v3236 = vmul.f32 %v3072, %v3197
  %v3237 = vmul.f32 %v3073, %v3201
  %v3238 = vmul.f32 %v3074, %v3200
  %v3239 = vmul.f32 %v3075, %v3204
  %v3240 = vmul.f32 %v3076, %v3203
  %v3241 = vsel %vm960, %v3223, 0.0
  %3242 = vadd.xlane.f32.xlu0 %v3241
  %v3243 = vpop.xlane.xlu0 %3242
  %v3244 = vsel %vm964, %v3224, 0.0
  %3245 = vadd.xlane.f32.xlu0 %v3244
  %v3246 = vpop.xlane.xlu0 %3245
  %v3247 = vsel %vm960, %v3225, 0.0
  %3248 = vadd.xlane.f32.xlu0 %v3247
  %v3249 = vpop.xlane.xlu0 %3248
  %v3250 = vsel %vm964, %v3226, 0.0
  %3251 = vadd.xlane.f32.xlu0 %v3250
  %v3252 = vpop.xlane.xlu0 %3251
  %v3253 = vsel %vm960, %v3227, 0.0
  %3254 = vadd.xlane.f32.xlu0 %v3253
  %v3255 = vpop.xlane.xlu0 %3254
  %v3256 = vsel %vm964, %v3228, 0.0
  %3257 = vadd.xlane.f32.xlu0 %v3256
  %v3258 = vpop.xlane.xlu0 %3257
  %v3259 = vsel %vm960, %v3229, 0.0
  %3260 = vadd.xlane.f32.xlu0 %v3259
  %v3261 = vpop.xlane.xlu0 %3260
  %v3262 = vsel %vm964, %v3230, 0.0
  %3263 = vadd.xlane.f32.xlu0 %v3262
  %v3264 = vpop.xlane.xlu0 %3263
  %v3265 = vsel %vm960, %v3231, 0.0
  %3266 = vadd.xlane.f32.xlu0 %v3265
  %v3267 = vpop.xlane.xlu0 %3266
  %v3268 = vsel %vm964, %v3232, 0.0
  %3269 = vadd.xlane.f32.xlu0 %v3268
  %v3270 = vpop.xlane.xlu0 %3269
  %v3271 = vsel %vm960, %v3233, 0.0
  %3272 = vadd.xlane.f32.xlu0 %v3271
  %v3273 = vpop.xlane.xlu0 %3272
  %v3274 = vsel %vm964, %v3234, 0.0
  %3275 = vadd.xlane.f32.xlu0 %v3274
  %v3276 = vpop.xlane.xlu0 %3275
  %v3277 = vsel %vm960, %v3235, 0.0
  %3278 = vadd.xlane.f32.xlu0 %v3277
  %v3279 = vpop.xlane.xlu0 %3278
  %v3280 = vsel %vm964, %v3236, 0.0
  %3281 = vadd.xlane.f32.xlu0 %v3280
  %v3282 = vpop.xlane.xlu0 %3281
  %v3283 = vsel %vm960, %v3237, 0.0
  %3284 = vadd.xlane.f32.xlu0 %v3283
  %v3285 = vpop.xlane.xlu0 %3284
  %v3286 = vsel %vm964, %v3238, 0.0
  %3287 = vadd.xlane.f32.xlu0 %v3286
  %v3288 = vpop.xlane.xlu0 %3287
  %v3289 = vsel %vm960, %v3239, 0.0
  %3290 = vadd.xlane.f32.xlu0 %v3289
  %v3291 = vpop.xlane.xlu0 %3290
  %v3292 = vsel %vm964, %v3240, 0.0
  %3293 = vadd.xlane.f32.xlu0 %v3292
  %v3294 = vpop.xlane.xlu0 %3293
  %3313 = vrot.lane.b32.xlu0 %v3223, 120
  %v3314 = vpop.permute.xlu0 %3313
  %3315 = vrot.lane.b32.xlu0 %v3224, 120
  %v3316 = vpop.permute.xlu0 %3315
  %3317 = vrot.lane.b32.xlu0 %v3225, 120
  %v3318 = vpop.permute.xlu0 %3317
  %3319 = vrot.lane.b32.xlu0 %v3226, 120
  %v3320 = vpop.permute.xlu0 %3319
  %3321 = vrot.lane.b32.xlu0 %v3227, 120
  %v3322 = vpop.permute.xlu0 %3321
  %3323 = vrot.lane.b32.xlu0 %v3228, 120
  %v3324 = vpop.permute.xlu0 %3323
  %3325 = vrot.lane.b32.xlu0 %v3229, 120
  %v3326 = vpop.permute.xlu0 %3325
  %3327 = vrot.lane.b32.xlu0 %v3230, 120
  %v3328 = vpop.permute.xlu0 %3327
  %3329 = vrot.lane.b32.xlu0 %v3231, 120
  %v3330 = vpop.permute.xlu0 %3329
  %3331 = vrot.lane.b32.xlu0 %v3232, 120
  %v3332 = vpop.permute.xlu0 %3331
  %3333 = vrot.lane.b32.xlu0 %v3233, 120
  %v3334 = vpop.permute.xlu0 %3333
  %3335 = vrot.lane.b32.xlu0 %v3234, 120
  %v3336 = vpop.permute.xlu0 %3335
  %3337 = vrot.lane.b32.xlu0 %v3235, 120
  %v3338 = vpop.permute.xlu0 %3337
  %3339 = vrot.lane.b32.xlu0 %v3236, 120
  %v3340 = vpop.permute.xlu0 %3339
  %3341 = vrot.lane.b32.xlu0 %v3237, 120
  %v3342 = vpop.permute.xlu0 %3341
  %3343 = vrot.lane.b32.xlu0 %v3238, 120
  %v3344 = vpop.permute.xlu0 %3343
  %3345 = vrot.lane.b32.xlu0 %v3239, 120
  %v3346 = vpop.permute.xlu0 %3345
  %3347 = vrot.lane.b32.xlu0 %v3240, 120
  %v3348 = vpop.permute.xlu0 %3347
  %v3367 = vsel %vm960, %v3314, 0.0
  %3368 = vadd.xlane.f32.xlu0 %v3367
  %v3369 = vpop.xlane.xlu0 %3368
  %v3370 = vsel %vm964, %v3316, 0.0
  %3371 = vadd.xlane.f32.xlu0 %v3370
  %v3372 = vpop.xlane.xlu0 %3371
  %v3373 = vsel %vm960, %v3318, 0.0
  %3374 = vadd.xlane.f32.xlu0 %v3373
  %v3375 = vpop.xlane.xlu0 %3374
  %v3376 = vsel %vm964, %v3320, 0.0
  %3377 = vadd.xlane.f32.xlu0 %v3376
  %v3378 = vpop.xlane.xlu0 %3377
  %v3379 = vsel %vm960, %v3322, 0.0
  %3380 = vadd.xlane.f32.xlu0 %v3379
  %v3381 = vpop.xlane.xlu0 %3380
  %v3382 = vsel %vm964, %v3324, 0.0
  %3383 = vadd.xlane.f32.xlu0 %v3382
  %v3384 = vpop.xlane.xlu0 %3383
  %v3385 = vsel %vm960, %v3326, 0.0
  %3386 = vadd.xlane.f32.xlu0 %v3385
  %v3387 = vpop.xlane.xlu0 %3386
  %v3388 = vsel %vm964, %v3328, 0.0
  %3389 = vadd.xlane.f32.xlu0 %v3388
  %v3390 = vpop.xlane.xlu0 %3389
  %v3391 = vsel %vm960, %v3330, 0.0
  %3392 = vadd.xlane.f32.xlu0 %v3391
  %v3393 = vpop.xlane.xlu0 %3392
  %v3394 = vsel %vm964, %v3332, 0.0
  %3395 = vadd.xlane.f32.xlu0 %v3394
  %v3396 = vpop.xlane.xlu0 %3395
  %v3397 = vsel %vm960, %v3334, 0.0
  %3398 = vadd.xlane.f32.xlu0 %v3397
  %v3399 = vpop.xlane.xlu0 %3398
  %v3400 = vsel %vm964, %v3336, 0.0
  %3401 = vadd.xlane.f32.xlu0 %v3400
  %v3402 = vpop.xlane.xlu0 %3401
  %v3403 = vsel %vm960, %v3338, 0.0
  %3404 = vadd.xlane.f32.xlu0 %v3403
  %v3405 = vpop.xlane.xlu0 %3404
  %v3406 = vsel %vm964, %v3340, 0.0
  %3407 = vadd.xlane.f32.xlu0 %v3406
  %v3408 = vpop.xlane.xlu0 %3407
  %v3409 = vsel %vm960, %v3342, 0.0
  %3410 = vadd.xlane.f32.xlu0 %v3409
  %v3411 = vpop.xlane.xlu0 %3410
  %v3412 = vsel %vm964, %v3344, 0.0
  %3413 = vadd.xlane.f32.xlu0 %v3412
  %v3414 = vpop.xlane.xlu0 %3413
  %v3415 = vsel %vm960, %v3346, 0.0
  %3416 = vadd.xlane.f32.xlu0 %v3415
  %v3417 = vpop.xlane.xlu0 %3416
  %v3418 = vsel %vm964, %v3348, 0.0
  %3419 = vadd.xlane.f32.xlu0 %v3418
  %v3420 = vpop.xlane.xlu0 %3419
  %3421 = vrot.lane.b32.xlu0 %v3223, 112
  %v3422 = vpop.permute.xlu0 %3421
  %3423 = vrot.lane.b32.xlu0 %v3224, 112
  %v3424 = vpop.permute.xlu0 %3423
  %3425 = vrot.lane.b32.xlu0 %v3225, 112
  %v3426 = vpop.permute.xlu0 %3425
  %3427 = vrot.lane.b32.xlu0 %v3226, 112
  %v3428 = vpop.permute.xlu0 %3427
  %3429 = vrot.lane.b32.xlu0 %v3227, 112
  %v3430 = vpop.permute.xlu0 %3429
  %3431 = vrot.lane.b32.xlu0 %v3228, 112
  %v3432 = vpop.permute.xlu0 %3431
  %3433 = vrot.lane.b32.xlu0 %v3229, 112
  %v3434 = vpop.permute.xlu0 %3433
  %3435 = vrot.lane.b32.xlu0 %v3230, 112
  %v3436 = vpop.permute.xlu0 %3435
  %3437 = vrot.lane.b32.xlu0 %v3231, 112
  %v3438 = vpop.permute.xlu0 %3437
  %3439 = vrot.lane.b32.xlu0 %v3232, 112
  %v3440 = vpop.permute.xlu0 %3439
  %3441 = vrot.lane.b32.xlu0 %v3233, 112
  %v3442 = vpop.permute.xlu0 %3441
  %3443 = vrot.lane.b32.xlu0 %v3234, 112
  %v3444 = vpop.permute.xlu0 %3443
  %3445 = vrot.lane.b32.xlu0 %v3235, 112
  %v3446 = vpop.permute.xlu0 %3445
  %3447 = vrot.lane.b32.xlu0 %v3236, 112
  %v3448 = vpop.permute.xlu0 %3447
  %3449 = vrot.lane.b32.xlu0 %v3237, 112
  %v3450 = vpop.permute.xlu0 %3449
  %3451 = vrot.lane.b32.xlu0 %v3238, 112
  %v3452 = vpop.permute.xlu0 %3451
  %3453 = vrot.lane.b32.xlu0 %v3239, 112
  %v3454 = vpop.permute.xlu0 %3453
  %3455 = vrot.lane.b32.xlu0 %v3240, 112
  %v3456 = vpop.permute.xlu0 %3455
  %v3475 = vsel %vm960, %v3422, 0.0
  %3476 = vadd.xlane.f32.xlu0 %v3475
  %v3477 = vpop.xlane.xlu0 %3476
  %v3478 = vsel %vm964, %v3424, 0.0
  %3479 = vadd.xlane.f32.xlu0 %v3478
  %v3480 = vpop.xlane.xlu0 %3479
  %v3481 = vsel %vm960, %v3426, 0.0
  %3482 = vadd.xlane.f32.xlu0 %v3481
  %v3483 = vpop.xlane.xlu0 %3482
  %v3484 = vsel %vm964, %v3428, 0.0
  %3485 = vadd.xlane.f32.xlu0 %v3484
  %v3486 = vpop.xlane.xlu0 %3485
  %v3487 = vsel %vm960, %v3430, 0.0
  %3488 = vadd.xlane.f32.xlu0 %v3487
  %v3489 = vpop.xlane.xlu0 %3488
  %v3490 = vsel %vm964, %v3432, 0.0
  %3491 = vadd.xlane.f32.xlu0 %v3490
  %v3492 = vpop.xlane.xlu0 %3491
  %v3493 = vsel %vm960, %v3434, 0.0
  %3494 = vadd.xlane.f32.xlu0 %v3493
  %v3495 = vpop.xlane.xlu0 %3494
  %v3496 = vsel %vm964, %v3436, 0.0
  %3497 = vadd.xlane.f32.xlu0 %v3496
  %v3498 = vpop.xlane.xlu0 %3497
  %v3499 = vsel %vm960, %v3438, 0.0
  %3500 = vadd.xlane.f32.xlu0 %v3499
  %v3501 = vpop.xlane.xlu0 %3500
  %v3502 = vsel %vm964, %v3440, 0.0
  %3503 = vadd.xlane.f32.xlu0 %v3502
  %v3504 = vpop.xlane.xlu0 %3503
  %v3505 = vsel %vm960, %v3442, 0.0
  %3506 = vadd.xlane.f32.xlu0 %v3505
  %v3507 = vpop.xlane.xlu0 %3506
  %v3508 = vsel %vm964, %v3444, 0.0
  %3509 = vadd.xlane.f32.xlu0 %v3508
  %v3510 = vpop.xlane.xlu0 %3509
  %v3511 = vsel %vm960, %v3446, 0.0
  %3512 = vadd.xlane.f32.xlu0 %v3511
  %v3513 = vpop.xlane.xlu0 %3512
  %v3514 = vsel %vm964, %v3448, 0.0
  %3515 = vadd.xlane.f32.xlu0 %v3514
  %v3516 = vpop.xlane.xlu0 %3515
  %v3517 = vsel %vm960, %v3450, 0.0
  %3518 = vadd.xlane.f32.xlu0 %v3517
  %v3519 = vpop.xlane.xlu0 %3518
  %v3520 = vsel %vm964, %v3452, 0.0
  %3521 = vadd.xlane.f32.xlu0 %v3520
  %v3522 = vpop.xlane.xlu0 %3521
  %v3523 = vsel %vm960, %v3454, 0.0
  %3524 = vadd.xlane.f32.xlu0 %v3523
  %v3525 = vpop.xlane.xlu0 %3524
  %v3526 = vsel %vm964, %v3456, 0.0
  %3527 = vadd.xlane.f32.xlu0 %v3526
  %v3528 = vpop.xlane.xlu0 %3527
  %3529 = vrot.lane.b32.xlu0 %v3223, 104
  %v3530 = vpop.permute.xlu0 %3529
  %3531 = vrot.lane.b32.xlu0 %v3224, 104
  %v3532 = vpop.permute.xlu0 %3531
  %3533 = vrot.lane.b32.xlu0 %v3225, 104
  %v3534 = vpop.permute.xlu0 %3533
  %3535 = vrot.lane.b32.xlu0 %v3226, 104
  %v3536 = vpop.permute.xlu0 %3535
  %3537 = vrot.lane.b32.xlu0 %v3227, 104
  %v3538 = vpop.permute.xlu0 %3537
  %3539 = vrot.lane.b32.xlu0 %v3228, 104
  %v3540 = vpop.permute.xlu0 %3539
  %3541 = vrot.lane.b32.xlu0 %v3229, 104
  %v3542 = vpop.permute.xlu0 %3541
  %3543 = vrot.lane.b32.xlu0 %v3230, 104
  %v3544 = vpop.permute.xlu0 %3543
  %3545 = vrot.lane.b32.xlu0 %v3231, 104
  %v3546 = vpop.permute.xlu0 %3545
  %3547 = vrot.lane.b32.xlu0 %v3232, 104
  %v3548 = vpop.permute.xlu0 %3547
  %3549 = vrot.lane.b32.xlu0 %v3233, 104
  %v3550 = vpop.permute.xlu0 %3549
  %3551 = vrot.lane.b32.xlu0 %v3234, 104
  %v3552 = vpop.permute.xlu0 %3551
  %3553 = vrot.lane.b32.xlu0 %v3235, 104
  %v3554 = vpop.permute.xlu0 %3553
  %3555 = vrot.lane.b32.xlu0 %v3236, 104
  %v3556 = vpop.permute.xlu0 %3555
  %3557 = vrot.lane.b32.xlu0 %v3237, 104
  %v3558 = vpop.permute.xlu0 %3557
  %3559 = vrot.lane.b32.xlu0 %v3238, 104
  %v3560 = vpop.permute.xlu0 %3559
  %3561 = vrot.lane.b32.xlu0 %v3239, 104
  %v3562 = vpop.permute.xlu0 %3561
  %3563 = vrot.lane.b32.xlu0 %v3240, 104
  %v3564 = vpop.permute.xlu0 %3563
  %v3583 = vsel %vm960, %v3530, 0.0
  %3584 = vadd.xlane.f32.xlu0 %v3583
  %v3585 = vpop.xlane.xlu0 %3584
  %v3586 = vsel %vm964, %v3532, 0.0
  %3587 = vadd.xlane.f32.xlu0 %v3586
  %v3588 = vpop.xlane.xlu0 %3587
  %v3589 = vsel %vm960, %v3534, 0.0
  %3590 = vadd.xlane.f32.xlu0 %v3589
  %v3591 = vpop.xlane.xlu0 %3590
  %v3592 = vsel %vm964, %v3536, 0.0
  %3593 = vadd.xlane.f32.xlu0 %v3592
  %v3594 = vpop.xlane.xlu0 %3593
  %v3595 = vsel %vm960, %v3538, 0.0
  %3596 = vadd.xlane.f32.xlu0 %v3595
  %v3597 = vpop.xlane.xlu0 %3596
  %v3598 = vsel %vm964, %v3540, 0.0
  %3599 = vadd.xlane.f32.xlu0 %v3598
  %v3600 = vpop.xlane.xlu0 %3599
  %v3601 = vsel %vm960, %v3542, 0.0
  %3602 = vadd.xlane.f32.xlu0 %v3601
  %v3603 = vpop.xlane.xlu0 %3602
  %v3604 = vsel %vm964, %v3544, 0.0
  %3605 = vadd.xlane.f32.xlu0 %v3604
  %v3606 = vpop.xlane.xlu0 %3605
  %v3607 = vsel %vm960, %v3546, 0.0
  %3608 = vadd.xlane.f32.xlu0 %v3607
  %v3609 = vpop.xlane.xlu0 %3608
  %v3610 = vsel %vm964, %v3548, 0.0
  %3611 = vadd.xlane.f32.xlu0 %v3610
  %v3612 = vpop.xlane.xlu0 %3611
  %v3613 = vsel %vm960, %v3550, 0.0
  %3614 = vadd.xlane.f32.xlu0 %v3613
  %v3615 = vpop.xlane.xlu0 %3614
  %v3616 = vsel %vm964, %v3552, 0.0
  %3617 = vadd.xlane.f32.xlu0 %v3616
  %v3618 = vpop.xlane.xlu0 %3617
  %v3619 = vsel %vm960, %v3554, 0.0
  %3620 = vadd.xlane.f32.xlu0 %v3619
  %v3621 = vpop.xlane.xlu0 %3620
  %v3622 = vsel %vm964, %v3556, 0.0
  %3623 = vadd.xlane.f32.xlu0 %v3622
  %v3624 = vpop.xlane.xlu0 %3623
  %v3625 = vsel %vm960, %v3558, 0.0
  %3626 = vadd.xlane.f32.xlu0 %v3625
  %v3627 = vpop.xlane.xlu0 %3626
  %v3628 = vsel %vm964, %v3560, 0.0
  %3629 = vadd.xlane.f32.xlu0 %v3628
  %v3630 = vpop.xlane.xlu0 %3629
  %v3631 = vsel %vm960, %v3562, 0.0
  %3632 = vadd.xlane.f32.xlu0 %v3631
  %v3633 = vpop.xlane.xlu0 %3632
  %v3634 = vsel %vm964, %v3564, 0.0
  %3635 = vadd.xlane.f32.xlu0 %v3634
  %v3636 = vpop.xlane.xlu0 %3635
  %v3637 = vmul.f32 %v3243, 0.35355338
  %v3638 = vmul.f32 %v3246, 0.35355338
  %v3639 = vmul.f32 %v3249, 0.35355338
  %v3640 = vmul.f32 %v3252, 0.35355338
  %v3641 = vmul.f32 %v3255, 0.35355338
  %v3642 = vmul.f32 %v3258, 0.35355338
  %v3643 = vmul.f32 %v3261, 0.35355338
  %v3644 = vmul.f32 %v3264, 0.35355338
  %v3645 = vmul.f32 %v3267, 0.35355338
  %v3646 = vmul.f32 %v3270, 0.35355338
  %v3647 = vmul.f32 %v3273, 0.35355338
  %v3648 = vmul.f32 %v3276, 0.35355338
  %v3649 = vmul.f32 %v3279, 0.35355338
  %v3650 = vmul.f32 %v3282, 0.35355338
  %v3651 = vmul.f32 %v3285, 0.35355338
  %v3652 = vmul.f32 %v3288, 0.35355338
  %v3653 = vmul.f32 %v3291, 0.35355338
  %v3654 = vmul.f32 %v3294, 0.35355338
  %v3655 = vmul.f32 %v3369, 0.35355338
  %v3656 = vmul.f32 %v3372, 0.35355338
  %v3657 = vmul.f32 %v3375, 0.35355338
  %v3658 = vmul.f32 %v3378, 0.35355338
  %v3659 = vmul.f32 %v3381, 0.35355338
  %v3660 = vmul.f32 %v3384, 0.35355338
  %v3661 = vmul.f32 %v3387, 0.35355338
  %v3662 = vmul.f32 %v3390, 0.35355338
  %v3663 = vmul.f32 %v3393, 0.35355338
  %v3664 = vmul.f32 %v3396, 0.35355338
  %v3665 = vmul.f32 %v3399, 0.35355338
  %v3666 = vmul.f32 %v3402, 0.35355338
  %v3667 = vmul.f32 %v3405, 0.35355338
  %v3668 = vmul.f32 %v3408, 0.35355338
  %v3669 = vmul.f32 %v3411, 0.35355338
  %v3670 = vmul.f32 %v3414, 0.35355338
  %v3671 = vmul.f32 %v3417, 0.35355338
  %v3672 = vmul.f32 %v3420, 0.35355338
  %v3673 = vmul.f32 %v3477, 0.35355338
  %v3674 = vmul.f32 %v3480, 0.35355338
  %v3675 = vmul.f32 %v3483, 0.35355338
  %v3676 = vmul.f32 %v3486, 0.35355338
  %v3677 = vmul.f32 %v3489, 0.35355338
  %v3678 = vmul.f32 %v3492, 0.35355338
  %v3679 = vmul.f32 %v3495, 0.35355338
  %v3680 = vmul.f32 %v3498, 0.35355338
  %v3681 = vmul.f32 %v3501, 0.35355338
  %v3682 = vmul.f32 %v3504, 0.35355338
  %v3683 = vmul.f32 %v3507, 0.35355338
  %v3684 = vmul.f32 %v3510, 0.35355338
  %v3685 = vmul.f32 %v3513, 0.35355338
  %v3686 = vmul.f32 %v3516, 0.35355338
  %v3687 = vmul.f32 %v3519, 0.35355338
  %v3688 = vmul.f32 %v3522, 0.35355338
  %v3689 = vmul.f32 %v3525, 0.35355338
  %v3690 = vmul.f32 %v3528, 0.35355338
  %v3691 = vmul.f32 %v3585, 0.35355338
  %v3692 = vmul.f32 %v3588, 0.35355338
  %v3693 = vmul.f32 %v3591, 0.35355338
  %v3694 = vmul.f32 %v3594, 0.35355338
  %v3695 = vmul.f32 %v3597, 0.35355338
  %v3696 = vmul.f32 %v3600, 0.35355338
  %v3697 = vmul.f32 %v3603, 0.35355338
  %v3698 = vmul.f32 %v3606, 0.35355338
  %v3699 = vmul.f32 %v3609, 0.35355338
  %v3700 = vmul.f32 %v3612, 0.35355338
  %v3701 = vmul.f32 %v3615, 0.35355338
  %v3702 = vmul.f32 %v3618, 0.35355338
  %v3703 = vmul.f32 %v3621, 0.35355338
  %v3704 = vmul.f32 %v3624, 0.35355338
  %v3705 = vmul.f32 %v3627, 0.35355338
  %v3706 = vmul.f32 %v3630, 0.35355338
  %v3707 = vmul.f32 %v3633, 0.35355338
  %v3708 = vmul.f32 %v3636, 0.35355338
  %s3709 = scalar_lea.vmem %s6, 16
  %v3710 = vld [vmem:[%s3709] sm:$0xff]
  %v3711 = vld [vmem:[%s3709 + $0x8] sm:$0x1]
  %vm3712 = vcmp.gt.f32.partialorder %v3710, 0.5
  %vm3713 = vcmp.gt.f32.partialorder %v3711, 0.5
  %v3714 = vsel %vm3712, 1, 0
  %v3715 = vsel %vm3713, 1, 0
  %vm3716 = vcmp.eq.s32.totalorder %v3714, 1
  %vm3717 = vcmp.eq.s32.totalorder %v3715, 1
  %3790 = vset.pattern.permute.xlu0 0
  %3791 = vperm.xlu0 %3790, %v3637
  %v3792 = vpop.permute.xlu0 %3791
  %3793 = vset.pattern.permute.xlu0 0
  %3794 = vperm.xlu0 %3793, %v3638
  %v3795 = vpop.permute.xlu0 %3794
  %3796 = vset.pattern.permute.xlu0 0
  %3797 = vperm.xlu0 %3796, %v3639
  %v3798 = vpop.permute.xlu0 %3797
  %3799 = vset.pattern.permute.xlu0 0
  %3800 = vperm.xlu0 %3799, %v3640
  %v3801 = vpop.permute.xlu0 %3800
  %3802 = vset.pattern.permute.xlu0 0
  %3803 = vperm.xlu0 %3802, %v3641
  %v3804 = vpop.permute.xlu0 %3803
  %3805 = vset.pattern.permute.xlu0 0
  %3806 = vperm.xlu0 %3805, %v3642
  %v3807 = vpop.permute.xlu0 %3806
  %3808 = vset.pattern.permute.xlu0 0
  %3809 = vperm.xlu0 %3808, %v3643
  %v3810 = vpop.permute.xlu0 %3809
  %3811 = vset.pattern.permute.xlu0 0
  %3812 = vperm.xlu0 %3811, %v3644
  %v3813 = vpop.permute.xlu0 %3812
  %3814 = vset.pattern.permute.xlu0 0
  %3815 = vperm.xlu0 %3814, %v3645
  %v3816 = vpop.permute.xlu0 %3815
  %3817 = vset.pattern.permute.xlu0 0
  %3818 = vperm.xlu0 %3817, %v3646
  %v3819 = vpop.permute.xlu0 %3818
  %3820 = vset.pattern.permute.xlu0 0
  %3821 = vperm.xlu0 %3820, %v3647
  %v3822 = vpop.permute.xlu0 %3821
  %3823 = vset.pattern.permute.xlu0 0
  %3824 = vperm.xlu0 %3823, %v3648
  %v3825 = vpop.permute.xlu0 %3824
  %3826 = vset.pattern.permute.xlu0 0
  %3827 = vperm.xlu0 %3826, %v3649
  %v3828 = vpop.permute.xlu0 %3827
  %3829 = vset.pattern.permute.xlu0 0
  %3830 = vperm.xlu0 %3829, %v3650
  %v3831 = vpop.permute.xlu0 %3830
  %3832 = vset.pattern.permute.xlu0 0
  %3833 = vperm.xlu0 %3832, %v3651
  %v3834 = vpop.permute.xlu0 %3833
  %3835 = vset.pattern.permute.xlu0 0
  %3836 = vperm.xlu0 %3835, %v3652
  %v3837 = vpop.permute.xlu0 %3836
  %3838 = vset.pattern.permute.xlu0 0
  %3839 = vperm.xlu0 %3838, %v3653
  %v3840 = vpop.permute.xlu0 %3839
  %3841 = vset.pattern.permute.xlu0 0
  %3842 = vperm.xlu0 %3841, %v3654
  %v3843 = vpop.permute.xlu0 %3842
  %3844 = vset.pattern.permute.xlu0 0
  %3845 = vperm.xlu0 %3844, %v3655
  %v3846 = vpop.permute.xlu0 %3845
  %3847 = vset.pattern.permute.xlu0 0
  %3848 = vperm.xlu0 %3847, %v3656
  %v3849 = vpop.permute.xlu0 %3848
  %3850 = vset.pattern.permute.xlu0 0
  %3851 = vperm.xlu0 %3850, %v3657
  %v3852 = vpop.permute.xlu0 %3851
  %3853 = vset.pattern.permute.xlu0 0
  %3854 = vperm.xlu0 %3853, %v3658
  %v3855 = vpop.permute.xlu0 %3854
  %3856 = vset.pattern.permute.xlu0 0
  %3857 = vperm.xlu0 %3856, %v3659
  %v3858 = vpop.permute.xlu0 %3857
  %3859 = vset.pattern.permute.xlu0 0
  %3860 = vperm.xlu0 %3859, %v3660
  %v3861 = vpop.permute.xlu0 %3860
  %3862 = vset.pattern.permute.xlu0 0
  %3863 = vperm.xlu0 %3862, %v3661
  %v3864 = vpop.permute.xlu0 %3863
  %3865 = vset.pattern.permute.xlu0 0
  %3866 = vperm.xlu0 %3865, %v3662
  %v3867 = vpop.permute.xlu0 %3866
  %3868 = vset.pattern.permute.xlu0 0
  %3869 = vperm.xlu0 %3868, %v3663
  %v3870 = vpop.permute.xlu0 %3869
  %3871 = vset.pattern.permute.xlu0 0
  %3872 = vperm.xlu0 %3871, %v3664
  %v3873 = vpop.permute.xlu0 %3872
  %3874 = vset.pattern.permute.xlu0 0
  %3875 = vperm.xlu0 %3874, %v3665
  %v3876 = vpop.permute.xlu0 %3875
  %3877 = vset.pattern.permute.xlu0 0
  %3878 = vperm.xlu0 %3877, %v3666
  %v3879 = vpop.permute.xlu0 %3878
  %3880 = vset.pattern.permute.xlu0 0
  %3881 = vperm.xlu0 %3880, %v3667
  %v3882 = vpop.permute.xlu0 %3881
  %3883 = vset.pattern.permute.xlu0 0
  %3884 = vperm.xlu0 %3883, %v3668
  %v3885 = vpop.permute.xlu0 %3884
  %3886 = vset.pattern.permute.xlu0 0
  %3887 = vperm.xlu0 %3886, %v3669
  %v3888 = vpop.permute.xlu0 %3887
  %3889 = vset.pattern.permute.xlu0 0
  %3890 = vperm.xlu0 %3889, %v3670
  %v3891 = vpop.permute.xlu0 %3890
  %3892 = vset.pattern.permute.xlu0 0
  %3893 = vperm.xlu0 %3892, %v3671
  %v3894 = vpop.permute.xlu0 %3893
  %3895 = vset.pattern.permute.xlu0 0
  %3896 = vperm.xlu0 %3895, %v3672
  %v3897 = vpop.permute.xlu0 %3896
  %3898 = vset.pattern.permute.xlu0 0
  %3899 = vperm.xlu0 %3898, %v3673
  %v3900 = vpop.permute.xlu0 %3899
  %3901 = vset.pattern.permute.xlu0 0
  %3902 = vperm.xlu0 %3901, %v3674
  %v3903 = vpop.permute.xlu0 %3902
  %3904 = vset.pattern.permute.xlu0 0
  %3905 = vperm.xlu0 %3904, %v3675
  %v3906 = vpop.permute.xlu0 %3905
  %3907 = vset.pattern.permute.xlu0 0
  %3908 = vperm.xlu0 %3907, %v3676
  %v3909 = vpop.permute.xlu0 %3908
  %3910 = vset.pattern.permute.xlu0 0
  %3911 = vperm.xlu0 %3910, %v3677
  %v3912 = vpop.permute.xlu0 %3911
  %3913 = vset.pattern.permute.xlu0 0
  %3914 = vperm.xlu0 %3913, %v3678
  %v3915 = vpop.permute.xlu0 %3914
  %3916 = vset.pattern.permute.xlu0 0
  %3917 = vperm.xlu0 %3916, %v3679
  %v3918 = vpop.permute.xlu0 %3917
  %3919 = vset.pattern.permute.xlu0 0
  %3920 = vperm.xlu0 %3919, %v3680
  %v3921 = vpop.permute.xlu0 %3920
  %3922 = vset.pattern.permute.xlu0 0
  %3923 = vperm.xlu0 %3922, %v3681
  %v3924 = vpop.permute.xlu0 %3923
  %3925 = vset.pattern.permute.xlu0 0
  %3926 = vperm.xlu0 %3925, %v3682
  %v3927 = vpop.permute.xlu0 %3926
  %3928 = vset.pattern.permute.xlu0 0
  %3929 = vperm.xlu0 %3928, %v3683
  %v3930 = vpop.permute.xlu0 %3929
  %3931 = vset.pattern.permute.xlu0 0
  %3932 = vperm.xlu0 %3931, %v3684
  %v3933 = vpop.permute.xlu0 %3932
  %3934 = vset.pattern.permute.xlu0 0
  %3935 = vperm.xlu0 %3934, %v3685
  %v3936 = vpop.permute.xlu0 %3935
  %3937 = vset.pattern.permute.xlu0 0
  %3938 = vperm.xlu0 %3937, %v3686
  %v3939 = vpop.permute.xlu0 %3938
  %3940 = vset.pattern.permute.xlu0 0
  %3941 = vperm.xlu0 %3940, %v3687
  %v3942 = vpop.permute.xlu0 %3941
  %3943 = vset.pattern.permute.xlu0 0
  %3944 = vperm.xlu0 %3943, %v3688
  %v3945 = vpop.permute.xlu0 %3944
  %3946 = vset.pattern.permute.xlu0 0
  %3947 = vperm.xlu0 %3946, %v3689
  %v3948 = vpop.permute.xlu0 %3947
  %3949 = vset.pattern.permute.xlu0 0
  %3950 = vperm.xlu0 %3949, %v3690
  %v3951 = vpop.permute.xlu0 %3950
  %3952 = vset.pattern.permute.xlu0 0
  %3953 = vperm.xlu0 %3952, %v3691
  %v3954 = vpop.permute.xlu0 %3953
  %3955 = vset.pattern.permute.xlu0 0
  %3956 = vperm.xlu0 %3955, %v3692
  %v3957 = vpop.permute.xlu0 %3956
  %3958 = vset.pattern.permute.xlu0 0
  %3959 = vperm.xlu0 %3958, %v3693
  %v3960 = vpop.permute.xlu0 %3959
  %3961 = vset.pattern.permute.xlu0 0
  %3962 = vperm.xlu0 %3961, %v3694
  %v3963 = vpop.permute.xlu0 %3962
  %3964 = vset.pattern.permute.xlu0 0
  %3965 = vperm.xlu0 %3964, %v3695
  %v3966 = vpop.permute.xlu0 %3965
  %3967 = vset.pattern.permute.xlu0 0
  %3968 = vperm.xlu0 %3967, %v3696
  %v3969 = vpop.permute.xlu0 %3968
  %3970 = vset.pattern.permute.xlu0 0
  %3971 = vperm.xlu0 %3970, %v3697
  %v3972 = vpop.permute.xlu0 %3971
  %3973 = vset.pattern.permute.xlu0 0
  %3974 = vperm.xlu0 %3973, %v3698
  %v3975 = vpop.permute.xlu0 %3974
  %3976 = vset.pattern.permute.xlu0 0
  %3977 = vperm.xlu0 %3976, %v3699
  %v3978 = vpop.permute.xlu0 %3977
  %3979 = vset.pattern.permute.xlu0 0
  %3980 = vperm.xlu0 %3979, %v3700
  %v3981 = vpop.permute.xlu0 %3980
  %3982 = vset.pattern.permute.xlu0 0
  %3983 = vperm.xlu0 %3982, %v3701
  %v3984 = vpop.permute.xlu0 %3983
  %3985 = vset.pattern.permute.xlu0 0
  %3986 = vperm.xlu0 %3985, %v3702
  %v3987 = vpop.permute.xlu0 %3986
  %3988 = vset.pattern.permute.xlu0 0
  %3989 = vperm.xlu0 %3988, %v3703
  %v3990 = vpop.permute.xlu0 %3989
  %3991 = vset.pattern.permute.xlu0 0
  %3992 = vperm.xlu0 %3991, %v3704
  %v3993 = vpop.permute.xlu0 %3992
  %3994 = vset.pattern.permute.xlu0 0
  %3995 = vperm.xlu0 %3994, %v3705
  %v3996 = vpop.permute.xlu0 %3995
  %3997 = vset.pattern.permute.xlu0 0
  %3998 = vperm.xlu0 %3997, %v3706
  %v3999 = vpop.permute.xlu0 %3998
  %4000 = vset.pattern.permute.xlu0 0
  %4001 = vperm.xlu0 %4000, %v3707
  %v4002 = vpop.permute.xlu0 %4001
  %4003 = vset.pattern.permute.xlu0 0
  %4004 = vperm.xlu0 %4003, %v3708
  %v4005 = vpop.permute.xlu0 %4004
  %v4006 = vperm.slane %v3792, %v1727
  %v4007 = vperm.slane %v3795, %v1729
  %v4008 = vsel %vm1731, %v4007, %v4006
  %v4009 = vperm.slane %v3798, %v1727
  %v4010 = vperm.slane %v3801, %v1729
  %v4011 = vsel %vm1731, %v4010, %v4009
  %v4012 = vperm.slane %v3804, %v1727
  %v4013 = vperm.slane %v3807, %v1729
  %v4014 = vsel %vm1731, %v4013, %v4012
  %v4015 = vperm.slane %v3810, %v1727
  %v4016 = vperm.slane %v3813, %v1729
  %v4017 = vsel %vm1731, %v4016, %v4015
  %v4018 = vperm.slane %v3816, %v1727
  %v4019 = vperm.slane %v3819, %v1729
  %v4020 = vsel %vm1731, %v4019, %v4018
  %v4021 = vperm.slane %v3822, %v1727
  %v4022 = vperm.slane %v3825, %v1729
  %v4023 = vsel %vm1731, %v4022, %v4021
  %v4024 = vperm.slane %v3828, %v1727
  %v4025 = vperm.slane %v3831, %v1729
  %v4026 = vsel %vm1731, %v4025, %v4024
  %v4027 = vperm.slane %v3834, %v1727
  %v4028 = vperm.slane %v3837, %v1729
  %v4029 = vsel %vm1731, %v4028, %v4027
  %v4030 = vperm.slane %v3840, %v1727
  %v4031 = vperm.slane %v3843, %v1729
  %v4032 = vsel %vm1731, %v4031, %v4030
  %v4033 = vperm.slane %v3846, %v1727
  %v4034 = vperm.slane %v3849, %v1729
  %v4035 = vsel %vm1731, %v4034, %v4033
  %v4036 = vperm.slane %v3852, %v1727
  %v4037 = vperm.slane %v3855, %v1729
  %v4038 = vsel %vm1731, %v4037, %v4036
  %v4039 = vperm.slane %v3858, %v1727
  %v4040 = vperm.slane %v3861, %v1729
  %v4041 = vsel %vm1731, %v4040, %v4039
  %v4042 = vperm.slane %v3864, %v1727
  %v4043 = vperm.slane %v3867, %v1729
  %v4044 = vsel %vm1731, %v4043, %v4042
  %v4045 = vperm.slane %v3870, %v1727
  %v4046 = vperm.slane %v3873, %v1729
  %v4047 = vsel %vm1731, %v4046, %v4045
  %v4048 = vperm.slane %v3876, %v1727
  %v4049 = vperm.slane %v3879, %v1729
  %v4050 = vsel %vm1731, %v4049, %v4048
  %v4051 = vperm.slane %v3882, %v1727
  %v4052 = vperm.slane %v3885, %v1729
  %v4053 = vsel %vm1731, %v4052, %v4051
  %v4054 = vperm.slane %v3888, %v1727
  %v4055 = vperm.slane %v3891, %v1729
  %v4056 = vsel %vm1731, %v4055, %v4054
  %v4057 = vperm.slane %v3894, %v1727
  %v4058 = vperm.slane %v3897, %v1729
  %v4059 = vsel %vm1731, %v4058, %v4057
  %v4060 = vperm.slane %v3900, %v1727
  %v4061 = vperm.slane %v3903, %v1729
  %v4062 = vsel %vm1731, %v4061, %v4060
  %v4063 = vperm.slane %v3906, %v1727
  %v4064 = vperm.slane %v3909, %v1729
  %v4065 = vsel %vm1731, %v4064, %v4063
  %v4066 = vperm.slane %v3912, %v1727
  %v4067 = vperm.slane %v3915, %v1729
  %v4068 = vsel %vm1731, %v4067, %v4066
  %v4069 = vperm.slane %v3918, %v1727
  %v4070 = vperm.slane %v3921, %v1729
  %v4071 = vsel %vm1731, %v4070, %v4069
  %v4072 = vperm.slane %v3924, %v1727
  %v4073 = vperm.slane %v3927, %v1729
  %v4074 = vsel %vm1731, %v4073, %v4072
  %v4075 = vperm.slane %v3930, %v1727
  %v4076 = vperm.slane %v3933, %v1729
  %v4077 = vsel %vm1731, %v4076, %v4075
  %v4078 = vperm.slane %v3936, %v1727
  %v4079 = vperm.slane %v3939, %v1729
  %v4080 = vsel %vm1731, %v4079, %v4078
  %v4081 = vperm.slane %v3942, %v1727
  %v4082 = vperm.slane %v3945, %v1729
  %v4083 = vsel %vm1731, %v4082, %v4081
  %v4084 = vperm.slane %v3948, %v1727
  %v4085 = vperm.slane %v3951, %v1729
  %v4086 = vsel %vm1731, %v4085, %v4084
  %v4087 = vperm.slane %v3954, %v1727
  %v4088 = vperm.slane %v3957, %v1729
  %v4089 = vsel %vm1731, %v4088, %v4087
  %v4090 = vperm.slane %v3960, %v1727
  %v4091 = vperm.slane %v3963, %v1729
  %v4092 = vsel %vm1731, %v4091, %v4090
  %v4093 = vperm.slane %v3966, %v1727
  %v4094 = vperm.slane %v3969, %v1729
  %v4095 = vsel %vm1731, %v4094, %v4093
  %v4096 = vperm.slane %v3972, %v1727
  %v4097 = vperm.slane %v3975, %v1729
  %v4098 = vsel %vm1731, %v4097, %v4096
  %v4099 = vperm.slane %v3978, %v1727
  %v4100 = vperm.slane %v3981, %v1729
  %v4101 = vsel %vm1731, %v4100, %v4099
  %v4102 = vperm.slane %v3984, %v1727
  %v4103 = vperm.slane %v3987, %v1729
  %v4104 = vsel %vm1731, %v4103, %v4102
  %v4105 = vperm.slane %v3990, %v1727
  %v4106 = vperm.slane %v3993, %v1729
  %v4107 = vsel %vm1731, %v4106, %v4105
  %v4108 = vperm.slane %v3996, %v1727
  %v4109 = vperm.slane %v3999, %v1729
  %v4110 = vsel %vm1731, %v4109, %v4108
  %v4111 = vperm.slane %v4002, %v1727
  %v4112 = vperm.slane %v4005, %v1729
  %v4113 = vsel %vm1731, %v4112, %v4111
  %v4114 = vsel %vm1838, %v4011, %v4008
  %v4115 = vsel %vm1840, %v4014, %v4114
  %v4116 = vsel %vm1842, %v4017, %v4115
  %v4117 = vsel %vm1844, %v4020, %v4116
  %v4118 = vsel %vm1846, %v4023, %v4117
  %v4119 = vsel %vm1848, %v4026, %v4118
  %v4120 = vsel %vm1850, %v4029, %v4119
  %v4121 = vsel %vm1838, %v4038, %v4035
  %v4122 = vsel %vm1840, %v4041, %v4121
  %v4123 = vsel %vm1842, %v4044, %v4122
  %v4124 = vsel %vm1844, %v4047, %v4123
  %v4125 = vsel %vm1846, %v4050, %v4124
  %v4126 = vsel %vm1848, %v4053, %v4125
  %v4127 = vsel %vm1850, %v4056, %v4126
  %v4128 = vsel %vm1838, %v4065, %v4062
  %v4129 = vsel %vm1840, %v4068, %v4128
  %v4130 = vsel %vm1842, %v4071, %v4129
  %v4131 = vsel %vm1844, %v4074, %v4130
  %v4132 = vsel %vm1846, %v4077, %v4131
  %v4133 = vsel %vm1848, %v4080, %v4132
  %v4134 = vsel %vm1850, %v4083, %v4133
  %v4135 = vsel %vm1838, %v4092, %v4089
  %v4136 = vsel %vm1840, %v4095, %v4135
  %v4137 = vsel %vm1842, %v4098, %v4136
  %v4138 = vsel %vm1844, %v4101, %v4137
  %v4139 = vsel %vm1846, %v4104, %v4138
  %v4140 = vsel %vm1848, %v4107, %v4139
  %v4141 = vsel %vm1850, %v4110, %v4140
  %v4150 = vsel %vm3716, %v4120, -100000.0
  %v4151 = vsel %vm3717, %v4032, -100000.0
  %v4152 = vsel %vm3716, %v4127, -100000.0
  %v4153 = vsel %vm3717, %v4059, -100000.0
  %v4154 = vsel %vm3716, %v4134, -100000.0
  %v4155 = vsel %vm3717, %v4086, -100000.0
  %v4156 = vsel %vm3716, %v4141, -100000.0
  %v4157 = vsel %vm3717, %v4113, -100000.0
  %v4158 = vsel %vm1889, %v4150, -inf
  %4159 = vmax.xlane.f32.xlu0 %v4158
  %v4160 = vpop.xlane.xlu0 %4159
  %v4161 = vsel %vm1893, %v4151, -inf
  %4162 = vmax.xlane.f32.xlu0 %v4161
  %v4163 = vpop.xlane.xlu0 %4162
  %v4164 = vsel %vm1889, %v4152, -inf
  %4165 = vmax.xlane.f32.xlu0 %v4164
  %v4166 = vpop.xlane.xlu0 %4165
  %v4167 = vsel %vm1893, %v4153, -inf
  %4168 = vmax.xlane.f32.xlu0 %v4167
  %v4169 = vpop.xlane.xlu0 %4168
  %v4170 = vsel %vm1889, %v4154, -inf
  %4171 = vmax.xlane.f32.xlu0 %v4170
  %v4172 = vpop.xlane.xlu0 %4171
  %v4173 = vsel %vm1893, %v4155, -inf
  %4174 = vmax.xlane.f32.xlu0 %v4173
  %v4175 = vpop.xlane.xlu0 %4174
  %v4176 = vsel %vm1889, %v4156, -inf
  %4177 = vmax.xlane.f32.xlu0 %v4176
  %v4178 = vpop.xlane.xlu0 %4177
  %v4179 = vsel %vm1893, %v4157, -inf
  %4180 = vmax.xlane.f32.xlu0 %v4179
  %v4181 = vpop.xlane.xlu0 %4180
  %v4182 = vsub.f32 %v4150, %v4160
  %v4183 = vsub.f32 %v4151, %v4163
  %v4184 = vsub.f32 %v4152, %v4166
  %v4185 = vsub.f32 %v4153, %v4169
  %v4186 = vsub.f32 %v4154, %v4172
  %v4187 = vsub.f32 %v4155, %v4175
  %v4188 = vsub.f32 %v4156, %v4178
  %v4189 = vsub.f32 %v4157, %v4181
  %v4190 = vmul.f32 %v4182, 1.442695
  %v4191 = vpow.pop %v4190
  %v4192 = vmul.f32 %v4183, 1.442695
  %v4193 = vpow.pop %v4192
  %v4194 = vmul.f32 %v4184, 1.442695
  %v4195 = vpow.pop %v4194
  %v4196 = vmul.f32 %v4185, 1.442695
  %v4197 = vpow.pop %v4196
  %v4198 = vmul.f32 %v4186, 1.442695
  %v4199 = vpow.pop %v4198
  %v4200 = vmul.f32 %v4187, 1.442695
  %v4201 = vpow.pop %v4200
  %v4202 = vmul.f32 %v4188, 1.442695
  %v4203 = vpow.pop %v4202
  %v4204 = vmul.f32 %v4189, 1.442695
  %v4205 = vpow.pop %v4204
  %v4206 = vsel %vm1889, %v4191, 0.0
  %4207 = vadd.xlane.f32.xlu0 %v4206
  %v4208 = vpop.xlane.xlu0 %4207
  %v4209 = vsel %vm1893, %v4193, 0.0
  %4210 = vadd.xlane.f32.xlu0 %v4209
  %v4211 = vpop.xlane.xlu0 %4210
  %v4212 = vsel %vm1889, %v4195, 0.0
  %4213 = vadd.xlane.f32.xlu0 %v4212
  %v4214 = vpop.xlane.xlu0 %4213
  %v4215 = vsel %vm1893, %v4197, 0.0
  %4216 = vadd.xlane.f32.xlu0 %v4215
  %v4217 = vpop.xlane.xlu0 %4216
  %v4218 = vsel %vm1889, %v4199, 0.0
  %4219 = vadd.xlane.f32.xlu0 %v4218
  %v4220 = vpop.xlane.xlu0 %4219
  %v4221 = vsel %vm1893, %v4201, 0.0
  %4222 = vadd.xlane.f32.xlu0 %v4221
  %v4223 = vpop.xlane.xlu0 %4222
  %v4224 = vsel %vm1889, %v4203, 0.0
  %4225 = vadd.xlane.f32.xlu0 %v4224
  %v4226 = vpop.xlane.xlu0 %4225
  %v4227 = vsel %vm1893, %v4205, 0.0
  %4228 = vadd.xlane.f32.xlu0 %v4227
  %v4229 = vpop.xlane.xlu0 %4228
  %v4230 = vrcp.pop %v4208
  %v4231 = vmul.f32 %v4208, %v4230
  %v4232 = vsub.f32 1.0, %v4231
  %v4233 = vmul.f32 %v4230, %v4232
  %v4234 = vadd.f32 %v4230, %v4233
  %vm4235 = vweird.f32 %v4208
  %vm4236 = vweird.f32 %v4230
  %vm4237 = vmor %vm4235, %vm4236
  %v4238 = vsel %vm4237, %v4230, %v4234
  %v4239 = vand.u32 2147483647, %v4208
  %vm4240 = vcmp.eq.f32.partialorder %v4239, 8.507059e+37
  %v4241 = vand.u32 %v4208, 2147483648
  %v4242 = vor.u32 1.1754944e-38, %v4241
  %v4243 = vsel %vm4240, %v4242, %v4238
  %v4244 = vmul.f32 %v4191, %v4243
  %v4245 = vrcp.pop %v4211
  %v4246 = vmul.f32 %v4211, %v4245
  %v4247 = vsub.f32 1.0, %v4246
  %v4248 = vmul.f32 %v4245, %v4247
  %v4249 = vadd.f32 %v4245, %v4248
  %vm4250 = vweird.f32 %v4211
  %vm4251 = vweird.f32 %v4245
  %vm4252 = vmor %vm4250, %vm4251
  %v4253 = vsel %vm4252, %v4245, %v4249
  %v4254 = vand.u32 2147483647, %v4211
  %vm4255 = vcmp.eq.f32.partialorder %v4254, 8.507059e+37
  %v4256 = vand.u32 %v4211, 2147483648
  %v4257 = vor.u32 1.1754944e-38, %v4256
  %v4258 = vsel %vm4255, %v4257, %v4253
  %v4259 = vmul.f32 %v4193, %v4258
  %v4260 = vrcp.pop %v4214
  %v4261 = vmul.f32 %v4214, %v4260
  %v4262 = vsub.f32 1.0, %v4261
  %v4263 = vmul.f32 %v4260, %v4262
  %v4264 = vadd.f32 %v4260, %v4263
  %vm4265 = vweird.f32 %v4214
  %vm4266 = vweird.f32 %v4260
  %vm4267 = vmor %vm4265, %vm4266
  %v4268 = vsel %vm4267, %v4260, %v4264
  %v4269 = vand.u32 2147483647, %v4214
  %vm4270 = vcmp.eq.f32.partialorder %v4269, 8.507059e+37
  %v4271 = vand.u32 %v4214, 2147483648
  %v4272 = vor.u32 1.1754944e-38, %v4271
  %v4273 = vsel %vm4270, %v4272, %v4268
  %v4274 = vmul.f32 %v4195, %v4273
  %v4275 = vrcp.pop %v4217
  %v4276 = vmul.f32 %v4217, %v4275
  %v4277 = vsub.f32 1.0, %v4276
  %v4278 = vmul.f32 %v4275, %v4277
  %v4279 = vadd.f32 %v4275, %v4278
  %vm4280 = vweird.f32 %v4217
  %vm4281 = vweird.f32 %v4275
  %vm4282 = vmor %vm4280, %vm4281
  %v4283 = vsel %vm4282, %v4275, %v4279
  %v4284 = vand.u32 2147483647, %v4217
  %vm4285 = vcmp.eq.f32.partialorder %v4284, 8.507059e+37
  %v4286 = vand.u32 %v4217, 2147483648
  %v4287 = vor.u32 1.1754944e-38, %v4286
  %v4288 = vsel %vm4285, %v4287, %v4283
  %v4289 = vmul.f32 %v4197, %v4288
  %v4290 = vrcp.pop %v4220
  %v4291 = vmul.f32 %v4220, %v4290
  %v4292 = vsub.f32 1.0, %v4291
  %v4293 = vmul.f32 %v4290, %v4292
  %v4294 = vadd.f32 %v4290, %v4293
  %vm4295 = vweird.f32 %v4220
  %vm4296 = vweird.f32 %v4290
  %vm4297 = vmor %vm4295, %vm4296
  %v4298 = vsel %vm4297, %v4290, %v4294
  %v4299 = vand.u32 2147483647, %v4220
  %vm4300 = vcmp.eq.f32.partialorder %v4299, 8.507059e+37
  %v4301 = vand.u32 %v4220, 2147483648
  %v4302 = vor.u32 1.1754944e-38, %v4301
  %v4303 = vsel %vm4300, %v4302, %v4298
  %v4304 = vmul.f32 %v4199, %v4303
  %v4305 = vrcp.pop %v4223
  %v4306 = vmul.f32 %v4223, %v4305
  %v4307 = vsub.f32 1.0, %v4306
  %v4308 = vmul.f32 %v4305, %v4307
  %v4309 = vadd.f32 %v4305, %v4308
  %vm4310 = vweird.f32 %v4223
  %vm4311 = vweird.f32 %v4305
  %vm4312 = vmor %vm4310, %vm4311
  %v4313 = vsel %vm4312, %v4305, %v4309
  %v4314 = vand.u32 2147483647, %v4223
  %vm4315 = vcmp.eq.f32.partialorder %v4314, 8.507059e+37
  %v4316 = vand.u32 %v4223, 2147483648
  %v4317 = vor.u32 1.1754944e-38, %v4316
  %v4318 = vsel %vm4315, %v4317, %v4313
  %v4319 = vmul.f32 %v4201, %v4318
  %v4320 = vrcp.pop %v4226
  %v4321 = vmul.f32 %v4226, %v4320
  %v4322 = vsub.f32 1.0, %v4321
  %v4323 = vmul.f32 %v4320, %v4322
  %v4324 = vadd.f32 %v4320, %v4323
  %vm4325 = vweird.f32 %v4226
  %vm4326 = vweird.f32 %v4320
  %vm4327 = vmor %vm4325, %vm4326
  %v4328 = vsel %vm4327, %v4320, %v4324
  %v4329 = vand.u32 2147483647, %v4226
  %vm4330 = vcmp.eq.f32.partialorder %v4329, 8.507059e+37
  %v4331 = vand.u32 %v4226, 2147483648
  %v4332 = vor.u32 1.1754944e-38, %v4331
  %v4333 = vsel %vm4330, %v4332, %v4328
  %v4334 = vmul.f32 %v4203, %v4333
  %v4335 = vrcp.pop %v4229
  %v4336 = vmul.f32 %v4229, %v4335
  %v4337 = vsub.f32 1.0, %v4336
  %v4338 = vmul.f32 %v4335, %v4337
  %v4339 = vadd.f32 %v4335, %v4338
  %vm4340 = vweird.f32 %v4229
  %vm4341 = vweird.f32 %v4335
  %vm4342 = vmor %vm4340, %vm4341
  %v4343 = vsel %vm4342, %v4335, %v4339
  %v4344 = vand.u32 2147483647, %v4229
  %vm4345 = vcmp.eq.f32.partialorder %v4344, 8.507059e+37
  %v4346 = vand.u32 %v4229, 2147483648
  %v4347 = vor.u32 1.1754944e-38, %v4346
  %v4348 = vsel %vm4345, %v4347, %v4343
  %v4349 = vmul.f32 %v4205, %v4348
  %v4350 = vperm.slane %v4244, 0
  %v4351 = vlaneseq
  %v4352 = vshrl.u32 %v4351, 7
  %4354 = vset.pattern.permute.xlu0 %v4352
  %4355 = vperm.xlu0 %4354, %v4350
  %v4356 = vpop.permute.xlu0 %4355
  %v4357 = vlaneseq
  %v4358 = vshrl.u32 %v4357, 7
  %v4359 = vadd.s32 %v4358, 8
  %4360 = vset.pattern.permute.xlu0 %v4359
  %4361 = vperm.xlu0 %4360, %v4350
  %v4362 = vpop.permute.xlu0 %4361
  %v4363 = vperm.slane %v4244, 1
  %v4364 = vlaneseq
  %v4365 = vshrl.u32 %v4364, 7
  %4367 = vset.pattern.permute.xlu0 %v4365
  %4368 = vperm.xlu0 %4367, %v4363
  %v4369 = vpop.permute.xlu0 %4368
  %v4370 = vlaneseq
  %v4371 = vshrl.u32 %v4370, 7
  %v4372 = vadd.s32 %v4371, 8
  %4373 = vset.pattern.permute.xlu0 %v4372
  %4374 = vperm.xlu0 %4373, %v4363
  %v4375 = vpop.permute.xlu0 %4374
  %v4376 = vperm.slane %v4244, 2
  %v4377 = vlaneseq
  %v4378 = vshrl.u32 %v4377, 7
  %4380 = vset.pattern.permute.xlu0 %v4378
  %4381 = vperm.xlu0 %4380, %v4376
  %v4382 = vpop.permute.xlu0 %4381
  %v4383 = vlaneseq
  %v4384 = vshrl.u32 %v4383, 7
  %v4385 = vadd.s32 %v4384, 8
  %4386 = vset.pattern.permute.xlu0 %v4385
  %4387 = vperm.xlu0 %4386, %v4376
  %v4388 = vpop.permute.xlu0 %4387
  %v4389 = vperm.slane %v4244, 3
  %v4390 = vlaneseq
  %v4391 = vshrl.u32 %v4390, 7
  %4393 = vset.pattern.permute.xlu0 %v4391
  %4394 = vperm.xlu0 %4393, %v4389
  %v4395 = vpop.permute.xlu0 %4394
  %v4396 = vlaneseq
  %v4397 = vshrl.u32 %v4396, 7
  %v4398 = vadd.s32 %v4397, 8
  %4399 = vset.pattern.permute.xlu0 %v4398
  %4400 = vperm.xlu0 %4399, %v4389
  %v4401 = vpop.permute.xlu0 %4400
  %v4402 = vperm.slane %v4244, 4
  %v4403 = vlaneseq
  %v4404 = vshrl.u32 %v4403, 7
  %4406 = vset.pattern.permute.xlu0 %v4404
  %4407 = vperm.xlu0 %4406, %v4402
  %v4408 = vpop.permute.xlu0 %4407
  %v4409 = vlaneseq
  %v4410 = vshrl.u32 %v4409, 7
  %v4411 = vadd.s32 %v4410, 8
  %4412 = vset.pattern.permute.xlu0 %v4411
  %4413 = vperm.xlu0 %4412, %v4402
  %v4414 = vpop.permute.xlu0 %4413
  %v4415 = vperm.slane %v4244, 5
  %v4416 = vlaneseq
  %v4417 = vshrl.u32 %v4416, 7
  %4419 = vset.pattern.permute.xlu0 %v4417
  %4420 = vperm.xlu0 %4419, %v4415
  %v4421 = vpop.permute.xlu0 %4420
  %v4422 = vlaneseq
  %v4423 = vshrl.u32 %v4422, 7
  %v4424 = vadd.s32 %v4423, 8
  %4425 = vset.pattern.permute.xlu0 %v4424
  %4426 = vperm.xlu0 %4425, %v4415
  %v4427 = vpop.permute.xlu0 %4426
  %v4428 = vperm.slane %v4244, 6
  %v4429 = vlaneseq
  %v4430 = vshrl.u32 %v4429, 7
  %4432 = vset.pattern.permute.xlu0 %v4430
  %4433 = vperm.xlu0 %4432, %v4428
  %v4434 = vpop.permute.xlu0 %4433
  %v4435 = vlaneseq
  %v4436 = vshrl.u32 %v4435, 7
  %v4437 = vadd.s32 %v4436, 8
  %4438 = vset.pattern.permute.xlu0 %v4437
  %4439 = vperm.xlu0 %4438, %v4428
  %v4440 = vpop.permute.xlu0 %4439
  %v4441 = vperm.slane %v4244, 7
  %v4442 = vlaneseq
  %v4443 = vshrl.u32 %v4442, 7
  %4445 = vset.pattern.permute.xlu0 %v4443
  %4446 = vperm.xlu0 %4445, %v4441
  %v4447 = vpop.permute.xlu0 %4446
  %v4448 = vlaneseq
  %v4449 = vshrl.u32 %v4448, 7
  %v4450 = vadd.s32 %v4449, 8
  %4451 = vset.pattern.permute.xlu0 %v4450
  %4452 = vperm.xlu0 %4451, %v4441
  %v4453 = vpop.permute.xlu0 %4452
  %v4454 = vperm.slane %v4259, 0
  %v4455 = vlaneseq
  %v4456 = vshrl.u32 %v4455, 7
  %4458 = vset.pattern.permute.xlu0 %v4456
  %4459 = vperm.xlu0 %4458, %v4454
  %v4460 = vpop.permute.xlu0 %4459
  %v4461 = vlaneseq
  %v4462 = vshrl.u32 %v4461, 7
  %v4463 = vadd.s32 %v4462, 8
  %4464 = vset.pattern.permute.xlu0 %v4463
  %4465 = vperm.xlu0 %4464, %v4454
  %v4466 = vpop.permute.xlu0 %4465
  %v4467 = vperm.slane %v4274, 0
  %v4468 = vlaneseq
  %v4469 = vshrl.u32 %v4468, 7
  %4471 = vset.pattern.permute.xlu0 %v4469
  %4472 = vperm.xlu0 %4471, %v4467
  %v4473 = vpop.permute.xlu0 %4472
  %v4474 = vlaneseq
  %v4475 = vshrl.u32 %v4474, 7
  %v4476 = vadd.s32 %v4475, 8
  %4477 = vset.pattern.permute.xlu0 %v4476
  %4478 = vperm.xlu0 %4477, %v4467
  %v4479 = vpop.permute.xlu0 %4478
  %v4480 = vperm.slane %v4274, 1
  %v4481 = vlaneseq
  %v4482 = vshrl.u32 %v4481, 7
  %4484 = vset.pattern.permute.xlu0 %v4482
  %4485 = vperm.xlu0 %4484, %v4480
  %v4486 = vpop.permute.xlu0 %4485
  %v4487 = vlaneseq
  %v4488 = vshrl.u32 %v4487, 7
  %v4489 = vadd.s32 %v4488, 8
  %4490 = vset.pattern.permute.xlu0 %v4489
  %4491 = vperm.xlu0 %4490, %v4480
  %v4492 = vpop.permute.xlu0 %4491
  %v4493 = vperm.slane %v4274, 2
  %v4494 = vlaneseq
  %v4495 = vshrl.u32 %v4494, 7
  %4497 = vset.pattern.permute.xlu0 %v4495
  %4498 = vperm.xlu0 %4497, %v4493
  %v4499 = vpop.permute.xlu0 %4498
  %v4500 = vlaneseq
  %v4501 = vshrl.u32 %v4500, 7
  %v4502 = vadd.s32 %v4501, 8
  %4503 = vset.pattern.permute.xlu0 %v4502
  %4504 = vperm.xlu0 %4503, %v4493
  %v4505 = vpop.permute.xlu0 %4504
  %v4506 = vperm.slane %v4274, 3
  %v4507 = vlaneseq
  %v4508 = vshrl.u32 %v4507, 7
  %4510 = vset.pattern.permute.xlu0 %v4508
  %4511 = vperm.xlu0 %4510, %v4506
  %v4512 = vpop.permute.xlu0 %4511
  %v4513 = vlaneseq
  %v4514 = vshrl.u32 %v4513, 7
  %v4515 = vadd.s32 %v4514, 8
  %4516 = vset.pattern.permute.xlu0 %v4515
  %4517 = vperm.xlu0 %4516, %v4506
  %v4518 = vpop.permute.xlu0 %4517
  %v4519 = vperm.slane %v4274, 4
  %v4520 = vlaneseq
  %v4521 = vshrl.u32 %v4520, 7
  %4523 = vset.pattern.permute.xlu0 %v4521
  %4524 = vperm.xlu0 %4523, %v4519
  %v4525 = vpop.permute.xlu0 %4524
  %v4526 = vlaneseq
  %v4527 = vshrl.u32 %v4526, 7
  %v4528 = vadd.s32 %v4527, 8
  %4529 = vset.pattern.permute.xlu0 %v4528
  %4530 = vperm.xlu0 %4529, %v4519
  %v4531 = vpop.permute.xlu0 %4530
  %v4532 = vperm.slane %v4274, 5
  %v4533 = vlaneseq
  %v4534 = vshrl.u32 %v4533, 7
  %4536 = vset.pattern.permute.xlu0 %v4534
  %4537 = vperm.xlu0 %4536, %v4532
  %v4538 = vpop.permute.xlu0 %4537
  %v4539 = vlaneseq
  %v4540 = vshrl.u32 %v4539, 7
  %v4541 = vadd.s32 %v4540, 8
  %4542 = vset.pattern.permute.xlu0 %v4541
  %4543 = vperm.xlu0 %4542, %v4532
  %v4544 = vpop.permute.xlu0 %4543
  %v4545 = vperm.slane %v4274, 6
  %v4546 = vlaneseq
  %v4547 = vshrl.u32 %v4546, 7
  %4549 = vset.pattern.permute.xlu0 %v4547
  %4550 = vperm.xlu0 %4549, %v4545
  %v4551 = vpop.permute.xlu0 %4550
  %v4552 = vlaneseq
  %v4553 = vshrl.u32 %v4552, 7
  %v4554 = vadd.s32 %v4553, 8
  %4555 = vset.pattern.permute.xlu0 %v4554
  %4556 = vperm.xlu0 %4555, %v4545
  %v4557 = vpop.permute.xlu0 %4556
  %v4558 = vperm.slane %v4274, 7
  %v4559 = vlaneseq
  %v4560 = vshrl.u32 %v4559, 7
  %4562 = vset.pattern.permute.xlu0 %v4560
  %4563 = vperm.xlu0 %4562, %v4558
  %v4564 = vpop.permute.xlu0 %4563
  %v4565 = vlaneseq
  %v4566 = vshrl.u32 %v4565, 7
  %v4567 = vadd.s32 %v4566, 8
  %4568 = vset.pattern.permute.xlu0 %v4567
  %4569 = vperm.xlu0 %4568, %v4558
  %v4570 = vpop.permute.xlu0 %4569
  %v4571 = vperm.slane %v4289, 0
  %v4572 = vlaneseq
  %v4573 = vshrl.u32 %v4572, 7
  %4575 = vset.pattern.permute.xlu0 %v4573
  %4576 = vperm.xlu0 %4575, %v4571
  %v4577 = vpop.permute.xlu0 %4576
  %v4578 = vlaneseq
  %v4579 = vshrl.u32 %v4578, 7
  %v4580 = vadd.s32 %v4579, 8
  %4581 = vset.pattern.permute.xlu0 %v4580
  %4582 = vperm.xlu0 %4581, %v4571
  %v4583 = vpop.permute.xlu0 %4582
  %v4584 = vperm.slane %v4304, 0
  %v4585 = vlaneseq
  %v4586 = vshrl.u32 %v4585, 7
  %4588 = vset.pattern.permute.xlu0 %v4586
  %4589 = vperm.xlu0 %4588, %v4584
  %v4590 = vpop.permute.xlu0 %4589
  %v4591 = vlaneseq
  %v4592 = vshrl.u32 %v4591, 7
  %v4593 = vadd.s32 %v4592, 8
  %4594 = vset.pattern.permute.xlu0 %v4593
  %4595 = vperm.xlu0 %4594, %v4584
  %v4596 = vpop.permute.xlu0 %4595
  %v4597 = vperm.slane %v4304, 1
  %v4598 = vlaneseq
  %v4599 = vshrl.u32 %v4598, 7
  %4601 = vset.pattern.permute.xlu0 %v4599
  %4602 = vperm.xlu0 %4601, %v4597
  %v4603 = vpop.permute.xlu0 %4602
  %v4604 = vlaneseq
  %v4605 = vshrl.u32 %v4604, 7
  %v4606 = vadd.s32 %v4605, 8
  %4607 = vset.pattern.permute.xlu0 %v4606
  %4608 = vperm.xlu0 %4607, %v4597
  %v4609 = vpop.permute.xlu0 %4608
  %v4610 = vperm.slane %v4304, 2
  %v4611 = vlaneseq
  %v4612 = vshrl.u32 %v4611, 7
  %4614 = vset.pattern.permute.xlu0 %v4612
  %4615 = vperm.xlu0 %4614, %v4610
  %v4616 = vpop.permute.xlu0 %4615
  %v4617 = vlaneseq
  %v4618 = vshrl.u32 %v4617, 7
  %v4619 = vadd.s32 %v4618, 8
  %4620 = vset.pattern.permute.xlu0 %v4619
  %4621 = vperm.xlu0 %4620, %v4610
  %v4622 = vpop.permute.xlu0 %4621
  %v4623 = vperm.slane %v4304, 3
  %v4624 = vlaneseq
  %v4625 = vshrl.u32 %v4624, 7
  %4627 = vset.pattern.permute.xlu0 %v4625
  %4628 = vperm.xlu0 %4627, %v4623
  %v4629 = vpop.permute.xlu0 %4628
  %v4630 = vlaneseq
  %v4631 = vshrl.u32 %v4630, 7
  %v4632 = vadd.s32 %v4631, 8
  %4633 = vset.pattern.permute.xlu0 %v4632
  %4634 = vperm.xlu0 %4633, %v4623
  %v4635 = vpop.permute.xlu0 %4634
  %v4636 = vperm.slane %v4304, 4
  %v4637 = vlaneseq
  %v4638 = vshrl.u32 %v4637, 7
  %4640 = vset.pattern.permute.xlu0 %v4638
  %4641 = vperm.xlu0 %4640, %v4636
  %v4642 = vpop.permute.xlu0 %4641
  %v4643 = vlaneseq
  %v4644 = vshrl.u32 %v4643, 7
  %v4645 = vadd.s32 %v4644, 8
  %4646 = vset.pattern.permute.xlu0 %v4645
  %4647 = vperm.xlu0 %4646, %v4636
  %v4648 = vpop.permute.xlu0 %4647
  %v4649 = vperm.slane %v4304, 5
  %v4650 = vlaneseq
  %v4651 = vshrl.u32 %v4650, 7
  %4653 = vset.pattern.permute.xlu0 %v4651
  %4654 = vperm.xlu0 %4653, %v4649
  %v4655 = vpop.permute.xlu0 %4654
  %v4656 = vlaneseq
  %v4657 = vshrl.u32 %v4656, 7
  %v4658 = vadd.s32 %v4657, 8
  %4659 = vset.pattern.permute.xlu0 %v4658
  %4660 = vperm.xlu0 %4659, %v4649
  %v4661 = vpop.permute.xlu0 %4660
  %v4662 = vperm.slane %v4304, 6
  %v4663 = vlaneseq
  %v4664 = vshrl.u32 %v4663, 7
  %4666 = vset.pattern.permute.xlu0 %v4664
  %4667 = vperm.xlu0 %4666, %v4662
  %v4668 = vpop.permute.xlu0 %4667
  %v4669 = vlaneseq
  %v4670 = vshrl.u32 %v4669, 7
  %v4671 = vadd.s32 %v4670, 8
  %4672 = vset.pattern.permute.xlu0 %v4671
  %4673 = vperm.xlu0 %4672, %v4662
  %v4674 = vpop.permute.xlu0 %4673
  %v4675 = vperm.slane %v4304, 7
  %v4676 = vlaneseq
  %v4677 = vshrl.u32 %v4676, 7
  %4679 = vset.pattern.permute.xlu0 %v4677
  %4680 = vperm.xlu0 %4679, %v4675
  %v4681 = vpop.permute.xlu0 %4680
  %v4682 = vlaneseq
  %v4683 = vshrl.u32 %v4682, 7
  %v4684 = vadd.s32 %v4683, 8
  %4685 = vset.pattern.permute.xlu0 %v4684
  %4686 = vperm.xlu0 %4685, %v4675
  %v4687 = vpop.permute.xlu0 %4686
  %v4688 = vperm.slane %v4319, 0
  %v4689 = vlaneseq
  %v4690 = vshrl.u32 %v4689, 7
  %4692 = vset.pattern.permute.xlu0 %v4690
  %4693 = vperm.xlu0 %4692, %v4688
  %v4694 = vpop.permute.xlu0 %4693
  %v4695 = vlaneseq
  %v4696 = vshrl.u32 %v4695, 7
  %v4697 = vadd.s32 %v4696, 8
  %4698 = vset.pattern.permute.xlu0 %v4697
  %4699 = vperm.xlu0 %4698, %v4688
  %v4700 = vpop.permute.xlu0 %4699
  %v4701 = vperm.slane %v4334, 0
  %v4702 = vlaneseq
  %v4703 = vshrl.u32 %v4702, 7
  %4705 = vset.pattern.permute.xlu0 %v4703
  %4706 = vperm.xlu0 %4705, %v4701
  %v4707 = vpop.permute.xlu0 %4706
  %v4708 = vlaneseq
  %v4709 = vshrl.u32 %v4708, 7
  %v4710 = vadd.s32 %v4709, 8
  %4711 = vset.pattern.permute.xlu0 %v4710
  %4712 = vperm.xlu0 %4711, %v4701
  %v4713 = vpop.permute.xlu0 %4712
  %v4714 = vperm.slane %v4334, 1
  %v4715 = vlaneseq
  %v4716 = vshrl.u32 %v4715, 7
  %4718 = vset.pattern.permute.xlu0 %v4716
  %4719 = vperm.xlu0 %4718, %v4714
  %v4720 = vpop.permute.xlu0 %4719
  %v4721 = vlaneseq
  %v4722 = vshrl.u32 %v4721, 7
  %v4723 = vadd.s32 %v4722, 8
  %4724 = vset.pattern.permute.xlu0 %v4723
  %4725 = vperm.xlu0 %4724, %v4714
  %v4726 = vpop.permute.xlu0 %4725
  %v4727 = vperm.slane %v4334, 2
  %v4728 = vlaneseq
  %v4729 = vshrl.u32 %v4728, 7
  %4731 = vset.pattern.permute.xlu0 %v4729
  %4732 = vperm.xlu0 %4731, %v4727
  %v4733 = vpop.permute.xlu0 %4732
  %v4734 = vlaneseq
  %v4735 = vshrl.u32 %v4734, 7
  %v4736 = vadd.s32 %v4735, 8
  %4737 = vset.pattern.permute.xlu0 %v4736
  %4738 = vperm.xlu0 %4737, %v4727
  %v4739 = vpop.permute.xlu0 %4738
  %v4740 = vperm.slane %v4334, 3
  %v4741 = vlaneseq
  %v4742 = vshrl.u32 %v4741, 7
  %4744 = vset.pattern.permute.xlu0 %v4742
  %4745 = vperm.xlu0 %4744, %v4740
  %v4746 = vpop.permute.xlu0 %4745
  %v4747 = vlaneseq
  %v4748 = vshrl.u32 %v4747, 7
  %v4749 = vadd.s32 %v4748, 8
  %4750 = vset.pattern.permute.xlu0 %v4749
  %4751 = vperm.xlu0 %4750, %v4740
  %v4752 = vpop.permute.xlu0 %4751
  %v4753 = vperm.slane %v4334, 4
  %v4754 = vlaneseq
  %v4755 = vshrl.u32 %v4754, 7
  %4757 = vset.pattern.permute.xlu0 %v4755
  %4758 = vperm.xlu0 %4757, %v4753
  %v4759 = vpop.permute.xlu0 %4758
  %v4760 = vlaneseq
  %v4761 = vshrl.u32 %v4760, 7
  %v4762 = vadd.s32 %v4761, 8
  %4763 = vset.pattern.permute.xlu0 %v4762
  %4764 = vperm.xlu0 %4763, %v4753
  %v4765 = vpop.permute.xlu0 %4764
  %v4766 = vperm.slane %v4334, 5
  %v4767 = vlaneseq
  %v4768 = vshrl.u32 %v4767, 7
  %4770 = vset.pattern.permute.xlu0 %v4768
  %4771 = vperm.xlu0 %4770, %v4766
  %v4772 = vpop.permute.xlu0 %4771
  %v4773 = vlaneseq
  %v4774 = vshrl.u32 %v4773, 7
  %v4775 = vadd.s32 %v4774, 8
  %4776 = vset.pattern.permute.xlu0 %v4775
  %4777 = vperm.xlu0 %4776, %v4766
  %v4778 = vpop.permute.xlu0 %4777
  %v4779 = vperm.slane %v4334, 6
  %v4780 = vlaneseq
  %v4781 = vshrl.u32 %v4780, 7
  %4783 = vset.pattern.permute.xlu0 %v4781
  %4784 = vperm.xlu0 %4783, %v4779
  %v4785 = vpop.permute.xlu0 %4784
  %v4786 = vlaneseq
  %v4787 = vshrl.u32 %v4786, 7
  %v4788 = vadd.s32 %v4787, 8
  %4789 = vset.pattern.permute.xlu0 %v4788
  %4790 = vperm.xlu0 %4789, %v4779
  %v4791 = vpop.permute.xlu0 %4790
  %v4792 = vperm.slane %v4334, 7
  %v4793 = vlaneseq
  %v4794 = vshrl.u32 %v4793, 7
  %4796 = vset.pattern.permute.xlu0 %v4794
  %4797 = vperm.xlu0 %4796, %v4792
  %v4798 = vpop.permute.xlu0 %4797
  %v4799 = vlaneseq
  %v4800 = vshrl.u32 %v4799, 7
  %v4801 = vadd.s32 %v4800, 8
  %4802 = vset.pattern.permute.xlu0 %v4801
  %4803 = vperm.xlu0 %4802, %v4792
  %v4804 = vpop.permute.xlu0 %4803
  %v4805 = vperm.slane %v4349, 0
  %v4806 = vlaneseq
  %v4807 = vshrl.u32 %v4806, 7
  %4809 = vset.pattern.permute.xlu0 %v4807
  %4810 = vperm.xlu0 %4809, %v4805
  %v4811 = vpop.permute.xlu0 %4810
  %v4812 = vlaneseq
  %v4813 = vshrl.u32 %v4812, 7
  %v4814 = vadd.s32 %v4813, 8
  %4815 = vset.pattern.permute.xlu0 %v4814
  %4816 = vperm.xlu0 %4815, %v4805
  %v4817 = vpop.permute.xlu0 %4816
  %v4818 = vsel %vm960, %v4356, %v4473
  %v4819 = vsel %vm960, %v4362, %v4479
  %v4820 = vsel %vm960, %v4369, %v4486
  %v4821 = vsel %vm960, %v4375, %v4492
  %v4822 = vsel %vm960, %v4382, %v4499
  %v4823 = vsel %vm960, %v4388, %v4505
  %v4824 = vsel %vm960, %v4395, %v4512
  %v4825 = vsel %vm960, %v4401, %v4518
  %v4826 = vsel %vm960, %v4408, %v4525
  %v4827 = vsel %vm960, %v4414, %v4531
  %v4828 = vsel %vm960, %v4421, %v4538
  %v4829 = vsel %vm960, %v4427, %v4544
  %v4830 = vsel %vm960, %v4434, %v4551
  %v4831 = vsel %vm960, %v4440, %v4557
  %v4832 = vsel %vm960, %v4447, %v4564
  %v4833 = vsel %vm960, %v4453, %v4570
  %v4834 = vsel %vm960, %v4460, %v4577
  %v4835 = vsel %vm960, %v4466, %v4583
  %v4836 = vsel %vm2569, %v4818, %v4590
  %v4837 = vsel %vm2569, %v4819, %v4596
  %v4838 = vsel %vm2569, %v4820, %v4603
  %v4839 = vsel %vm2569, %v4821, %v4609
  %v4840 = vsel %vm2569, %v4822, %v4616
  %v4841 = vsel %vm2569, %v4823, %v4622
  %v4842 = vsel %vm2569, %v4824, %v4629
  %v4843 = vsel %vm2569, %v4825, %v4635
  %v4844 = vsel %vm2569, %v4826, %v4642
  %v4845 = vsel %vm2569, %v4827, %v4648
  %v4846 = vsel %vm2569, %v4828, %v4655
  %v4847 = vsel %vm2569, %v4829, %v4661
  %v4848 = vsel %vm2569, %v4830, %v4668
  %v4849 = vsel %vm2569, %v4831, %v4674
  %v4850 = vsel %vm2569, %v4832, %v4681
  %v4851 = vsel %vm2569, %v4833, %v4687
  %v4852 = vsel %vm2569, %v4834, %v4694
  %v4853 = vsel %vm2569, %v4835, %v4700
  %v4854 = vsel %vm2588, %v4836, %v4707
  %v4855 = vsel %vm2588, %v4837, %v4713
  %v4856 = vsel %vm2588, %v4838, %v4720
  %v4857 = vsel %vm2588, %v4839, %v4726
  %v4858 = vsel %vm2588, %v4840, %v4733
  %v4859 = vsel %vm2588, %v4841, %v4739
  %v4860 = vsel %vm2588, %v4842, %v4746
  %v4861 = vsel %vm2588, %v4843, %v4752
  %v4862 = vsel %vm2588, %v4844, %v4759
  %v4863 = vsel %vm2588, %v4845, %v4765
  %v4864 = vsel %vm2588, %v4846, %v4772
  %v4865 = vsel %vm2588, %v4847, %v4778
  %v4866 = vsel %vm2588, %v4848, %v4785
  %v4867 = vsel %vm2588, %v4849, %v4791
  %v4868 = vsel %vm2588, %v4850, %v4798
  %v4869 = vsel %vm2588, %v4851, %v4804
  %v4870 = vsel %vm2588, %v4852, %v4811
  %v4871 = vsel %vm2588, %v4853, %v4817
  %s4872 = scalar_lea.vmem %s5, 144
  %v4873 = vld [vmem:[%s4872] sm:$0xff]
  %v4874 = vld [vmem:[%s4872 + $0x8] sm:$0x1]
  %v4875 = vld [vmem:[%s4872 + $0x10] sm:$0xff]
  %v4876 = vld [vmem:[%s4872 + $0x18] sm:$0x1]
  %v4877 = vld [vmem:[%s4872 + $0x20] sm:$0xff]
  %v4878 = vld [vmem:[%s4872 + $0x28] sm:$0x1]
  %v4879 = vld [vmem:[%s4872 + $0x30] sm:$0xff]
  %v4880 = vld [vmem:[%s4872 + $0x38] sm:$0x1]
  %v4881 = vld [vmem:[%s4872 + $0x40] sm:$0xff]
  %v4882 = vld [vmem:[%s4872 + $0x48] sm:$0x1]
  %v4883 = vld [vmem:[%s4872 + $0x50] sm:$0xff]
  %v4884 = vld [vmem:[%s4872 + $0x58] sm:$0x1]
  %v4885 = vld [vmem:[%s4872 + $0x60] sm:$0xff]
  %v4886 = vld [vmem:[%s4872 + $0x68] sm:$0x1]
  %v4887 = vld [vmem:[%s4872 + $0x70] sm:$0xff]
  %v4888 = vld [vmem:[%s4872 + $0x78] sm:$0x1]
  %v4889 = vld [vmem:[%s4872 + $0x80] sm:$0xff]
  %v4890 = vld [vmem:[%s4872 + $0x88] sm:$0x1]
  %v4909 = vrot.slane %v4873, 7
  %v4910 = vrot.slane %v4874, 7
  %v4911 = vsel %vm3095, %v4909, %v4910
  %v4912 = vrot.slane %v4875, 7
  %v4913 = vrot.slane %v4876, 7
  %v4914 = vsel %vm3095, %v4912, %v4913
  %v4915 = vrot.slane %v4877, 7
  %v4916 = vrot.slane %v4878, 7
  %v4917 = vsel %vm3095, %v4915, %v4916
  %v4918 = vrot.slane %v4879, 7
  %v4919 = vrot.slane %v4880, 7
  %v4920 = vsel %vm3095, %v4918, %v4919
  %v4921 = vrot.slane %v4881, 7
  %v4922 = vrot.slane %v4882, 7
  %v4923 = vsel %vm3095, %v4921, %v4922
  %v4924 = vrot.slane %v4883, 7
  %v4925 = vrot.slane %v4884, 7
  %v4926 = vsel %vm3095, %v4924, %v4925
  %v4927 = vrot.slane %v4885, 7
  %v4928 = vrot.slane %v4886, 7
  %v4929 = vsel %vm3095, %v4927, %v4928
  %v4930 = vrot.slane %v4887, 7
  %v4931 = vrot.slane %v4888, 7
  %v4932 = vsel %vm3095, %v4930, %v4931
  %v4933 = vrot.slane %v4889, 7
  %v4934 = vrot.slane %v4890, 7
  %v4935 = vsel %vm3095, %v4933, %v4934
  %v4954 = vadd.f32 %v832, %v4909
  %v4955 = vadd.f32 %v836, %v4911
  %v4956 = vadd.f32 %v832, %v4912
  %v4957 = vadd.f32 %v836, %v4914
  %v4958 = vadd.f32 %v832, %v4915
  %v4959 = vadd.f32 %v836, %v4917
  %v4960 = vadd.f32 %v832, %v4918
  %v4961 = vadd.f32 %v836, %v4920
  %v4962 = vadd.f32 %v832, %v4921
  %v4963 = vadd.f32 %v836, %v4923
  %v4964 = vadd.f32 %v832, %v4924
  %v4965 = vadd.f32 %v836, %v4926
  %v4966 = vadd.f32 %v832, %v4927
  %v4967 = vadd.f32 %v836, %v4929
  %v4968 = vadd.f32 %v832, %v4930
  %v4969 = vadd.f32 %v836, %v4932
  %v4970 = vadd.f32 %v832, %v4933
  %v4971 = vadd.f32 %v836, %v4935
  %v4990 = vrot.slane %v4954, 1
  %v4991 = vrot.slane %v4955, 1
  %v4992 = vsel %vm3177, %v4990, %v4991
  %v4993 = vrot.slane %v4956, 1
  %v4994 = vrot.slane %v4957, 1
  %v4995 = vsel %vm3177, %v4993, %v4994
  %v4996 = vrot.slane %v4958, 1
  %v4997 = vrot.slane %v4959, 1
  %v4998 = vsel %vm3177, %v4996, %v4997
  %v4999 = vrot.slane %v4960, 1
  %v5000 = vrot.slane %v4961, 1
  %v5001 = vsel %vm3177, %v4999, %v5000
  %v5002 = vrot.slane %v4962, 1
  %v5003 = vrot.slane %v4963, 1
  %v5004 = vsel %vm3177, %v5002, %v5003
  %v5005 = vrot.slane %v4964, 1
  %v5006 = vrot.slane %v4965, 1
  %v5007 = vsel %vm3177, %v5005, %v5006
  %v5008 = vrot.slane %v4966, 1
  %v5009 = vrot.slane %v4967, 1
  %v5010 = vsel %vm3177, %v5008, %v5009
  %v5011 = vrot.slane %v4968, 1
  %v5012 = vrot.slane %v4969, 1
  %v5013 = vsel %vm3177, %v5011, %v5012
  %v5014 = vrot.slane %v4970, 1
  %v5015 = vrot.slane %v4971, 1
  %v5016 = vsel %vm3177, %v5014, %v5015
  %v5035 = vmul.f32 %v4854, %v4992
  %v5036 = vmul.f32 %v4855, %v4991
  %v5037 = vmul.f32 %v4856, %v4995
  %v5038 = vmul.f32 %v4857, %v4994
  %v5039 = vmul.f32 %v4858, %v4998
  %v5040 = vmul.f32 %v4859, %v4997
  %v5041 = vmul.f32 %v4860, %v5001
  %v5042 = vmul.f32 %v4861, %v5000
  %v5043 = vmul.f32 %v4862, %v5004
  %v5044 = vmul.f32 %v4863, %v5003
  %v5045 = vmul.f32 %v4864, %v5007
  %v5046 = vmul.f32 %v4865, %v5006
  %v5047 = vmul.f32 %v4866, %v5010
  %v5048 = vmul.f32 %v4867, %v5009
  %v5049 = vmul.f32 %v4868, %v5013
  %v5050 = vmul.f32 %v4869, %v5012
  %v5051 = vmul.f32 %v4870, %v5016
  %v5052 = vmul.f32 %v4871, %v5015
  %v5053 = vsel %vm51, %v5035, 0.0
  %v5054 = vsel %vm2662, %v5036, 0.0
  %v5055 = vadd.f32 %v5053, %v5054
  %v5056 = vrot.slane %v5055, 4
  %v5057 = vadd.f32 %v5055, %v5056
  %v5058 = vrot.slane %v5057, 2
  %v5059 = vadd.f32 %v5057, %v5058
  %v5060 = vrot.slane %v5059, 1
  %v5061 = vadd.f32 %v5059, %v5060
  %v5062 = vsel %vm51, %v5037, 0.0
  %v5063 = vsel %vm2662, %v5038, 0.0
  %v5064 = vadd.f32 %v5062, %v5063
  %v5065 = vrot.slane %v5064, 4
  %v5066 = vadd.f32 %v5064, %v5065
  %v5067 = vrot.slane %v5066, 2
  %v5068 = vadd.f32 %v5066, %v5067
  %v5069 = vrot.slane %v5068, 1
  %v5070 = vadd.f32 %v5068, %v5069
  %v5071 = vsel %vm51, %v5039, 0.0
  %v5072 = vsel %vm2662, %v5040, 0.0
  %v5073 = vadd.f32 %v5071, %v5072
  %v5074 = vrot.slane %v5073, 4
  %v5075 = vadd.f32 %v5073, %v5074
  %v5076 = vrot.slane %v5075, 2
  %v5077 = vadd.f32 %v5075, %v5076
  %v5078 = vrot.slane %v5077, 1
  %v5079 = vadd.f32 %v5077, %v5078
  %v5080 = vsel %vm51, %v5041, 0.0
  %v5081 = vsel %vm2662, %v5042, 0.0
  %v5082 = vadd.f32 %v5080, %v5081
  %v5083 = vrot.slane %v5082, 4
  %v5084 = vadd.f32 %v5082, %v5083
  %v5085 = vrot.slane %v5084, 2
  %v5086 = vadd.f32 %v5084, %v5085
  %v5087 = vrot.slane %v5086, 1
  %v5088 = vadd.f32 %v5086, %v5087
  %v5089 = vsel %vm51, %v5043, 0.0
  %v5090 = vsel %vm2662, %v5044, 0.0
  %v5091 = vadd.f32 %v5089, %v5090
  %v5092 = vrot.slane %v5091, 4
  %v5093 = vadd.f32 %v5091, %v5092
  %v5094 = vrot.slane %v5093, 2
  %v5095 = vadd.f32 %v5093, %v5094
  %v5096 = vrot.slane %v5095, 1
  %v5097 = vadd.f32 %v5095, %v5096
  %v5098 = vsel %vm51, %v5045, 0.0
  %v5099 = vsel %vm2662, %v5046, 0.0
  %v5100 = vadd.f32 %v5098, %v5099
  %v5101 = vrot.slane %v5100, 4
  %v5102 = vadd.f32 %v5100, %v5101
  %v5103 = vrot.slane %v5102, 2
  %v5104 = vadd.f32 %v5102, %v5103
  %v5105 = vrot.slane %v5104, 1
  %v5106 = vadd.f32 %v5104, %v5105
  %v5107 = vsel %vm51, %v5047, 0.0
  %v5108 = vsel %vm2662, %v5048, 0.0
  %v5109 = vadd.f32 %v5107, %v5108
  %v5110 = vrot.slane %v5109, 4
  %v5111 = vadd.f32 %v5109, %v5110
  %v5112 = vrot.slane %v5111, 2
  %v5113 = vadd.f32 %v5111, %v5112
  %v5114 = vrot.slane %v5113, 1
  %v5115 = vadd.f32 %v5113, %v5114
  %v5116 = vsel %vm51, %v5049, 0.0
  %v5117 = vsel %vm2662, %v5050, 0.0
  %v5118 = vadd.f32 %v5116, %v5117
  %v5119 = vrot.slane %v5118, 4
  %v5120 = vadd.f32 %v5118, %v5119
  %v5121 = vrot.slane %v5120, 2
  %v5122 = vadd.f32 %v5120, %v5121
  %v5123 = vrot.slane %v5122, 1
  %v5124 = vadd.f32 %v5122, %v5123
  %v5125 = vsel %vm51, %v5051, 0.0
  %v5126 = vsel %vm2662, %v5052, 0.0
  %v5127 = vadd.f32 %v5125, %v5126
  %v5128 = vrot.slane %v5127, 4
  %v5129 = vadd.f32 %v5127, %v5128
  %v5130 = vrot.slane %v5129, 2
  %v5131 = vadd.f32 %v5129, %v5130
  %v5132 = vrot.slane %v5131, 1
  %v5133 = vadd.f32 %v5131, %v5132
  %v5143 = vsel %vm1838, %v5070, %v5061
  %v5144 = vsel %vm1840, %v5079, %v5143
  %v5145 = vsel %vm1842, %v5088, %v5144
  %v5146 = vsel %vm1844, %v5097, %v5145
  %v5147 = vsel %vm1846, %v5106, %v5146
  %v5148 = vsel %vm1848, %v5115, %v5147
  %v5149 = vsel %vm1850, %v5124, %v5148
  %v5150 = vsel %vm51, %v5149, 0
  %v5152 = vsel %vm51, %v5133, 0
  %5154 = vmatpush.msra.mxu0 0.0
  %5155 = vmatpush.msra.mxu0 0.0
  %5156 = vmatpush.msra.mxu0 0.0
  %5157 = vmatpush.msra.mxu0 0.0
  %5158 = vmatpush.msra.mxu0 0.0
  %5159 = vmatpush.msra.mxu0 0.0
  %5160 = vmatpush.msra.mxu0 0.0
  %5161 = vmatpush.msra.mxu0 0.0
  %5162 = vmatpush.msra.mxu0 0.0
  %5163 = vmatpush.msra.mxu0 0.0
  %5164 = vmatpush.msra.mxu0 0.0
  %5165 = vmatpush.msra.mxu0 0.0
  %v5166 = vand.u32 %v841, 4294901760
  %5167 = vmatpush.msra.mxu0 %v5166
  %v5168 = vand.u32 %v840, 4294901760
  %5169 = vmatpush.msra.mxu0 %v5168
  %v5170 = vand.u32 %v839, 4294901760
  %5171 = vmatpush.msra.mxu0 %v5170
  %v5172 = vand.u32 %v838, 4294901760
  %5173 = vmatpush.msra.mxu0 %v5172
  %v5174 = vand.u32 %v5150, 4294901760
  %v5175 = vsub.f32 %v5150, %v5174
  %v5176 = vand.u32 %v5175, 4294901760
  %v5177 = vsub.f32 %v5175, %v5176
  %v5178 = vand.u32 %v5177, 4294901760
  %5179 = vmatmul.f32.gmra.mxu0 %v5178
  %v5180 = vpop.f32.mrf.mxu0
  %v5181 = vadd.f32 %v2744, %v5180
  %v5182 = vand.u32 %v5152, 4294901760
  %v5183 = vsub.f32 %v5152, %v5182
  %v5184 = vand.u32 %v5183, 4294901760
  %v5185 = vsub.f32 %v5183, %v5184
  %v5186 = vand.u32 %v5185, 4294901760
  %5187 = vmatmul.f32.gmra.mxu0 %v5186
  %v5188 = vpop.f32.mrf.mxu0
  %v5189 = vadd.f32 %v2744, %v5188
  %5190 = vdwg.mxu0
  %5191 = vmatpush.msra.mxu0 0.0
  %5192 = vmatpush.msra.mxu0 0.0
  %5193 = vmatpush.msra.mxu0 0.0
  %5194 = vmatpush.msra.mxu0 0.0
  %5195 = vmatpush.msra.mxu0 0.0
  %5196 = vmatpush.msra.mxu0 0.0
  %5197 = vmatpush.msra.mxu0 0.0
  %5198 = vmatpush.msra.mxu0 0.0
  %5199 = vmatpush.msra.mxu0 0.0
  %5200 = vmatpush.msra.mxu0 0.0
  %5201 = vmatpush.msra.mxu0 0.0
  %5202 = vmatpush.msra.mxu0 0.0
  %v5203 = vand.u32 %v841, 4294901760
  %v5204 = vsub.f32 %v841, %v5203
  %v5205 = vand.u32 %v5204, 4294901760
  %v5206 = vsub.f32 %v5204, %v5205
  %v5207 = vand.u32 %v5206, 4294901760
  %5208 = vmatpush.msra.mxu0 %v5207
  %v5209 = vand.u32 %v840, 4294901760
  %v5210 = vsub.f32 %v840, %v5209
  %v5211 = vand.u32 %v5210, 4294901760
  %v5212 = vsub.f32 %v5210, %v5211
  %v5213 = vand.u32 %v5212, 4294901760
  %5214 = vmatpush.msra.mxu0 %v5213
  %v5215 = vand.u32 %v839, 4294901760
  %v5216 = vsub.f32 %v839, %v5215
  %v5217 = vand.u32 %v5216, 4294901760
  %v5218 = vsub.f32 %v5216, %v5217
  %v5219 = vand.u32 %v5218, 4294901760
  %5220 = vmatpush.msra.mxu0 %v5219
  %v5221 = vand.u32 %v838, 4294901760
  %v5222 = vsub.f32 %v838, %v5221
  %v5223 = vand.u32 %v5222, 4294901760
  %v5224 = vsub.f32 %v5222, %v5223
  %v5225 = vand.u32 %v5224, 4294901760
  %5226 = vmatpush.msra.mxu0 %v5225
  %v5227 = vand.u32 %v5150, 4294901760
  %5228 = vmatmul.f32.gmra.mxu0 %v5227
  %v5229 = vpop.f32.mrf.mxu0
  %v5230 = vadd.f32 %v5181, %v5229
  %v5231 = vand.u32 %v5152, 4294901760
  %5232 = vmatmul.f32.gmra.mxu0 %v5231
  %v5233 = vpop.f32.mrf.mxu0
  %v5234 = vadd.f32 %v5189, %v5233
  %5235 = vdwg.mxu0
  %5236 = vmatpush.msra.mxu0 0.0
  %5237 = vmatpush.msra.mxu0 0.0
  %5238 = vmatpush.msra.mxu0 0.0
  %5239 = vmatpush.msra.mxu0 0.0
  %5240 = vmatpush.msra.mxu0 0.0
  %5241 = vmatpush.msra.mxu0 0.0
  %5242 = vmatpush.msra.mxu0 0.0
  %5243 = vmatpush.msra.mxu0 0.0
  %5244 = vmatpush.msra.mxu0 0.0
  %5245 = vmatpush.msra.mxu0 0.0
  %5246 = vmatpush.msra.mxu0 0.0
  %5247 = vmatpush.msra.mxu0 0.0
  %v5248 = vand.u32 %v841, 4294901760
  %v5249 = vsub.f32 %v841, %v5248
  %5250 = vmatpush.msra.mxu0 %v5249
  %v5251 = vand.u32 %v840, 4294901760
  %v5252 = vsub.f32 %v840, %v5251
  %5253 = vmatpush.msra.mxu0 %v5252
  %v5254 = vand.u32 %v839, 4294901760
  %v5255 = vsub.f32 %v839, %v5254
  %5256 = vmatpush.msra.mxu0 %v5255
  %v5257 = vand.u32 %v838, 4294901760
  %v5258 = vsub.f32 %v838, %v5257
  %5259 = vmatpush.msra.mxu0 %v5258
  %v5260 = vand.u32 %v5150, 4294901760
  %v5261 = vsub.f32 %v5150, %v5260
  %5262 = vmatmul.f32.gmra.mxu0 %v5261
  %v5263 = vpop.f32.mrf.mxu0
  %v5264 = vadd.f32 %v5230, %v5263
  %v5265 = vand.u32 %v5152, 4294901760
  %v5266 = vsub.f32 %v5152, %v5265
  %5267 = vmatmul.f32.gmra.mxu0 %v5266
  %v5268 = vpop.f32.mrf.mxu0
  %v5269 = vadd.f32 %v5234, %v5268
  %5270 = vdwg.mxu0
  %5271 = vmatpush.msra.mxu0 0.0
  %5272 = vmatpush.msra.mxu0 0.0
  %5273 = vmatpush.msra.mxu0 0.0
  %5274 = vmatpush.msra.mxu0 0.0
  %5275 = vmatpush.msra.mxu0 0.0
  %5276 = vmatpush.msra.mxu0 0.0
  %5277 = vmatpush.msra.mxu0 0.0
  %5278 = vmatpush.msra.mxu0 0.0
  %5279 = vmatpush.msra.mxu0 0.0
  %5280 = vmatpush.msra.mxu0 0.0
  %5281 = vmatpush.msra.mxu0 0.0
  %5282 = vmatpush.msra.mxu0 0.0
  %v5283 = vand.u32 %v841, 4294901760
  %5284 = vmatpush.msra.mxu0 %v5283
  %v5285 = vand.u32 %v840, 4294901760
  %5286 = vmatpush.msra.mxu0 %v5285
  %v5287 = vand.u32 %v839, 4294901760
  %5288 = vmatpush.msra.mxu0 %v5287
  %v5289 = vand.u32 %v838, 4294901760
  %5290 = vmatpush.msra.mxu0 %v5289
  %v5291 = vand.u32 %v5150, 4294901760
  %v5292 = vsub.f32 %v5150, %v5291
  %v5293 = vand.u32 %v5292, 4294901760
  %5294 = vmatmul.f32.gmra.mxu0 %v5293
  %v5295 = vpop.f32.mrf.mxu0
  %v5296 = vadd.f32 %v5264, %v5295
  %v5297 = vand.u32 %v5152, 4294901760
  %v5298 = vsub.f32 %v5152, %v5297
  %v5299 = vand.u32 %v5298, 4294901760
  %5300 = vmatmul.f32.gmra.mxu0 %v5299
  %v5301 = vpop.f32.mrf.mxu0
  %v5302 = vadd.f32 %v5269, %v5301
  %5303 = vdwg.mxu0
  %5304 = vmatpush.msra.mxu0 0.0
  %5305 = vmatpush.msra.mxu0 0.0
  %5306 = vmatpush.msra.mxu0 0.0
  %5307 = vmatpush.msra.mxu0 0.0
  %5308 = vmatpush.msra.mxu0 0.0
  %5309 = vmatpush.msra.mxu0 0.0
  %5310 = vmatpush.msra.mxu0 0.0
  %5311 = vmatpush.msra.mxu0 0.0
  %5312 = vmatpush.msra.mxu0 0.0
  %5313 = vmatpush.msra.mxu0 0.0
  %5314 = vmatpush.msra.mxu0 0.0
  %5315 = vmatpush.msra.mxu0 0.0
  %v5316 = vand.u32 %v841, 4294901760
  %v5317 = vsub.f32 %v841, %v5316
  %v5318 = vand.u32 %v5317, 4294901760
  %5319 = vmatpush.msra.mxu0 %v5318
  %v5320 = vand.u32 %v840, 4294901760
  %v5321 = vsub.f32 %v840, %v5320
  %v5322 = vand.u32 %v5321, 4294901760
  %5323 = vmatpush.msra.mxu0 %v5322
  %v5324 = vand.u32 %v839, 4294901760
  %v5325 = vsub.f32 %v839, %v5324
  %v5326 = vand.u32 %v5325, 4294901760
  %5327 = vmatpush.msra.mxu0 %v5326
  %v5328 = vand.u32 %v838, 4294901760
  %v5329 = vsub.f32 %v838, %v5328
  %v5330 = vand.u32 %v5329, 4294901760
  %5331 = vmatpush.msra.mxu0 %v5330
  %v5332 = vand.u32 %v5150, 4294901760
  %5333 = vmatmul.f32.gmra.mxu0 %v5332
  %v5334 = vpop.f32.mrf.mxu0
  %v5335 = vadd.f32 %v5296, %v5334
  %v5336 = vand.u32 %v5152, 4294901760
  %5337 = vmatmul.f32.gmra.mxu0 %v5336
  %v5338 = vpop.f32.mrf.mxu0
  %v5339 = vadd.f32 %v5302, %v5338
  %5340 = vdwg.mxu0
  %5341 = vmatpush.msra.mxu0 0.0
  %5342 = vmatpush.msra.mxu0 0.0
  %5343 = vmatpush.msra.mxu0 0.0
  %5344 = vmatpush.msra.mxu0 0.0
  %5345 = vmatpush.msra.mxu0 0.0
  %5346 = vmatpush.msra.mxu0 0.0
  %5347 = vmatpush.msra.mxu0 0.0
  %5348 = vmatpush.msra.mxu0 0.0
  %5349 = vmatpush.msra.mxu0 0.0
  %5350 = vmatpush.msra.mxu0 0.0
  %5351 = vmatpush.msra.mxu0 0.0
  %5352 = vmatpush.msra.mxu0 0.0
  %v5353 = vand.u32 %v841, 4294901760
  %5354 = vmatpush.msra.mxu0 %v5353
  %v5355 = vand.u32 %v840, 4294901760
  %5356 = vmatpush.msra.mxu0 %v5355
  %v5357 = vand.u32 %v839, 4294901760
  %5358 = vmatpush.msra.mxu0 %v5357
  %v5359 = vand.u32 %v838, 4294901760
  %5360 = vmatpush.msra.mxu0 %v5359
  %v5361 = vand.u32 %v5150, 4294901760
  %5362 = vmatmul.f32.gmra.mxu0 %v5361
  %v5363 = vpop.f32.mrf.mxu0
  %v5364 = vadd.f32 %v5335, %v5363
  %v5365 = vand.u32 %v5152, 4294901760
  %5366 = vmatmul.f32.gmra.mxu0 %v5365
  %v5367 = vpop.f32.mrf.mxu0
  %v5368 = vadd.f32 %v5339, %v5367
  %5369 = vdwg.mxu0
  %s5370 = scalar_lea.vmem %s13, 16
  %5371 = vst.msk [vmem:[%s5370] sm:$0xff] %vm51, %v5364
  %5372 = vst.msk [vmem:[%s5370 + $0x8] sm:$0x1] %vm2662, %v5368
  // Predicated region
  $region54: #{tpu_custom_call.1} parent=0 // pred_check
    _
  $region55: #{tpu_custom_call.1} parent=0 // pred_check_branch
    %5374 = sbr.rel (0) target = $region57
  $region56: #{tpu_custom_call.1} parent=0 // pred_region
    _
  $region57: #{tpu_custom_call.1} parent=0 // pred_fallthru
    _
  // Predicated region
  $region58: #{tpu_custom_call.1} parent=0 // pred_check
    _
  $region59: #{tpu_custom_call.1} parent=0 // pred_check_branch
    %5376 = sbr.rel (0) target = $region61
  $region60: #{tpu_custom_call.1} parent=0 // pred_region
    _
  $region61: #{tpu_custom_call.1} parent=0 // pred_fallthru
    _

</llo_original>
